<compile_context>
chip_gen: v7x
topology: tpu7x:2x2x1
jax: 0.10.0
libtpu: 0.0.40
codegen_flags: <defaults>
</compile_context>

<pallas_src>
import math
import jax
import jax.numpy as jnp
from jax.experimental import pallas as pl
from jax.experimental.pallas import tpu as pltpu  # noqa: F401  (TPU backend namespace)

# ----------------------------- configuration --------------------------------
NUM_LAYERS = 2
HIDDEN = 32
N_HEADS = 4
HEAD_DIM = HIDDEN // N_HEADS
SEQ = 8
BATCH = 2
LATENT = 16
FF = 4 * HIDDEN
MAX_MEM_LEN = 4
EPS = 1e-5
INIT_STD = 0.02
OUT_STD = INIT_STD / math.sqrt(2.0 * NUM_LAYERS)

M = BATCH * SEQ                      # flattened (batch, seq) rows
MEM_LEN = min(MAX_MEM_LEN, SEQ)      # update_mems with empty mems
ATTN_SCALE = 1.0 / math.sqrt(HEAD_DIM)


def _gelu(x):
    # OpenAI gelu (tanh approximation), same constants as the reference.
    return 0.5 * x * (1.0 + jnp.tanh(0.7978845608028654 * x * (1.0 + 0.044715 * x * x)))


def _layernorm(x, gamma, beta):
    mu = jnp.mean(x, axis=-1, keepdims=True)
    var = jnp.mean((x - mu) * (x - mu), axis=-1, keepdims=True)
    return (x - mu) * jax.lax.rsqrt(var + EPS) * gamma + beta


# ------------------------------ fused Pallas kernel --------------------------
def fused_forward_kernel(
    h_ref, lat_ref, mask_ref, nbias_ref,
    ln1g_ref, ln1b_ref,
    wqkv_ref, bqkv_ref,
    wd_ref, bd_ref,
    ln2g_ref, ln2b_ref,
    w1_ref, b1_ref, w2_ref, b2_ref,
    flng_ref, flnb_ref,
    out_ref, hid_ref,
):
    """Entire GPT2TransformerForLatent forward in one gridless kernel invocation.

    Activations are [M, H] = [B*S, H]; attention uses a block-diagonal causal
    mask / additive bias [M, M] so batches never attend to each other.
    """
    lat = lat_ref[...]                      # [M, H] latent embedding per row
    mask = mask_ref[...]                    # [M, M] block-diag ltor mask (0/1)
    nbias = nbias_ref[...]                  # [M, M] precomputed -10000*(1-mask)
    h = h_ref[...] + lat                    # embedding + latent (dropout = identity)

    # mems checkpoint 0: full [M, H] slab store; tail-slicing happens in the wrapper.
    hid_ref[0] = h

    for l in range(NUM_LAYERS):
        # ---- input layernorm (f32) ----
        xn = _layernorm(h, ln1g_ref[l], ln1b_ref[l])

        # ---- fused QKV projection: one [16,32]@[32,96] MXU pass ----
        qkv = jnp.dot(xn.astype(jnp.bfloat16), wqkv_ref[l],
                      preferred_element_type=jnp.float32) + bqkv_ref[l]   # [M, 3H]

        # ---- per-head attention via static lane slices (unrolled, 2-D dots) ----
        ctx_parts = []
        for n in range(N_HEADS):
            off = n * HEAD_DIM
            q_h = qkv[:, off:off + HEAD_DIM]                              # [M, D]
            k_h = qkv[:, HIDDEN + off:HIDDEN + off + HEAD_DIM]            # [M, D]
            v_h = qkv[:, 2 * HIDDEN + off:2 * HIDDEN + off + HEAD_DIM]    # [M, D]

            # QK^T: contract last dims (no explicit transpose materialized)
            s = jax.lax.dot_general(
                q_h, k_h, (((1,), (1,)), ((), ())),
                preferred_element_type=jnp.float32) * ATTN_SCALE          # [M, M]
            s = s * mask + nbias
            s = s - jnp.max(s, axis=-1, keepdims=True)
            e = jnp.exp(s)
            p = e * pl.reciprocal(jnp.sum(e, axis=-1, keepdims=True), approx=True)
            ctx_parts.append(jnp.dot(p, v_h, preferred_element_type=jnp.float32))

        ctx = jnp.concatenate(ctx_parts, axis=-1)                         # [M, H]

        # ---- attention output projection: one [16,32]@[32,32] MXU pass ----
        attn_out = jnp.dot(ctx.astype(jnp.bfloat16), wd_ref[l],
                           preferred_element_type=jnp.float32) + bd_ref[l]
        x1 = h + attn_out

        # ---- post-attention layernorm + MLP (h -> 4h -> gelu -> h) + residual ----
        x1n = _layernorm(x1, ln2g_ref[l], ln2b_ref[l])
        inter = _gelu(jnp.dot(x1n.astype(jnp.bfloat16), w1_ref[l],
                              preferred_element_type=jnp.float32) + b1_ref[l])
        mlp = jnp.dot(inter.astype(jnp.bfloat16), w2_ref[l],
                      preferred_element_type=jnp.float32) + b2_ref[l]

        # residual + per-layer latent add (as in the reference forward loop)
        h = x1 + mlp + lat
        hid_ref[l + 1] = h

    # ---- final layernorm ----
    out_ref[...] = _layernorm(h, flng_ref[...], flnb_ref[...])


def fused_forward(h_flat, latent_full, big_mask, neg_bias, params):
    out_shape = (
        jax.ShapeDtypeStruct((M, HIDDEN), jnp.float32),
        jax.ShapeDtypeStruct((NUM_LAYERS + 1, M, HIDDEN), jnp.float32),
    )
    # Single invocation, no grid: every operand is a whole-array VMEM block.
    # (~100 KB weights + a few KB activations — no tiling / pipelining needed.)
    return pl.pallas_call(fused_forward_kernel, out_shape=out_shape)(
        h_flat, latent_full, big_mask, neg_bias,
        params["ln1_g"], params["ln1_b"],
        params["wqkv"], params["bqkv"],
        params["wd"], params["bd"],
        params["ln2_g"], params["ln2_b"],
        params["w1"], params["b1"], params["w2"], params["b2"],
        params["final_ln_g"], params["final_ln_b"],
    )


# --------------------------- parameter construction ---------------------------
def init_params(key):
    ks = jax.random.split(key, 5)
    L, H = NUM_LAYERS, HIDDEN

    def nrm(k, shape, std, dtype=jnp.float32):
        return (std * jax.random.normal(k, shape, jnp.float32)).astype(dtype)

    return {
        # Linear(latent_size, hidden, bias=False), N(0, init_method_std)
        "linear_emb": nrm(ks[0], (LATENT, H), INIT_STD),
        "ln1_g": jnp.ones((L, 1, H), jnp.float32),
        "ln1_b": jnp.zeros((L, 1, H), jnp.float32),
        # fused query_key_value Linear: [L, H, 3H]; Q/K/V occupy lane ranges
        # [0:H], [H:2H], [2H:3H] with heads contiguous inside each range.
        "wqkv": nrm(ks[1], (L, H, 3 * H), INIT_STD, jnp.bfloat16),
        "bqkv": jnp.zeros((L, 1, 3 * H), jnp.float32),
        # attention output Linear: [L, N*D, H] = [L, H, H], scaled init
        "wd": nrm(ks[2], (L, H, H), OUT_STD, jnp.bfloat16),
        "bd": jnp.zeros((L, 1, H), jnp.float32),
        "ln2_g": jnp.ones((L, 1, H), jnp.float32),
        "ln2_b": jnp.zeros((L, 1, H), jnp.float32),
        "w1": nrm(ks[3], (L, H, FF), INIT_STD, jnp.bfloat16),
        "b1": jnp.zeros((L, 1, FF), jnp.float32),
        "w2": nrm(ks[4], (L, FF, H), OUT_STD, jnp.bfloat16),
        "b2": jnp.zeros((L, 1, H), jnp.float32),
        "final_ln_g": jnp.ones((1, H), jnp.float32),
        "final_ln_b": jnp.zeros((1, H), jnp.float32),
    }


# ------------------------------- forward pass ---------------------------------
@jax.jit
def gpt2_transformer_for_latent(hidden_states, attention_mask, latent_state, mems, params):
    """Mirrors GPT2TransformerForLatent.forward (relative_encoding=False, mems empty)."""
    B, S, H = hidden_states.shape
    memory_length = mems[0].shape[1] if mems else 0   # mems is None in this setup
    # attention_mask[:, :, :, -query_length - memory_length:]
    attention_mask = attention_mask[:, :, :, -(S + memory_length):]
    mask_bss = attention_mask[:, 0].astype(jnp.float32)          # [B, S, S]

    # Block-diagonal [B*S, B*S] mask: within-batch entries keep the provided
    # ltor mask values, cross-batch entries are 0 (fully masked).
    eye = jnp.eye(B, dtype=jnp.float32)
    big_mask = eye[:, :, None, None] * mask_bss[:, None, :, :]   # [B, Bc, S, S]
    big_mask = big_mask.transpose(0, 2, 1, 3).reshape(B * S, B * S)
    # Precompute the loop-invariant additive bias once (Megatron -10000 convention).
    neg_bias = -10000.0 * (1.0 - big_mask)

    # latent embedding: Linear(latent_size, hidden, bias=False), then broadcast
    # per token (unsqueeze(1) in the reference) and flattened to [B*S, H].
    latent_emb = latent_state @ params["linear_emb"]             # [B, H]
    latent_full = jnp.broadcast_to(latent_emb[:, None, :], (B, S, H)).reshape(B * S, H)

    # TODO(synk): position embeddings are computed but never used when
    # relative_encoding=False in the reference module; skipped here.

    h_flat = hidden_states.reshape(B * S, H)
    out_flat, hiddens = fused_forward(h_flat, latent_full, big_mask, neg_bias, params)

    output = out_flat.reshape(B, S, H)
    # update_mems with mems empty: keep the last min(max_memory_length, S) tokens
    # of each captured hidden state.  Slicing is done here (free XLA work) instead
    # of masked partial stores inside the kernel.
    hiddens_b = hiddens.reshape(NUM_LAYERS + 1, B, S, H)
    mem_layers = [hiddens_b[i, :, S - MEM_LEN:, :] for i in range(NUM_LAYERS + 1)]
    return output, mem_layers


# ----------------------------------- main --------------------------------------
if __name__ == "__main__":
    key = jax.random.PRNGKey(0)
    k_param, k_x, k_latent = jax.random.split(key, 3)

    params = init_params(k_param)

    hidden_states = jax.random.normal(k_x, (BATCH, SEQ, HIDDEN), jnp.float32)
    latent_state = jax.random.normal(k_latent, (BATCH, LATENT), jnp.float32)
    # causal left-to-right mask, [B, 1, S, S] of 0/1 floats
    ltor = jnp.tril(jnp.ones((SEQ, SEQ), jnp.float32))
    attention_mask = jnp.broadcast_to(ltor[None, None], (BATCH, 1, SEQ, SEQ))

    output, mem_layers = gpt2_transformer_for_latent(
        hidden_states, attention_mask, latent_state, None, params
    )
    jax.block_until_ready(output)
    for m_ in mem_layers:
        jax.block_until_ready(m_)

    assert output.shape == (BATCH, SEQ, HIDDEN)
    assert len(mem_layers) == NUM_LAYERS + 1
    assert all(m_.shape == (BATCH, MEM_LEN, HIDDEN) for m_ in mem_layers)
    assert bool(jnp.all(jnp.isfinite(output)))
    print("KERNEL_OK")
</pallas_src>

<mosaic_0001>
module attributes {stable_mosaic.version = 11 : i64} {
  func.func @fused_forward_kernel(%arg0: memref<16x32xf32, #tpu.memory_space<vmem>>, %arg1: memref<16x32xf32, #tpu.memory_space<vmem>>, %arg2: memref<16x16xf32, #tpu.memory_space<vmem>>, %arg3: memref<16x16xf32, #tpu.memory_space<vmem>>, %arg4: memref<2x1x32xf32, #tpu.memory_space<vmem>>, %arg5: memref<2x1x32xf32, #tpu.memory_space<vmem>>, %arg6: memref<2x32x96xbf16, #tpu.memory_space<vmem>>, %arg7: memref<2x1x96xf32, #tpu.memory_space<vmem>>, %arg8: memref<2x32x32xbf16, #tpu.memory_space<vmem>>, %arg9: memref<2x1x32xf32, #tpu.memory_space<vmem>>, %arg10: memref<2x1x32xf32, #tpu.memory_space<vmem>>, %arg11: memref<2x1x32xf32, #tpu.memory_space<vmem>>, %arg12: memref<2x32x128xbf16, #tpu.memory_space<vmem>>, %arg13: memref<2x1x128xf32, #tpu.memory_space<vmem>>, %arg14: memref<2x128x32xbf16, #tpu.memory_space<vmem>>, %arg15: memref<2x1x32xf32, #tpu.memory_space<vmem>>, %arg16: memref<1x32xf32, #tpu.memory_space<vmem>>, %arg17: memref<1x32xf32, #tpu.memory_space<vmem>>, %arg18: memref<16x32xf32, #tpu.memory_space<vmem>>, %arg19: memref<3x16x32xf32, #tpu.memory_space<vmem>>) attributes {dimension_semantics = [], scalar_prefetch = 0 : i64, scratch_operands = 0 : i64, tpu.core_type = #tpu.core_type<tc>} {
    %c0 = arith.constant 0 : index
    %c0_0 = arith.constant 0 : index
    %0 = vector.load %arg1[%c0, %c0_0] : memref<16x32xf32, #tpu.memory_space<vmem>>, vector<16x32xf32>
    %c0_1 = arith.constant 0 : index
    %c0_2 = arith.constant 0 : index
    %1 = vector.load %arg2[%c0_1, %c0_2] : memref<16x16xf32, #tpu.memory_space<vmem>>, vector<16x16xf32>
    %c0_3 = arith.constant 0 : index
    %c0_4 = arith.constant 0 : index
    %2 = vector.load %arg3[%c0_3, %c0_4] : memref<16x16xf32, #tpu.memory_space<vmem>>, vector<16x16xf32>
    %c0_5 = arith.constant 0 : index
    %c0_6 = arith.constant 0 : index
    %3 = vector.load %arg0[%c0_5, %c0_6] : memref<16x32xf32, #tpu.memory_space<vmem>>, vector<16x32xf32>
    %4 = arith.addf %3, %0 : vector<16x32xf32>
    %c0_7 = arith.constant 0 : index
    %c0_8 = arith.constant 0 : index
    %c0_9 = arith.constant 0 : index
    %5 = vector.load %arg19[%c0_7, %c0_8, %c0_9] : memref<3x16x32xf32, #tpu.memory_space<vmem>>, vector<1x16x32xf32>
    %6 = vector.shape_cast %5 : vector<1x16x32xf32> to vector<16x32xf32>
    %7 = vector.shape_cast %4 : vector<16x32xf32> to vector<1x16x32xf32>
    tpu.vector_store %arg19[%c0_7, %c0_8, %c0_9], %7 {strides = array<i32>} : memref<3x16x32xf32, #tpu.memory_space<vmem>>, vector<1x16x32xf32>,
    %c0_10 = arith.constant 0 : index
    %c0_11 = arith.constant 0 : index
    %c0_12 = arith.constant 0 : index
    %8 = vector.load %arg4[%c0_10, %c0_11, %c0_12] : memref<2x1x32xf32, #tpu.memory_space<vmem>>, vector<1x1x32xf32>
    %9 = vector.shape_cast %8 : vector<1x1x32xf32> to vector<1x32xf32>
    %c0_13 = arith.constant 0 : index
    %c0_14 = arith.constant 0 : index
    %c0_15 = arith.constant 0 : index
    %10 = vector.load %arg5[%c0_13, %c0_14, %c0_15] : memref<2x1x32xf32, #tpu.memory_space<vmem>>, vector<1x1x32xf32>
    %11 = vector.shape_cast %10 : vector<1x1x32xf32> to vector<1x32xf32>
    %cst = arith.constant dense<0.000000e+00> : vector<16xf32>
    %12 = vector.multi_reduction <add>, %4, %cst [1] : vector<16x32xf32> to vector<16xf32>
    %13 = vector.shape_cast %12 : vector<16xf32> to vector<16x1xf32>
    %cst_16 = arith.constant 3.200000e+01 : f32
    %14 = vector.broadcast %cst_16 : f32 to vector<16x1xf32>
    %15 = arith.divf %13, %14 : vector<16x1xf32>
    %16 = vector.broadcast %15 : vector<16x1xf32> to vector<16x32xf32>
    %17 = arith.subf %4, %16 : vector<16x32xf32>
    %18 = vector.broadcast %15 : vector<16x1xf32> to vector<16x32xf32>
    %19 = arith.subf %4, %18 : vector<16x32xf32>
    %20 = arith.mulf %17, %19 : vector<16x32xf32>
    %cst_17 = arith.constant dense<0.000000e+00> : vector<16xf32>
    %21 = vector.multi_reduction <add>, %20, %cst_17 [1] : vector<16x32xf32> to vector<16xf32>
    %22 = vector.shape_cast %21 : vector<16xf32> to vector<16x1xf32>
    %cst_18 = arith.constant 3.200000e+01 : f32
    %23 = vector.broadcast %cst_18 : f32 to vector<16x1xf32>
    %24 = arith.divf %22, %23 : vector<16x1xf32>
    %25 = vector.broadcast %15 : vector<16x1xf32> to vector<16x32xf32>
    %26 = arith.subf %4, %25 : vector<16x32xf32>
    %cst_19 = arith.constant 9.99999974E-6 : f32
    %27 = vector.broadcast %cst_19 : f32 to vector<16x1xf32>
    %28 = arith.addf %24, %27 : vector<16x1xf32>
    %29 = math.rsqrt %28 : vector<16x1xf32>
    %30 = vector.broadcast %29 : vector<16x1xf32> to vector<16x32xf32>
    %31 = arith.mulf %26, %30 : vector<16x32xf32>
    %32 = vector.broadcast %9 : vector<1x32xf32> to vector<16x32xf32>
    %33 = arith.mulf %31, %32 : vector<16x32xf32>
    %34 = vector.broadcast %11 : vector<1x32xf32> to vector<16x32xf32>
    %35 = arith.addf %33, %34 : vector<16x32xf32>
    %36 = arith.truncf %35 : vector<16x32xf32> to vector<16x32xbf16>
    %c0_20 = arith.constant 0 : index
    %c0_21 = arith.constant 0 : index
    %c0_22 = arith.constant 0 : index
    %37 = vector.load %arg6[%c0_20, %c0_21, %c0_22] : memref<2x32x96xbf16, #tpu.memory_space<vmem>>, vector<1x32x96xbf16>
    %38 = vector.shape_cast %37 : vector<1x32x96xbf16> to vector<32x96xbf16>
    %cst_23 = arith.constant dense<0.000000e+00> : vector<16x96xf32>
    %39 = tpu.matmul %36, %38, %cst_23 {dimension_numbers = #tpu.dot_dimension_numbers<[1], [0], [0], [1], [0, 0, 1, 1], [], []>} : vector<16x32xbf16>, vector<32x96xbf16>, vector<16x96xf32> -> vector<16x96xf32>
    %c0_24 = arith.constant 0 : index
    %c0_25 = arith.constant 0 : index
    %c0_26 = arith.constant 0 : index
    %40 = vector.load %arg7[%c0_24, %c0_25, %c0_26] : memref<2x1x96xf32, #tpu.memory_space<vmem>>, vector<1x1x96xf32>
    %41 = vector.shape_cast %40 : vector<1x1x96xf32> to vector<1x96xf32>
    %42 = vector.broadcast %41 : vector<1x96xf32> to vector<16x96xf32>
    %43 = arith.addf %39, %42 : vector<16x96xf32>
    %44 = vector.extract_strided_slice %43 {offsets = [0, 0], sizes = [16, 8], strides = [1, 1]} : vector<16x96xf32> to vector<16x8xf32>
    %45 = vector.extract_strided_slice %43 {offsets = [0, 32], sizes = [16, 8], strides = [1, 1]} : vector<16x96xf32> to vector<16x8xf32>
    %46 = vector.extract_strided_slice %43 {offsets = [0, 64], sizes = [16, 8], strides = [1, 1]} : vector<16x96xf32> to vector<16x8xf32>
    %cst_27 = arith.constant dense<0.000000e+00> : vector<16x16xf32>
    %47 = tpu.matmul %44, %45, %cst_27 {dimension_numbers = #tpu.dot_dimension_numbers<[1], [1], [0], [0], [0, 0, 1, 0], [], []>} : vector<16x8xf32>, vector<16x8xf32>, vector<16x16xf32> -> vector<16x16xf32>
    %cst_28 = arith.constant 0.353553385 : f32
    %48 = vector.broadcast %cst_28 : f32 to vector<16x16xf32>
    %49 = arith.mulf %47, %48 : vector<16x16xf32>
    %50 = arith.mulf %49, %1 : vector<16x16xf32>
    %51 = arith.addf %50, %2 : vector<16x16xf32>
    %cst_29 = arith.constant dense<0xFF800000> : vector<16xf32>
    %52 = vector.multi_reduction <maximumf>, %51, %cst_29 [1] : vector<16x16xf32> to vector<16xf32>
    %53 = vector.shape_cast %52 : vector<16xf32> to vector<16x1xf32>
    %54 = vector.broadcast %53 : vector<16x1xf32> to vector<16x16xf32>
    %55 = arith.subf %51, %54 : vector<16x16xf32>
    %56 = math.exp %55 : vector<16x16xf32>
    %cst_30 = arith.constant dense<0.000000e+00> : vector<16xf32>
    %57 = vector.multi_reduction <add>, %56, %cst_30 [1] : vector<16x16xf32> to vector<16xf32>
    %58 = vector.shape_cast %57 : vector<16xf32> to vector<16x1xf32>
    %59 = tpu.reciprocal %58 {approx = true} : vector<16x1xf32> -> vector<16x1xf32>
    %60 = vector.broadcast %59 : vector<16x1xf32> to vector<16x16xf32>
    %61 = arith.mulf %56, %60 : vector<16x16xf32>
    %cst_31 = arith.constant dense<0.000000e+00> : vector<16x8xf32>
    %62 = tpu.matmul %61, %46, %cst_31 {dimension_numbers = #tpu.dot_dimension_numbers<[1], [0], [0], [1], [0, 0, 1, 1], [], []>} : vector<16x16xf32>, vector<16x8xf32>, vector<16x8xf32> -> vector<16x8xf32>
    %63 = vector.extract_strided_slice %43 {offsets = [0, 8], sizes = [16, 8], strides = [1, 1]} : vector<16x96xf32> to vector<16x8xf32>
    %64 = vector.extract_strided_slice %43 {offsets = [0, 40], sizes = [16, 8], strides = [1, 1]} : vector<16x96xf32> to vector<16x8xf32>
    %65 = vector.extract_strided_slice %43 {offsets = [0, 72], sizes = [16, 8], strides = [1, 1]} : vector<16x96xf32> to vector<16x8xf32>
    %cst_32 = arith.constant dense<0.000000e+00> : vector<16x16xf32>
    %66 = tpu.matmul %63, %64, %cst_32 {dimension_numbers = #tpu.dot_dimension_numbers<[1], [1], [0], [0], [0, 0, 1, 0], [], []>} : vector<16x8xf32>, vector<16x8xf32>, vector<16x16xf32> -> vector<16x16xf32>
    %cst_33 = arith.constant 0.353553385 : f32
    %67 = vector.broadcast %cst_33 : f32 to vector<16x16xf32>
    %68 = arith.mulf %66, %67 : vector<16x16xf32>
    %69 = arith.mulf %68, %1 : vector<16x16xf32>
    %70 = arith.addf %69, %2 : vector<16x16xf32>
    %cst_34 = arith.constant dense<0xFF800000> : vector<16xf32>
    %71 = vector.multi_reduction <maximumf>, %70, %cst_34 [1] : vector<16x16xf32> to vector<16xf32>
    %72 = vector.shape_cast %71 : vector<16xf32> to vector<16x1xf32>
    %73 = vector.broadcast %72 : vector<16x1xf32> to vector<16x16xf32>
    %74 = arith.subf %70, %73 : vector<16x16xf32>
    %75 = math.exp %74 : vector<16x16xf32>
    %cst_35 = arith.constant dense<0.000000e+00> : vector<16xf32>
    %76 = vector.multi_reduction <add>, %75, %cst_35 [1] : vector<16x16xf32> to vector<16xf32>
    %77 = vector.shape_cast %76 : vector<16xf32> to vector<16x1xf32>
    %78 = tpu.reciprocal %77 {approx = true} : vector<16x1xf32> -> vector<16x1xf32>
    %79 = vector.broadcast %78 : vector<16x1xf32> to vector<16x16xf32>
    %80 = arith.mulf %75, %79 : vector<16x16xf32>
    %cst_36 = arith.constant dense<0.000000e+00> : vector<16x8xf32>
    %81 = tpu.matmul %80, %65, %cst_36 {dimension_numbers = #tpu.dot_dimension_numbers<[1], [0], [0], [1], [0, 0, 1, 1], [], []>} : vector<16x16xf32>, vector<16x8xf32>, vector<16x8xf32> -> vector<16x8xf32>
    %82 = vector.extract_strided_slice %43 {offsets = [0, 16], sizes = [16, 8], strides = [1, 1]} : vector<16x96xf32> to vector<16x8xf32>
    %83 = vector.extract_strided_slice %43 {offsets = [0, 48], sizes = [16, 8], strides = [1, 1]} : vector<16x96xf32> to vector<16x8xf32>
    %84 = vector.extract_strided_slice %43 {offsets = [0, 80], sizes = [16, 8], strides = [1, 1]} : vector<16x96xf32> to vector<16x8xf32>
    %cst_37 = arith.constant dense<0.000000e+00> : vector<16x16xf32>
    %85 = tpu.matmul %82, %83, %cst_37 {dimension_numbers = #tpu.dot_dimension_numbers<[1], [1], [0], [0], [0, 0, 1, 0], [], []>} : vector<16x8xf32>, vector<16x8xf32>, vector<16x16xf32> -> vector<16x16xf32>
    %cst_38 = arith.constant 0.353553385 : f32
    %86 = vector.broadcast %cst_38 : f32 to vector<16x16xf32>
    %87 = arith.mulf %85, %86 : vector<16x16xf32>
    %88 = arith.mulf %87, %1 : vector<16x16xf32>
    %89 = arith.addf %88, %2 : vector<16x16xf32>
    %cst_39 = arith.constant dense<0xFF800000> : vector<16xf32>
    %90 = vector.multi_reduction <maximumf>, %89, %cst_39 [1] : vector<16x16xf32> to vector<16xf32>
    %91 = vector.shape_cast %90 : vector<16xf32> to vector<16x1xf32>
    %92 = vector.broadcast %91 : vector<16x1xf32> to vector<16x16xf32>
    %93 = arith.subf %89, %92 : vector<16x16xf32>
    %94 = math.exp %93 : vector<16x16xf32>
    %cst_40 = arith.constant dense<0.000000e+00> : vector<16xf32>
    %95 = vector.multi_reduction <add>, %94, %cst_40 [1] : vector<16x16xf32> to vector<16xf32>
    %96 = vector.shape_cast %95 : vector<16xf32> to vector<16x1xf32>
    %97 = tpu.reciprocal %96 {approx = true} : vector<16x1xf32> -> vector<16x1xf32>
    %98 = vector.broadcast %97 : vector<16x1xf32> to vector<16x16xf32>
    %99 = arith.mulf %94, %98 : vector<16x16xf32>
    %cst_41 = arith.constant dense<0.000000e+00> : vector<16x8xf32>
    %100 = tpu.matmul %99, %84, %cst_41 {dimension_numbers = #tpu.dot_dimension_numbers<[1], [0], [0], [1], [0, 0, 1, 1], [], []>} : vector<16x16xf32>, vector<16x8xf32>, vector<16x8xf32> -> vector<16x8xf32>
    %101 = vector.extract_strided_slice %43 {offsets = [0, 24], sizes = [16, 8], strides = [1, 1]} : vector<16x96xf32> to vector<16x8xf32>
    %102 = vector.extract_strided_slice %43 {offsets = [0, 56], sizes = [16, 8], strides = [1, 1]} : vector<16x96xf32> to vector<16x8xf32>
    %103 = vector.extract_strided_slice %43 {offsets = [0, 88], sizes = [16, 8], strides = [1, 1]} : vector<16x96xf32> to vector<16x8xf32>
    %cst_42 = arith.constant dense<0.000000e+00> : vector<16x16xf32>
    %104 = tpu.matmul %101, %102, %cst_42 {dimension_numbers = #tpu.dot_dimension_numbers<[1], [1], [0], [0], [0, 0, 1, 0], [], []>} : vector<16x8xf32>, vector<16x8xf32>, vector<16x16xf32> -> vector<16x16xf32>
    %cst_43 = arith.constant 0.353553385 : f32
    %105 = vector.broadcast %cst_43 : f32 to vector<16x16xf32>
    %106 = arith.mulf %104, %105 : vector<16x16xf32>
    %107 = arith.mulf %106, %1 : vector<16x16xf32>
    %108 = arith.addf %107, %2 : vector<16x16xf32>
    %cst_44 = arith.constant dense<0xFF800000> : vector<16xf32>
    %109 = vector.multi_reduction <maximumf>, %108, %cst_44 [1] : vector<16x16xf32> to vector<16xf32>
    %110 = vector.shape_cast %109 : vector<16xf32> to vector<16x1xf32>
    %111 = vector.broadcast %110 : vector<16x1xf32> to vector<16x16xf32>
    %112 = arith.subf %108, %111 : vector<16x16xf32>
    %113 = math.exp %112 : vector<16x16xf32>
    %cst_45 = arith.constant dense<0.000000e+00> : vector<16xf32>
    %114 = vector.multi_reduction <add>, %113, %cst_45 [1] : vector<16x16xf32> to vector<16xf32>
    %115 = vector.shape_cast %114 : vector<16xf32> to vector<16x1xf32>
    %116 = tpu.reciprocal %115 {approx = true} : vector<16x1xf32> -> vector<16x1xf32>
    %117 = vector.broadcast %116 : vector<16x1xf32> to vector<16x16xf32>
    %118 = arith.mulf %113, %117 : vector<16x16xf32>
    %cst_46 = arith.constant dense<0.000000e+00> : vector<16x8xf32>
    %119 = tpu.matmul %118, %103, %cst_46 {dimension_numbers = #tpu.dot_dimension_numbers<[1], [0], [0], [1], [0, 0, 1, 1], [], []>} : vector<16x16xf32>, vector<16x8xf32>, vector<16x8xf32> -> vector<16x8xf32>
    %120 = tpu.concatenate %62, %81, %100, %119 in 1 : vector<16x8xf32>, vector<16x8xf32>, vector<16x8xf32>, vector<16x8xf32> -> vector<16x32xf32>
    %121 = arith.truncf %120 : vector<16x32xf32> to vector<16x32xbf16>
    %c0_47 = arith.constant 0 : index
    %c0_48 = arith.constant 0 : index
    %c0_49 = arith.constant 0 : index
    %122 = vector.load %arg8[%c0_47, %c0_48, %c0_49] : memref<2x32x32xbf16, #tpu.memory_space<vmem>>, vector<1x32x32xbf16>
    %123 = vector.shape_cast %122 : vector<1x32x32xbf16> to vector<32x32xbf16>
    %cst_50 = arith.constant dense<0.000000e+00> : vector<16x32xf32>
    %124 = tpu.matmul %121, %123, %cst_50 {dimension_numbers = #tpu.dot_dimension_numbers<[1], [0], [0], [1], [0, 0, 1, 1], [], []>} : vector<16x32xbf16>, vector<32x32xbf16>, vector<16x32xf32> -> vector<16x32xf32>
    %c0_51 = arith.constant 0 : index
    %c0_52 = arith.constant 0 : index
    %c0_53 = arith.constant 0 : index
    %125 = vector.load %arg9[%c0_51, %c0_52, %c0_53] : memref<2x1x32xf32, #tpu.memory_space<vmem>>, vector<1x1x32xf32>
    %126 = vector.shape_cast %125 : vector<1x1x32xf32> to vector<1x32xf32>
    %127 = vector.broadcast %126 : vector<1x32xf32> to vector<16x32xf32>
    %128 = arith.addf %124, %127 : vector<16x32xf32>
    %129 = arith.addf %4, %128 : vector<16x32xf32>
    %c0_54 = arith.constant 0 : index
    %c0_55 = arith.constant 0 : index
    %c0_56 = arith.constant 0 : index
    %130 = vector.load %arg10[%c0_54, %c0_55, %c0_56] : memref<2x1x32xf32, #tpu.memory_space<vmem>>, vector<1x1x32xf32>
    %131 = vector.shape_cast %130 : vector<1x1x32xf32> to vector<1x32xf32>
    %c0_57 = arith.constant 0 : index
    %c0_58 = arith.constant 0 : index
    %c0_59 = arith.constant 0 : index
    %132 = vector.load %arg11[%c0_57, %c0_58, %c0_59] : memref<2x1x32xf32, #tpu.memory_space<vmem>>, vector<1x1x32xf32>
    %133 = vector.shape_cast %132 : vector<1x1x32xf32> to vector<1x32xf32>
    %cst_60 = arith.constant dense<0.000000e+00> : vector<16xf32>
    %134 = vector.multi_reduction <add>, %129, %cst_60 [1] : vector<16x32xf32> to vector<16xf32>
    %135 = vector.shape_cast %134 : vector<16xf32> to vector<16x1xf32>
    %cst_61 = arith.constant 3.200000e+01 : f32
    %136 = vector.broadcast %cst_61 : f32 to vector<16x1xf32>
    %137 = arith.divf %135, %136 : vector<16x1xf32>
    %138 = vector.broadcast %137 : vector<16x1xf32> to vector<16x32xf32>
    %139 = arith.subf %129, %138 : vector<16x32xf32>
    %140 = vector.broadcast %137 : vector<16x1xf32> to vector<16x32xf32>
    %141 = arith.subf %129, %140 : vector<16x32xf32>
    %142 = arith.mulf %139, %141 : vector<16x32xf32>
    %cst_62 = arith.constant dense<0.000000e+00> : vector<16xf32>
    %143 = vector.multi_reduction <add>, %142, %cst_62 [1] : vector<16x32xf32> to vector<16xf32>
    %144 = vector.shape_cast %143 : vector<16xf32> to vector<16x1xf32>
    %cst_63 = arith.constant 3.200000e+01 : f32
    %145 = vector.broadcast %cst_63 : f32 to vector<16x1xf32>
    %146 = arith.divf %144, %145 : vector<16x1xf32>
    %147 = vector.broadcast %137 : vector<16x1xf32> to vector<16x32xf32>
    %148 = arith.subf %129, %147 : vector<16x32xf32>
    %cst_64 = arith.constant 9.99999974E-6 : f32
    %149 = vector.broadcast %cst_64 : f32 to vector<16x1xf32>
    %150 = arith.addf %146, %149 : vector<16x1xf32>
    %151 = math.rsqrt %150 : vector<16x1xf32>
    %152 = vector.broadcast %151 : vector<16x1xf32> to vector<16x32xf32>
    %153 = arith.mulf %148, %152 : vector<16x32xf32>
    %154 = vector.broadcast %131 : vector<1x32xf32> to vector<16x32xf32>
    %155 = arith.mulf %153, %154 : vector<16x32xf32>
    %156 = vector.broadcast %133 : vector<1x32xf32> to vector<16x32xf32>
    %157 = arith.addf %155, %156 : vector<16x32xf32>
    %158 = arith.truncf %157 : vector<16x32xf32> to vector<16x32xbf16>
    %c0_65 = arith.constant 0 : index
    %c0_66 = arith.constant 0 : index
    %c0_67 = arith.constant 0 : index
    %159 = vector.load %arg12[%c0_65, %c0_66, %c0_67] : memref<2x32x128xbf16, #tpu.memory_space<vmem>>, vector<1x32x128xbf16>
    %160 = vector.shape_cast %159 : vector<1x32x128xbf16> to vector<32x128xbf16>
    %cst_68 = arith.constant dense<0.000000e+00> : vector<16x128xf32>
    %161 = tpu.matmul %158, %160, %cst_68 {dimension_numbers = #tpu.dot_dimension_numbers<[1], [0], [0], [1], [0, 0, 1, 1], [], []>} : vector<16x32xbf16>, vector<32x128xbf16>, vector<16x128xf32> -> vector<16x128xf32>
    %c0_69 = arith.constant 0 : index
    %c0_70 = arith.constant 0 : index
    %c0_71 = arith.constant 0 : index
    %162 = vector.load %arg13[%c0_69, %c0_70, %c0_71] : memref<2x1x128xf32, #tpu.memory_space<vmem>>, vector<1x1x128xf32>
    %163 = vector.shape_cast %162 : vector<1x1x128xf32> to vector<1x128xf32>
    %164 = vector.broadcast %163 : vector<1x128xf32> to vector<16x128xf32>
    %165 = arith.addf %161, %164 : vector<16x128xf32>
    %cst_72 = arith.constant 5.000000e-01 : f32
    %166 = vector.broadcast %cst_72 : f32 to vector<16x128xf32>
    %167 = arith.mulf %166, %165 : vector<16x128xf32>
    %cst_73 = arith.constant 0.797884583 : f32
    %168 = vector.broadcast %cst_73 : f32 to vector<16x128xf32>
    %169 = arith.mulf %168, %165 : vector<16x128xf32>
    %cst_74 = arith.constant 4.471500e-02 : f32
    %170 = vector.broadcast %cst_74 : f32 to vector<16x128xf32>
    %171 = arith.mulf %170, %165 : vector<16x128xf32>
    %172 = arith.mulf %171, %165 : vector<16x128xf32>
    %cst_75 = arith.constant 1.000000e+00 : f32
    %173 = vector.broadcast %cst_75 : f32 to vector<16x128xf32>
    %174 = arith.addf %173, %172 : vector<16x128xf32>
    %175 = arith.mulf %169, %174 : vector<16x128xf32>
    %176 = math.tanh %175 : vector<16x128xf32>
    %cst_76 = arith.constant 1.000000e+00 : f32
    %177 = vector.broadcast %cst_76 : f32 to vector<16x128xf32>
    %178 = arith.addf %177, %176 : vector<16x128xf32>
    %179 = arith.mulf %167, %178 : vector<16x128xf32>
    %180 = arith.truncf %179 : vector<16x128xf32> to vector<16x128xbf16>
    %c0_77 = arith.constant 0 : index
    %c0_78 = arith.constant 0 : index
    %c0_79 = arith.constant 0 : index
    %181 = vector.load %arg14[%c0_77, %c0_78, %c0_79] : memref<2x128x32xbf16, #tpu.memory_space<vmem>>, vector<1x128x32xbf16>
    %182 = vector.shape_cast %181 : vector<1x128x32xbf16> to vector<128x32xbf16>
    %cst_80 = arith.constant dense<0.000000e+00> : vector<16x32xf32>
    %183 = tpu.matmul %180, %182, %cst_80 {dimension_numbers = #tpu.dot_dimension_numbers<[1], [0], [0], [1], [0, 0, 1, 1], [], []>} : vector<16x128xbf16>, vector<128x32xbf16>, vector<16x32xf32> -> vector<16x32xf32>
    %c0_81 = arith.constant 0 : index
    %c0_82 = arith.constant 0 : index
    %c0_83 = arith.constant 0 : index
    %184 = vector.load %arg15[%c0_81, %c0_82, %c0_83] : memref<2x1x32xf32, #tpu.memory_space<vmem>>, vector<1x1x32xf32>
    %185 = vector.shape_cast %184 : vector<1x1x32xf32> to vector<1x32xf32>
    %186 = vector.broadcast %185 : vector<1x32xf32> to vector<16x32xf32>
    %187 = arith.addf %183, %186 : vector<16x32xf32>
    %188 = arith.addf %129, %187 : vector<16x32xf32>
    %189 = arith.addf %188, %0 : vector<16x32xf32>
    %c1 = arith.constant 1 : index
    %c0_84 = arith.constant 0 : index
    %c0_85 = arith.constant 0 : index
    %190 = vector.load %arg19[%c1, %c0_84, %c0_85] : memref<3x16x32xf32, #tpu.memory_space<vmem>>, vector<1x16x32xf32>
    %191 = vector.shape_cast %190 : vector<1x16x32xf32> to vector<16x32xf32>
    %192 = vector.shape_cast %189 : vector<16x32xf32> to vector<1x16x32xf32>
    tpu.vector_store %arg19[%c1, %c0_84, %c0_85], %192 {strides = array<i32>} : memref<3x16x32xf32, #tpu.memory_space<vmem>>, vector<1x16x32xf32>,
    %c1_86 = arith.constant 1 : index
    %c0_87 = arith.constant 0 : index
    %c0_88 = arith.constant 0 : index
    %193 = vector.load %arg4[%c1_86, %c0_87, %c0_88] : memref<2x1x32xf32, #tpu.memory_space<vmem>>, vector<1x1x32xf32>
    %194 = vector.shape_cast %193 : vector<1x1x32xf32> to vector<1x32xf32>
    %c1_89 = arith.constant 1 : index
    %c0_90 = arith.constant 0 : index
    %c0_91 = arith.constant 0 : index
    %195 = vector.load %arg5[%c1_89, %c0_90, %c0_91] : memref<2x1x32xf32, #tpu.memory_space<vmem>>, vector<1x1x32xf32>
    %196 = vector.shape_cast %195 : vector<1x1x32xf32> to vector<1x32xf32>
    %cst_92 = arith.constant dense<0.000000e+00> : vector<16xf32>
    %197 = vector.multi_reduction <add>, %189, %cst_92 [1] : vector<16x32xf32> to vector<16xf32>
    %198 = vector.shape_cast %197 : vector<16xf32> to vector<16x1xf32>
    %cst_93 = arith.constant 3.200000e+01 : f32
    %199 = vector.broadcast %cst_93 : f32 to vector<16x1xf32>
    %200 = arith.divf %198, %199 : vector<16x1xf32>
    %201 = vector.broadcast %200 : vector<16x1xf32> to vector<16x32xf32>
    %202 = arith.subf %189, %201 : vector<16x32xf32>
    %203 = vector.broadcast %200 : vector<16x1xf32> to vector<16x32xf32>
    %204 = arith.subf %189, %203 : vector<16x32xf32>
    %205 = arith.mulf %202, %204 : vector<16x32xf32>
    %cst_94 = arith.constant dense<0.000000e+00> : vector<16xf32>
    %206 = vector.multi_reduction <add>, %205, %cst_94 [1] : vector<16x32xf32> to vector<16xf32>
    %207 = vector.shape_cast %206 : vector<16xf32> to vector<16x1xf32>
    %cst_95 = arith.constant 3.200000e+01 : f32
    %208 = vector.broadcast %cst_95 : f32 to vector<16x1xf32>
    %209 = arith.divf %207, %208 : vector<16x1xf32>
    %210 = vector.broadcast %200 : vector<16x1xf32> to vector<16x32xf32>
    %211 = arith.subf %189, %210 : vector<16x32xf32>
    %cst_96 = arith.constant 9.99999974E-6 : f32
    %212 = vector.broadcast %cst_96 : f32 to vector<16x1xf32>
    %213 = arith.addf %209, %212 : vector<16x1xf32>
    %214 = math.rsqrt %213 : vector<16x1xf32>
    %215 = vector.broadcast %214 : vector<16x1xf32> to vector<16x32xf32>
    %216 = arith.mulf %211, %215 : vector<16x32xf32>
    %217 = vector.broadcast %194 : vector<1x32xf32> to vector<16x32xf32>
    %218 = arith.mulf %216, %217 : vector<16x32xf32>
    %219 = vector.broadcast %196 : vector<1x32xf32> to vector<16x32xf32>
    %220 = arith.addf %218, %219 : vector<16x32xf32>
    %221 = arith.truncf %220 : vector<16x32xf32> to vector<16x32xbf16>
    %c1_97 = arith.constant 1 : index
    %c0_98 = arith.constant 0 : index
    %c0_99 = arith.constant 0 : index
    %222 = vector.load %arg6[%c1_97, %c0_98, %c0_99] : memref<2x32x96xbf16, #tpu.memory_space<vmem>>, vector<1x32x96xbf16>
    %223 = vector.shape_cast %222 : vector<1x32x96xbf16> to vector<32x96xbf16>
    %cst_100 = arith.constant dense<0.000000e+00> : vector<16x96xf32>
    %224 = tpu.matmul %221, %223, %cst_100 {dimension_numbers = #tpu.dot_dimension_numbers<[1], [0], [0], [1], [0, 0, 1, 1], [], []>} : vector<16x32xbf16>, vector<32x96xbf16>, vector<16x96xf32> -> vector<16x96xf32>
    %c1_101 = arith.constant 1 : index
    %c0_102 = arith.constant 0 : index
    %c0_103 = arith.constant 0 : index
    %225 = vector.load %arg7[%c1_101, %c0_102, %c0_103] : memref<2x1x96xf32, #tpu.memory_space<vmem>>, vector<1x1x96xf32>
    %226 = vector.shape_cast %225 : vector<1x1x96xf32> to vector<1x96xf32>
    %227 = vector.broadcast %226 : vector<1x96xf32> to vector<16x96xf32>
    %228 = arith.addf %224, %227 : vector<16x96xf32>
    %229 = vector.extract_strided_slice %228 {offsets = [0, 0], sizes = [16, 8], strides = [1, 1]} : vector<16x96xf32> to vector<16x8xf32>
    %230 = vector.extract_strided_slice %228 {offsets = [0, 32], sizes = [16, 8], strides = [1, 1]} : vector<16x96xf32> to vector<16x8xf32>
    %231 = vector.extract_strided_slice %228 {offsets = [0, 64], sizes = [16, 8], strides = [1, 1]} : vector<16x96xf32> to vector<16x8xf32>
    %cst_104 = arith.constant dense<0.000000e+00> : vector<16x16xf32>
    %232 = tpu.matmul %229, %230, %cst_104 {dimension_numbers = #tpu.dot_dimension_numbers<[1], [1], [0], [0], [0, 0, 1, 0], [], []>} : vector<16x8xf32>, vector<16x8xf32>, vector<16x16xf32> -> vector<16x16xf32>
    %cst_105 = arith.constant 0.353553385 : f32
    %233 = vector.broadcast %cst_105 : f32 to vector<16x16xf32>
    %234 = arith.mulf %232, %233 : vector<16x16xf32>
    %235 = arith.mulf %234, %1 : vector<16x16xf32>
    %236 = arith.addf %235, %2 : vector<16x16xf32>
    %cst_106 = arith.constant dense<0xFF800000> : vector<16xf32>
    %237 = vector.multi_reduction <maximumf>, %236, %cst_106 [1] : vector<16x16xf32> to vector<16xf32>
    %238 = vector.shape_cast %237 : vector<16xf32> to vector<16x1xf32>
    %239 = vector.broadcast %238 : vector<16x1xf32> to vector<16x16xf32>
    %240 = arith.subf %236, %239 : vector<16x16xf32>
    %241 = math.exp %240 : vector<16x16xf32>
    %cst_107 = arith.constant dense<0.000000e+00> : vector<16xf32>
    %242 = vector.multi_reduction <add>, %241, %cst_107 [1] : vector<16x16xf32> to vector<16xf32>
    %243 = vector.shape_cast %242 : vector<16xf32> to vector<16x1xf32>
    %244 = tpu.reciprocal %243 {approx = true} : vector<16x1xf32> -> vector<16x1xf32>
    %245 = vector.broadcast %244 : vector<16x1xf32> to vector<16x16xf32>
    %246 = arith.mulf %241, %245 : vector<16x16xf32>
    %cst_108 = arith.constant dense<0.000000e+00> : vector<16x8xf32>
    %247 = tpu.matmul %246, %231, %cst_108 {dimension_numbers = #tpu.dot_dimension_numbers<[1], [0], [0], [1], [0, 0, 1, 1], [], []>} : vector<16x16xf32>, vector<16x8xf32>, vector<16x8xf32> -> vector<16x8xf32>
    %248 = vector.extract_strided_slice %228 {offsets = [0, 8], sizes = [16, 8], strides = [1, 1]} : vector<16x96xf32> to vector<16x8xf32>
    %249 = vector.extract_strided_slice %228 {offsets = [0, 40], sizes = [16, 8], strides = [1, 1]} : vector<16x96xf32> to vector<16x8xf32>
    %250 = vector.extract_strided_slice %228 {offsets = [0, 72], sizes = [16, 8], strides = [1, 1]} : vector<16x96xf32> to vector<16x8xf32>
    %cst_109 = arith.constant dense<0.000000e+00> : vector<16x16xf32>
    %251 = tpu.matmul %248, %249, %cst_109 {dimension_numbers = #tpu.dot_dimension_numbers<[1], [1], [0], [0], [0, 0, 1, 0], [], []>} : vector<16x8xf32>, vector<16x8xf32>, vector<16x16xf32> -> vector<16x16xf32>
    %cst_110 = arith.constant 0.353553385 : f32
    %252 = vector.broadcast %cst_110 : f32 to vector<16x16xf32>
    %253 = arith.mulf %251, %252 : vector<16x16xf32>
    %254 = arith.mulf %253, %1 : vector<16x16xf32>
    %255 = arith.addf %254, %2 : vector<16x16xf32>
    %cst_111 = arith.constant dense<0xFF800000> : vector<16xf32>
    %256 = vector.multi_reduction <maximumf>, %255, %cst_111 [1] : vector<16x16xf32> to vector<16xf32>
    %257 = vector.shape_cast %256 : vector<16xf32> to vector<16x1xf32>
    %258 = vector.broadcast %257 : vector<16x1xf32> to vector<16x16xf32>
    %259 = arith.subf %255, %258 : vector<16x16xf32>
    %260 = math.exp %259 : vector<16x16xf32>
    %cst_112 = arith.constant dense<0.000000e+00> : vector<16xf32>
    %261 = vector.multi_reduction <add>, %260, %cst_112 [1] : vector<16x16xf32> to vector<16xf32>
    %262 = vector.shape_cast %261 : vector<16xf32> to vector<16x1xf32>
    %263 = tpu.reciprocal %262 {approx = true} : vector<16x1xf32> -> vector<16x1xf32>
    %264 = vector.broadcast %263 : vector<16x1xf32> to vector<16x16xf32>
    %265 = arith.mulf %260, %264 : vector<16x16xf32>
    %cst_113 = arith.constant dense<0.000000e+00> : vector<16x8xf32>
    %266 = tpu.matmul %265, %250, %cst_113 {dimension_numbers = #tpu.dot_dimension_numbers<[1], [0], [0], [1], [0, 0, 1, 1], [], []>} : vector<16x16xf32>, vector<16x8xf32>, vector<16x8xf32> -> vector<16x8xf32>
    %267 = vector.extract_strided_slice %228 {offsets = [0, 16], sizes = [16, 8], strides = [1, 1]} : vector<16x96xf32> to vector<16x8xf32>
    %268 = vector.extract_strided_slice %228 {offsets = [0, 48], sizes = [16, 8], strides = [1, 1]} : vector<16x96xf32> to vector<16x8xf32>
    %269 = vector.extract_strided_slice %228 {offsets = [0, 80], sizes = [16, 8], strides = [1, 1]} : vector<16x96xf32> to vector<16x8xf32>
    %cst_114 = arith.constant dense<0.000000e+00> : vector<16x16xf32>
    %270 = tpu.matmul %267, %268, %cst_114 {dimension_numbers = #tpu.dot_dimension_numbers<[1], [1], [0], [0], [0, 0, 1, 0], [], []>} : vector<16x8xf32>, vector<16x8xf32>, vector<16x16xf32> -> vector<16x16xf32>
    %cst_115 = arith.constant 0.353553385 : f32
    %271 = vector.broadcast %cst_115 : f32 to vector<16x16xf32>
    %272 = arith.mulf %270, %271 : vector<16x16xf32>
    %273 = arith.mulf %272, %1 : vector<16x16xf32>
    %274 = arith.addf %273, %2 : vector<16x16xf32>
    %cst_116 = arith.constant dense<0xFF800000> : vector<16xf32>
    %275 = vector.multi_reduction <maximumf>, %274, %cst_116 [1] : vector<16x16xf32> to vector<16xf32>
    %276 = vector.shape_cast %275 : vector<16xf32> to vector<16x1xf32>
    %277 = vector.broadcast %276 : vector<16x1xf32> to vector<16x16xf32>
    %278 = arith.subf %274, %277 : vector<16x16xf32>
    %279 = math.exp %278 : vector<16x16xf32>
    %cst_117 = arith.constant dense<0.000000e+00> : vector<16xf32>
    %280 = vector.multi_reduction <add>, %279, %cst_117 [1] : vector<16x16xf32> to vector<16xf32>
    %281 = vector.shape_cast %280 : vector<16xf32> to vector<16x1xf32>
    %282 = tpu.reciprocal %281 {approx = true} : vector<16x1xf32> -> vector<16x1xf32>
    %283 = vector.broadcast %282 : vector<16x1xf32> to vector<16x16xf32>
    %284 = arith.mulf %279, %283 : vector<16x16xf32>
    %cst_118 = arith.constant dense<0.000000e+00> : vector<16x8xf32>
    %285 = tpu.matmul %284, %269, %cst_118 {dimension_numbers = #tpu.dot_dimension_numbers<[1], [0], [0], [1], [0, 0, 1, 1], [], []>} : vector<16x16xf32>, vector<16x8xf32>, vector<16x8xf32> -> vector<16x8xf32>
    %286 = vector.extract_strided_slice %228 {offsets = [0, 24], sizes = [16, 8], strides = [1, 1]} : vector<16x96xf32> to vector<16x8xf32>
    %287 = vector.extract_strided_slice %228 {offsets = [0, 56], sizes = [16, 8], strides = [1, 1]} : vector<16x96xf32> to vector<16x8xf32>
    %288 = vector.extract_strided_slice %228 {offsets = [0, 88], sizes = [16, 8], strides = [1, 1]} : vector<16x96xf32> to vector<16x8xf32>
    %cst_119 = arith.constant dense<0.000000e+00> : vector<16x16xf32>
    %289 = tpu.matmul %286, %287, %cst_119 {dimension_numbers = #tpu.dot_dimension_numbers<[1], [1], [0], [0], [0, 0, 1, 0], [], []>} : vector<16x8xf32>, vector<16x8xf32>, vector<16x16xf32> -> vector<16x16xf32>
    %cst_120 = arith.constant 0.353553385 : f32
    %290 = vector.broadcast %cst_120 : f32 to vector<16x16xf32>
    %291 = arith.mulf %289, %290 : vector<16x16xf32>
    %292 = arith.mulf %291, %1 : vector<16x16xf32>
    %293 = arith.addf %292, %2 : vector<16x16xf32>
    %cst_121 = arith.constant dense<0xFF800000> : vector<16xf32>
    %294 = vector.multi_reduction <maximumf>, %293, %cst_121 [1] : vector<16x16xf32> to vector<16xf32>
    %295 = vector.shape_cast %294 : vector<16xf32> to vector<16x1xf32>
    %296 = vector.broadcast %295 : vector<16x1xf32> to vector<16x16xf32>
    %297 = arith.subf %293, %296 : vector<16x16xf32>
    %298 = math.exp %297 : vector<16x16xf32>
    %cst_122 = arith.constant dense<0.000000e+00> : vector<16xf32>
    %299 = vector.multi_reduction <add>, %298, %cst_122 [1] : vector<16x16xf32> to vector<16xf32>
    %300 = vector.shape_cast %299 : vector<16xf32> to vector<16x1xf32>
    %301 = tpu.reciprocal %300 {approx = true} : vector<16x1xf32> -> vector<16x1xf32>
    %302 = vector.broadcast %301 : vector<16x1xf32> to vector<16x16xf32>
    %303 = arith.mulf %298, %302 : vector<16x16xf32>
    %cst_123 = arith.constant dense<0.000000e+00> : vector<16x8xf32>
    %304 = tpu.matmul %303, %288, %cst_123 {dimension_numbers = #tpu.dot_dimension_numbers<[1], [0], [0], [1], [0, 0, 1, 1], [], []>} : vector<16x16xf32>, vector<16x8xf32>, vector<16x8xf32> -> vector<16x8xf32>
    %305 = tpu.concatenate %247, %266, %285, %304 in 1 : vector<16x8xf32>, vector<16x8xf32>, vector<16x8xf32>, vector<16x8xf32> -> vector<16x32xf32>
    %306 = arith.truncf %305 : vector<16x32xf32> to vector<16x32xbf16>
    %c1_124 = arith.constant 1 : index
    %c0_125 = arith.constant 0 : index
    %c0_126 = arith.constant 0 : index
    %307 = vector.load %arg8[%c1_124, %c0_125, %c0_126] : memref<2x32x32xbf16, #tpu.memory_space<vmem>>, vector<1x32x32xbf16>
    %308 = vector.shape_cast %307 : vector<1x32x32xbf16> to vector<32x32xbf16>
    %cst_127 = arith.constant dense<0.000000e+00> : vector<16x32xf32>
    %309 = tpu.matmul %306, %308, %cst_127 {dimension_numbers = #tpu.dot_dimension_numbers<[1], [0], [0], [1], [0, 0, 1, 1], [], []>} : vector<16x32xbf16>, vector<32x32xbf16>, vector<16x32xf32> -> vector<16x32xf32>
    %c1_128 = arith.constant 1 : index
    %c0_129 = arith.constant 0 : index
    %c0_130 = arith.constant 0 : index
    %310 = vector.load %arg9[%c1_128, %c0_129, %c0_130] : memref<2x1x32xf32, #tpu.memory_space<vmem>>, vector<1x1x32xf32>
    %311 = vector.shape_cast %310 : vector<1x1x32xf32> to vector<1x32xf32>
    %312 = vector.broadcast %311 : vector<1x32xf32> to vector<16x32xf32>
    %313 = arith.addf %309, %312 : vector<16x32xf32>
    %314 = arith.addf %189, %313 : vector<16x32xf32>
    %c1_131 = arith.constant 1 : index
    %c0_132 = arith.constant 0 : index
    %c0_133 = arith.constant 0 : index
    %315 = vector.load %arg10[%c1_131, %c0_132, %c0_133] : memref<2x1x32xf32, #tpu.memory_space<vmem>>, vector<1x1x32xf32>
    %316 = vector.shape_cast %315 : vector<1x1x32xf32> to vector<1x32xf32>
    %c1_134 = arith.constant 1 : index
    %c0_135 = arith.constant 0 : index
    %c0_136 = arith.constant 0 : index
    %317 = vector.load %arg11[%c1_134, %c0_135, %c0_136] : memref<2x1x32xf32, #tpu.memory_space<vmem>>, vector<1x1x32xf32>
    %318 = vector.shape_cast %317 : vector<1x1x32xf32> to vector<1x32xf32>
    %cst_137 = arith.constant dense<0.000000e+00> : vector<16xf32>
    %319 = vector.multi_reduction <add>, %314, %cst_137 [1] : vector<16x32xf32> to vector<16xf32>
    %320 = vector.shape_cast %319 : vector<16xf32> to vector<16x1xf32>
    %cst_138 = arith.constant 3.200000e+01 : f32
    %321 = vector.broadcast %cst_138 : f32 to vector<16x1xf32>
    %322 = arith.divf %320, %321 : vector<16x1xf32>
    %323 = vector.broadcast %322 : vector<16x1xf32> to vector<16x32xf32>
    %324 = arith.subf %314, %323 : vector<16x32xf32>
    %325 = vector.broadcast %322 : vector<16x1xf32> to vector<16x32xf32>
    %326 = arith.subf %314, %325 : vector<16x32xf32>
    %327 = arith.mulf %324, %326 : vector<16x32xf32>
    %cst_139 = arith.constant dense<0.000000e+00> : vector<16xf32>
    %328 = vector.multi_reduction <add>, %327, %cst_139 [1] : vector<16x32xf32> to vector<16xf32>
    %329 = vector.shape_cast %328 : vector<16xf32> to vector<16x1xf32>
    %cst_140 = arith.constant 3.200000e+01 : f32
    %330 = vector.broadcast %cst_140 : f32 to vector<16x1xf32>
    %331 = arith.divf %329, %330 : vector<16x1xf32>
    %332 = vector.broadcast %322 : vector<16x1xf32> to vector<16x32xf32>
    %333 = arith.subf %314, %332 : vector<16x32xf32>
    %cst_141 = arith.constant 9.99999974E-6 : f32
    %334 = vector.broadcast %cst_141 : f32 to vector<16x1xf32>
    %335 = arith.addf %331, %334 : vector<16x1xf32>
    %336 = math.rsqrt %335 : vector<16x1xf32>
    %337 = vector.broadcast %336 : vector<16x1xf32> to vector<16x32xf32>
    %338 = arith.mulf %333, %337 : vector<16x32xf32>
    %339 = vector.broadcast %316 : vector<1x32xf32> to vector<16x32xf32>
    %340 = arith.mulf %338, %339 : vector<16x32xf32>
    %341 = vector.broadcast %318 : vector<1x32xf32> to vector<16x32xf32>
    %342 = arith.addf %340, %341 : vector<16x32xf32>
    %343 = arith.truncf %342 : vector<16x32xf32> to vector<16x32xbf16>
    %c1_142 = arith.constant 1 : index
    %c0_143 = arith.constant 0 : index
    %c0_144 = arith.constant 0 : index
    %344 = vector.load %arg12[%c1_142, %c0_143, %c0_144] : memref<2x32x128xbf16, #tpu.memory_space<vmem>>, vector<1x32x128xbf16>
    %345 = vector.shape_cast %344 : vector<1x32x128xbf16> to vector<32x128xbf16>
    %cst_145 = arith.constant dense<0.000000e+00> : vector<16x128xf32>
    %346 = tpu.matmul %343, %345, %cst_145 {dimension_numbers = #tpu.dot_dimension_numbers<[1], [0], [0], [1], [0, 0, 1, 1], [], []>} : vector<16x32xbf16>, vector<32x128xbf16>, vector<16x128xf32> -> vector<16x128xf32>
    %c1_146 = arith.constant 1 : index
    %c0_147 = arith.constant 0 : index
    %c0_148 = arith.constant 0 : index
    %347 = vector.load %arg13[%c1_146, %c0_147, %c0_148] : memref<2x1x128xf32, #tpu.memory_space<vmem>>, vector<1x1x128xf32>
    %348 = vector.shape_cast %347 : vector<1x1x128xf32> to vector<1x128xf32>
    %349 = vector.broadcast %348 : vector<1x128xf32> to vector<16x128xf32>
    %350 = arith.addf %346, %349 : vector<16x128xf32>
    %cst_149 = arith.constant 5.000000e-01 : f32
    %351 = vector.broadcast %cst_149 : f32 to vector<16x128xf32>
    %352 = arith.mulf %351, %350 : vector<16x128xf32>
    %cst_150 = arith.constant 0.797884583 : f32
    %353 = vector.broadcast %cst_150 : f32 to vector<16x128xf32>
    %354 = arith.mulf %353, %350 : vector<16x128xf32>
    %cst_151 = arith.constant 4.471500e-02 : f32
    %355 = vector.broadcast %cst_151 : f32 to vector<16x128xf32>
    %356 = arith.mulf %355, %350 : vector<16x128xf32>
    %357 = arith.mulf %356, %350 : vector<16x128xf32>
    %cst_152 = arith.constant 1.000000e+00 : f32
    %358 = vector.broadcast %cst_152 : f32 to vector<16x128xf32>
    %359 = arith.addf %358, %357 : vector<16x128xf32>
    %360 = arith.mulf %354, %359 : vector<16x128xf32>
    %361 = math.tanh %360 : vector<16x128xf32>
    %cst_153 = arith.constant 1.000000e+00 : f32
    %362 = vector.broadcast %cst_153 : f32 to vector<16x128xf32>
    %363 = arith.addf %362, %361 : vector<16x128xf32>
    %364 = arith.mulf %352, %363 : vector<16x128xf32>
    %365 = arith.truncf %364 : vector<16x128xf32> to vector<16x128xbf16>
    %c1_154 = arith.constant 1 : index
    %c0_155 = arith.constant 0 : index
    %c0_156 = arith.constant 0 : index
    %366 = vector.load %arg14[%c1_154, %c0_155, %c0_156] : memref<2x128x32xbf16, #tpu.memory_space<vmem>>, vector<1x128x32xbf16>
    %367 = vector.shape_cast %366 : vector<1x128x32xbf16> to vector<128x32xbf16>
    %cst_157 = arith.constant dense<0.000000e+00> : vector<16x32xf32>
    %368 = tpu.matmul %365, %367, %cst_157 {dimension_numbers = #tpu.dot_dimension_numbers<[1], [0], [0], [1], [0, 0, 1, 1], [], []>} : vector<16x128xbf16>, vector<128x32xbf16>, vector<16x32xf32> -> vector<16x32xf32>
    %c1_158 = arith.constant 1 : index
    %c0_159 = arith.constant 0 : index
    %c0_160 = arith.constant 0 : index
    %369 = vector.load %arg15[%c1_158, %c0_159, %c0_160] : memref<2x1x32xf32, #tpu.memory_space<vmem>>, vector<1x1x32xf32>
    %370 = vector.shape_cast %369 : vector<1x1x32xf32> to vector<1x32xf32>
    %371 = vector.broadcast %370 : vector<1x32xf32> to vector<16x32xf32>
    %372 = arith.addf %368, %371 : vector<16x32xf32>
    %373 = arith.addf %314, %372 : vector<16x32xf32>
    %374 = arith.addf %373, %0 : vector<16x32xf32>
    %c2 = arith.constant 2 : index
    %c0_161 = arith.constant 0 : index
    %c0_162 = arith.constant 0 : index
    %375 = vector.load %arg19[%c2, %c0_161, %c0_162] : memref<3x16x32xf32, #tpu.memory_space<vmem>>, vector<1x16x32xf32>
    %376 = vector.shape_cast %375 : vector<1x16x32xf32> to vector<16x32xf32>
    %377 = vector.shape_cast %374 : vector<16x32xf32> to vector<1x16x32xf32>
    tpu.vector_store %arg19[%c2, %c0_161, %c0_162], %377 {strides = array<i32>} : memref<3x16x32xf32, #tpu.memory_space<vmem>>, vector<1x16x32xf32>,
    %c0_163 = arith.constant 0 : index
    %c0_164 = arith.constant 0 : index
    %378 = vector.load %arg16[%c0_163, %c0_164] : memref<1x32xf32, #tpu.memory_space<vmem>>, vector<1x32xf32>
    %c0_165 = arith.constant 0 : index
    %c0_166 = arith.constant 0 : index
    %379 = vector.load %arg17[%c0_165, %c0_166] : memref<1x32xf32, #tpu.memory_space<vmem>>, vector<1x32xf32>
    %cst_167 = arith.constant dense<0.000000e+00> : vector<16xf32>
    %380 = vector.multi_reduction <add>, %374, %cst_167 [1] : vector<16x32xf32> to vector<16xf32>
    %381 = vector.shape_cast %380 : vector<16xf32> to vector<16x1xf32>
    %cst_168 = arith.constant 3.200000e+01 : f32
    %382 = vector.broadcast %cst_168 : f32 to vector<16x1xf32>
    %383 = arith.divf %381, %382 : vector<16x1xf32>
    %384 = vector.broadcast %383 : vector<16x1xf32> to vector<16x32xf32>
    %385 = arith.subf %374, %384 : vector<16x32xf32>
    %386 = vector.broadcast %383 : vector<16x1xf32> to vector<16x32xf32>
    %387 = arith.subf %374, %386 : vector<16x32xf32>
    %388 = arith.mulf %385, %387 : vector<16x32xf32>
    %cst_169 = arith.constant dense<0.000000e+00> : vector<16xf32>
    %389 = vector.multi_reduction <add>, %388, %cst_169 [1] : vector<16x32xf32> to vector<16xf32>
    %390 = vector.shape_cast %389 : vector<16xf32> to vector<16x1xf32>
    %cst_170 = arith.constant 3.200000e+01 : f32
    %391 = vector.broadcast %cst_170 : f32 to vector<16x1xf32>
    %392 = arith.divf %390, %391 : vector<16x1xf32>
    %393 = vector.broadcast %383 : vector<16x1xf32> to vector<16x32xf32>
    %394 = arith.subf %374, %393 : vector<16x32xf32>
    %cst_171 = arith.constant 9.99999974E-6 : f32
    %395 = vector.broadcast %cst_171 : f32 to vector<16x1xf32>
    %396 = arith.addf %392, %395 : vector<16x1xf32>
    %397 = math.rsqrt %396 : vector<16x1xf32>
    %398 = vector.broadcast %397 : vector<16x1xf32> to vector<16x32xf32>
    %399 = arith.mulf %394, %398 : vector<16x32xf32>
    %400 = vector.broadcast %378 : vector<1x32xf32> to vector<16x32xf32>
    %401 = arith.mulf %399, %400 : vector<16x32xf32>
    %402 = vector.broadcast %379 : vector<1x32xf32> to vector<16x32xf32>
    %403 = arith.addf %401, %402 : vector<16x32xf32>
    %c0_172 = arith.constant 0 : index
    %c0_173 = arith.constant 0 : index
    %404 = vector.load %arg18[%c0_172, %c0_173] : memref<16x32xf32, #tpu.memory_space<vmem>>, vector<16x32xf32>
    tpu.vector_store %arg18[%c0_172, %c0_173], %403 {strides = array<i32>} : memref<16x32xf32, #tpu.memory_space<vmem>>, vector<16x32xf32>,
    return
  }
}

</mosaic_0001>

<llo_original>
// kernel: gpt2_transformer_for_latent.1
$region0: #{gpt2_transformer_for_latent.1}
  #allocation0 [shape = 'u32[]', space=smem, size = 0x4, offset = 0x4, fixed_abs, tag = 'smem constant byte address 0x4 - core index']
  #allocation1 [shape = 'u32[144,128]{1,0:T(1,128)}', space=vmem, size = 0x12000, scoped, tag = 'internal scratch']
  %s0 = inlined_call_operand.vmem [shape: f32[16,32], index: 0, kind: input, shape index: {}]
  %s1 = inlined_call_operand.vmem [shape: f32[16,32], index: 1, kind: input, shape index: {}]
  %s2 = inlined_call_operand.vmem [shape: f32[16,16], index: 2, kind: input, shape index: {}]
  %s3 = inlined_call_operand.vmem [shape: f32[16,16], index: 3, kind: input, shape index: {}]
  %s4 = inlined_call_operand.vmem [shape: f32[2,1,32], index: 4, kind: input, shape index: {}]
  %s5 = inlined_call_operand.vmem [shape: f32[2,1,32], index: 5, kind: input, shape index: {}]
  %s6 = inlined_call_operand.vmem [shape: bf16[2,32,96], index: 6, kind: input, shape index: {}]
  %s7 = inlined_call_operand.vmem [shape: f32[2,1,96], index: 7, kind: input, shape index: {}]
  %s8 = inlined_call_operand.vmem [shape: bf16[2,32,32], index: 8, kind: input, shape index: {}]
  %s9 = inlined_call_operand.vmem [shape: f32[2,1,32], index: 9, kind: input, shape index: {}]
  %s10 = inlined_call_operand.vmem [shape: f32[2,1,32], index: 10, kind: input, shape index: {}]
  %s11 = inlined_call_operand.vmem [shape: f32[2,1,32], index: 11, kind: input, shape index: {}]
  %s12 = inlined_call_operand.vmem [shape: bf16[2,32,128], index: 12, kind: input, shape index: {}]
  %s13 = inlined_call_operand.vmem [shape: f32[2,1,128], index: 13, kind: input, shape index: {}]
  %s14 = inlined_call_operand.vmem [shape: bf16[2,128,32], index: 14, kind: input, shape index: {}]
  %s15 = inlined_call_operand.vmem [shape: f32[2,1,32], index: 15, kind: input, shape index: {}]
  %s16 = inlined_call_operand.vmem [shape: f32[1,32], index: 16, kind: input, shape index: {}]
  %s17 = inlined_call_operand.vmem [shape: f32[1,32], index: 17, kind: input, shape index: {}]
  %s18 = inlined_call_operand.hbm [shape: f32[16,32], index: 18, kind: output, shape index: {0}]
  %s19 = inlined_call_operand.vmem [shape: f32[3,16,32], index: 19, kind: output, shape index: {1}]
  %20 = xla_tuple %s18, %s19
  %s21 = sld [smem:[#allocation0]]
  $region90: #{gpt2_transformer_for_latent.1} parent=0
    _
  %s23 = ssub.s32 1, %s21
  %s24 = scalar_select 0, %s23, %s21
  $region1: #{gpt2_transformer_for_latent.1} parent=0
    #allocation2 [shape = 'u8[8192]{0}', space=vmem, size = 0x2000, scoped, tag = 'output window, operand 0, single buffered']
    #allocation3 [shape = 's32[1]{0}', space=sflag, size = 0x4, scoped, tag = 'scoped memory for gpt2_transformer_for_latent.1']
    %25 = vsyncpa [#allocation3], 0
    // Predicated region
    $region2: #{gpt2_transformer_for_latent.1} parent=1 // pred_check
      _
    $region3: #{gpt2_transformer_for_latent.1} parent=1 // pred_check_branch
      %27 = sbr.rel (0) target = $region5
    $region4: #{gpt2_transformer_for_latent.1} parent=1 // pred_region
      _
    $region5: #{gpt2_transformer_for_latent.1} parent=1 // pred_fallthru
      _
    // Predicated region
    $region6: #{gpt2_transformer_for_latent.1} parent=1 // pred_check
      _
    $region7: #{gpt2_transformer_for_latent.1} parent=1 // pred_check_branch
      %29 = sbr.rel (0) target = $region9
    $region8: #{gpt2_transformer_for_latent.1} parent=1 // pred_region
      _
    $region9: #{gpt2_transformer_for_latent.1} parent=1 // pred_fallthru
      _
    // Predicated region
    $region10: #{gpt2_transformer_for_latent.1} parent=1 // pred_check
      _
    $region11: #{gpt2_transformer_for_latent.1} parent=1 // pred_check_branch
      %31 = sbr.rel (0) target = $region13
    $region12: #{gpt2_transformer_for_latent.1} parent=1 // pred_region
      _
    $region13: #{gpt2_transformer_for_latent.1} parent=1 // pred_fallthru
      _
    // Predicated region
    $region14: #{gpt2_transformer_for_latent.1} parent=1 // pred_check
      _
    $region15: #{gpt2_transformer_for_latent.1} parent=1 // pred_check_branch
      %33 = sbr.rel (0) target = $region17
    $region16: #{gpt2_transformer_for_latent.1} parent=1 // pred_region
      _
    $region17: #{gpt2_transformer_for_latent.1} parent=1 // pred_fallthru
      _
    // Predicated region
    $region18: #{gpt2_transformer_for_latent.1} parent=1 // pred_check
      _
    $region19: #{gpt2_transformer_for_latent.1} parent=1 // pred_check_branch
      %35 = sbr.rel (0) target = $region21
    $region20: #{gpt2_transformer_for_latent.1} parent=1 // pred_region
      _
    $region21: #{gpt2_transformer_for_latent.1} parent=1 // pred_fallthru
      _
    // Predicated region
    $region22: #{gpt2_transformer_for_latent.1} parent=1 // pred_check
      _
    $region23: #{gpt2_transformer_for_latent.1} parent=1 // pred_check_branch
      %37 = sbr.rel (0) target = $region25
    $region24: #{gpt2_transformer_for_latent.1} parent=1 // pred_region
      _
    $region25: #{gpt2_transformer_for_latent.1} parent=1 // pred_fallthru
      _
    // Predicated region
    $region26: #{gpt2_transformer_for_latent.1} parent=1 // pred_check
      _
    $region27: #{gpt2_transformer_for_latent.1} parent=1 // pred_check_branch
      %39 = sbr.rel (0) target = $region29
    $region28: #{gpt2_transformer_for_latent.1} parent=1 // pred_region
      _
    $region29: #{gpt2_transformer_for_latent.1} parent=1 // pred_fallthru
      _
    // Predicated region
    $region30: #{gpt2_transformer_for_latent.1} parent=1 // pred_check
      _
    $region31: #{gpt2_transformer_for_latent.1} parent=1 // pred_check_branch
      %41 = sbr.rel (0) target = $region33
    $region32: #{gpt2_transformer_for_latent.1} parent=1 // pred_region
      _
    $region33: #{gpt2_transformer_for_latent.1} parent=1 // pred_fallthru
      _
    // Predicated region
    $region34: #{gpt2_transformer_for_latent.1} parent=1 // pred_check
      _
    $region35: #{gpt2_transformer_for_latent.1} parent=1 // pred_check_branch
      %43 = sbr.rel (0) target = $region37
    $region36: #{gpt2_transformer_for_latent.1} parent=1 // pred_region
      _
    $region37: #{gpt2_transformer_for_latent.1} parent=1 // pred_fallthru
      _
    // Predicated region
    $region38: #{gpt2_transformer_for_latent.1} parent=1 // pred_check
      _
    $region39: #{gpt2_transformer_for_latent.1} parent=1 // pred_check_branch
      %45 = sbr.rel (0) target = $region41
    $region40: #{gpt2_transformer_for_latent.1} parent=1 // pred_region
      _
    $region41: #{gpt2_transformer_for_latent.1} parent=1 // pred_fallthru
      _
    // Predicated region
    $region42: #{gpt2_transformer_for_latent.1} parent=1 // pred_check
      _
    $region43: #{gpt2_transformer_for_latent.1} parent=1 // pred_check_branch
      %47 = sbr.rel (0) target = $region45
    $region44: #{gpt2_transformer_for_latent.1} parent=1 // pred_region
      _
    $region45: #{gpt2_transformer_for_latent.1} parent=1 // pred_fallthru
      _
    // Predicated region
    $region46: #{gpt2_transformer_for_latent.1} parent=1 // pred_check
      _
    $region47: #{gpt2_transformer_for_latent.1} parent=1 // pred_check_branch
      %49 = sbr.rel (0) target = $region49
    $region48: #{gpt2_transformer_for_latent.1} parent=1 // pred_region
      _
    $region49: #{gpt2_transformer_for_latent.1} parent=1 // pred_fallthru
      _
    // Predicated region
    $region50: #{gpt2_transformer_for_latent.1} parent=1 // pred_check
      _
    $region51: #{gpt2_transformer_for_latent.1} parent=1 // pred_check_branch
      %51 = sbr.rel (0) target = $region53
    $region52: #{gpt2_transformer_for_latent.1} parent=1 // pred_region
      _
    $region53: #{gpt2_transformer_for_latent.1} parent=1 // pred_fallthru
      _
    // Predicated region
    $region54: #{gpt2_transformer_for_latent.1} parent=1 // pred_check
      _
    $region55: #{gpt2_transformer_for_latent.1} parent=1 // pred_check_branch
      %53 = sbr.rel (0) target = $region57
    $region56: #{gpt2_transformer_for_latent.1} parent=1 // pred_region
      _
    $region57: #{gpt2_transformer_for_latent.1} parent=1 // pred_fallthru
      _
    // Predicated region
    $region58: #{gpt2_transformer_for_latent.1} parent=1 // pred_check
      _
    $region59: #{gpt2_transformer_for_latent.1} parent=1 // pred_check_branch
      %55 = sbr.rel (0) target = $region61
    $region60: #{gpt2_transformer_for_latent.1} parent=1 // pred_region
      _
    $region61: #{gpt2_transformer_for_latent.1} parent=1 // pred_fallthru
      _
    // Predicated region
    $region62: #{gpt2_transformer_for_latent.1} parent=1 // pred_check
      _
    $region63: #{gpt2_transformer_for_latent.1} parent=1 // pred_check_branch
      %57 = sbr.rel (0) target = $region65
    $region64: #{gpt2_transformer_for_latent.1} parent=1 // pred_region
      _
    $region65: #{gpt2_transformer_for_latent.1} parent=1 // pred_fallthru
      _
    // Predicated region
    $region66: #{gpt2_transformer_for_latent.1} parent=1 // pred_check
      _
    $region67: #{gpt2_transformer_for_latent.1} parent=1 // pred_check_branch
      %59 = sbr.rel (0) target = $region69
    $region68: #{gpt2_transformer_for_latent.1} parent=1 // pred_region
      _
    $region69: #{gpt2_transformer_for_latent.1} parent=1 // pred_fallthru
      _
    // Predicated region
    $region70: #{gpt2_transformer_for_latent.1} parent=1 // pred_check
      _
    $region71: #{gpt2_transformer_for_latent.1} parent=1 // pred_check_branch
      %61 = sbr.rel (0) target = $region73
    $region72: #{gpt2_transformer_for_latent.1} parent=1 // pred_region
      _
    $region73: #{gpt2_transformer_for_latent.1} parent=1 // pred_fallthru
      _
    %v63 = vld [vmem:[%s1] sm:$0xff]
    %v64 = vld [vmem:[%s1 + $0x8] sm:$0xff]
    %v65 = vld [vmem:[%s2] sm:$0xff]
    %v66 = vld [vmem:[%s2 + $0x8] sm:$0xff]
    %v67 = vld [vmem:[%s3] sm:$0xff]
    %v68 = vld [vmem:[%s3 + $0x8] sm:$0xff]
    %v69 = vld [vmem:[%s0] sm:$0xff]
    %v70 = vld [vmem:[%s0 + $0x8] sm:$0xff]
    %v71 = vadd.f32 %v69, %v63
    %v72 = vadd.f32 %v70, %v64
    %vm73 = vcmask 261120
    %74 = vst.msk [vmem:[%s19] sm:$0xff] %vm73, %v71
    %75 = vst.msk [vmem:[%s19 + $0x8] sm:$0xff] %vm73, %v72
    %v76 = vld [vmem:[%s4] sm:$0x1]
    %v77 = vld [vmem:[%s5] sm:$0x1]
    %v78 = vsel %vm73, %v71, 0.0
    %79 = vadd.xlane.f32.xlu0 %v78
    %v80 = vpop.xlane.xlu0 %79
    %v81 = vsel %vm73, %v72, 0.0
    %82 = vadd.xlane.f32.xlu0 %v81
    %v83 = vpop.xlane.xlu0 %82
    %v84 = vrcp.pop 32.0
    %v85 = vmul.f32 %v80, %v84
    %v86 = vmul.f32 %v83, %v84
    %v87 = vsub.f32 %v71, %v85
    %v88 = vsub.f32 %v72, %v86
    %v89 = vmul.f32 %v87, %v87
    %v90 = vmul.f32 %v88, %v88
    %v91 = vsel %vm73, %v89, 0.0
    %92 = vadd.xlane.f32.xlu0 %v91
    %v93 = vpop.xlane.xlu0 %92
    %v94 = vsel %vm73, %v90, 0.0
    %95 = vadd.xlane.f32.xlu0 %v94
    %v96 = vpop.xlane.xlu0 %95
    %v97 = vmul.f32 %v93, %v84
    %v98 = vmul.f32 %v96, %v84
    %v99 = vadd.f32 %v97, 1e-05
    %v100 = vadd.f32 %v98, 1e-05
    %v101 = vrsqrt.pop %v99
    %v102 = vrsqrt.pop %v100
    %v103 = vmul.f32 %v87, %v101
    %v104 = vmul.f32 %v88, %v102
    %v106 = vlaneseq
    %v107 = vshrl.u32 %v106, 7
    %v108 = vsub.s32 0, %v107
    %v109 = vrot.slane %v76, %v108
    %v111 = vmul.f32 %v103, %v109
    %v112 = vmul.f32 %v104, %v109
    %v114 = vlaneseq
    %v115 = vshrl.u32 %v114, 7
    %v116 = vsub.s32 0, %v115
    %v117 = vrot.slane %v77, %v116
    %v119 = vadd.f32 %v111, %v117
    %v120 = vadd.f32 %v112, %v117
    %v121 = vpack.c.bf16 %v120, %v119
    %v122 = vld [vmem:[%s6] sm:$0xf]
    %v123 = vld [vmem:[%s6 + $0x4] sm:$0xf]
    %v124 = vld [vmem:[%s6 + $0x8] sm:$0xf]
    %v125 = vld [vmem:[%s6 + $0xc] sm:$0xf]
    %v126 = vld [vmem:[%s7] sm:$0x1]
    %v128 = vlaneseq
    %v129 = vshrl.u32 %v128, 7
    %v130 = vsub.s32 0, %v129
    %v131 = vrot.slane %v126, %v130
    %v137 = vunpack.c.l.b16 %v122
    %v138 = vunpack.c.l.b16 %v123
    %v139 = vunpack.c.l.b16 %v124
    %v140 = vunpack.c.l.b16 %v125
    %v141 = vpack.c.b16 %v138, %v137
    %v142 = vpack.c.b16 %v140, %v139
    %v146 = vsel %vm73, %v121, 0
    %148 = vmatprep.subr.bf16.mxu0 0
    %149 = vmatpush1.bf16.msra.mxu0 %v141
    %150 = vmatprep.subr.bf16.mxu0 0
    %151 = vmatpush1.bf16.msra.mxu0 %v142
    %152 = vmatprep.subr.bf16.mxu0 0
    %153 = vmatpush1.bf16.msra.mxu0 0
    %154 = vmatprep.subr.bf16.mxu0 0
    %155 = vmatpush1.bf16.msra.mxu0 0
    %156 = vmatprep.subr.bf16.mxu0 0
    %157 = vmatpush1.bf16.msra.mxu0 0
    %158 = vmatprep.subr.bf16.mxu0 0
    %159 = vmatpush1.bf16.msra.mxu0 0
    %160 = vmatprep.subr.bf16.mxu0 0
    %161 = vmatpush1.bf16.msra.mxu0 0
    %162 = vmatprep.subr.bf16.mxu0 0
    %163 = vmatpush1.bf16.msra.mxu0 0
    %164 = vmatprep.subr.bf16.mxu0 0
    %165 = vmatpush1.bf16.msra.mxu0 0
    %166 = vmatprep.subr.bf16.mxu0 0
    %167 = vmatpush1.bf16.msra.mxu0 0
    %168 = vmatprep.subr.bf16.mxu0 0
    %169 = vmatpush1.bf16.msra.mxu0 0
    %170 = vmatprep.subr.bf16.mxu0 0
    %171 = vmatpush1.bf16.msra.mxu0 0
    %172 = vmatprep.subr.bf16.mxu0 0
    %173 = vmatpush1.bf16.msra.mxu0 0
    %174 = vmatprep.subr.bf16.mxu0 0
    %175 = vmatpush1.bf16.msra.mxu0 0
    %176 = vmatprep.subr.bf16.mxu0 0
    %177 = vmatpush1.bf16.msra.mxu0 0
    %178 = vmatprep.subr.bf16.mxu0 0
    %179 = vmatpush1.bf16.msra.mxu0 0
    %180 = vmatprep.mubr.bf16.mxu0 0
    %181 = vmatmul.mubr.bf16.gmra.mrb[0].mxu0 %v146
    %v182 = vpop.f32.mrb[0].mxu0
    %v183 = vadd.f32 %v131, %v182
    %v184 = vpop.f32.mrb[0].mxu0
    %v185 = vpop.f32.mrb[0].mxu0
    %v186 = vadd.f32 %v131, %v185
    %v187 = vpop.f32.mrb[0].mxu0
    %188 = vdwg.mxu0
    %191 = vrot.lane.b32.xlu0 %v183, 96
    %v192 = vpop.permute.xlu0 %191
    %193 = vrot.lane.b32.xlu0 %v186, 96
    %v194 = vpop.permute.xlu0 %193
    %vm195 = vcmask 64512
    %v196 = vsel %vm195, %v183, 0
    %v198 = vsel %vm195, %v186, 0
    %v200 = vsel %vm195, %v192, 0
    %v202 = vsel %vm195, %v194, 0
    %204 = vmatprep.subr.mxu0 0.0
    %205 = vmatpush1.xpose.msra.mxu0 %v200
    %206 = vmatprep.subr.mxu0 0.0
    %207 = vmatpush1.xpose.msra.mxu0 %v202
    %208 = vmatprep.subr.mxu0 0.0
    %209 = vmatpush1.xpose.msra.mxu0 0.0
    %210 = vmatprep.subr.mxu0 0.0
    %211 = vmatpush1.xpose.msra.mxu0 0.0
    %212 = vmatprep.subr.mxu0 0.0
    %213 = vmatpush1.xpose.msra.mxu0 0.0
    %214 = vmatprep.subr.mxu0 0.0
    %215 = vmatpush1.xpose.msra.mxu0 0.0
    %216 = vmatprep.subr.mxu0 0.0
    %217 = vmatpush1.xpose.msra.mxu0 0.0
    %218 = vmatprep.subr.mxu0 0.0
    %219 = vmatpush1.xpose.msra.mxu0 0.0
    %220 = vmatprep.subr.mxu0 0.0
    %221 = vmatpush1.xpose.msra.mxu0 0.0
    %222 = vmatprep.subr.mxu0 0.0
    %223 = vmatpush1.xpose.msra.mxu0 0.0
    %224 = vmatprep.subr.mxu0 0.0
    %225 = vmatpush1.xpose.msra.mxu0 0.0
    %226 = vmatprep.subr.mxu0 0.0
    %227 = vmatpush1.xpose.msra.mxu0 0.0
    %228 = vmatprep.subr.mxu0 0.0
    %229 = vmatpush1.xpose.msra.mxu0 0.0
    %230 = vmatprep.subr.mxu0 0.0
    %231 = vmatpush1.xpose.msra.mxu0 0.0
    %232 = vmatprep.subr.mxu0 0.0
    %233 = vmatpush1.xpose.msra.mxu0 0.0
    %234 = vmatprep.subr.mxu0 0.0
    %235 = vmatpush1.xpose.msra.mxu0 0.0
    %236 = vmatprep.subr.mxu0 0.0
    %237 = vmatpush1.xpose.msra.mxu0 0.0
    %238 = vmatprep.subr.mxu0 0.0
    %239 = vmatpush1.xpose.msra.mxu0 0.0
    %240 = vmatprep.subr.mxu0 0.0
    %241 = vmatpush1.xpose.msra.mxu0 0.0
    %242 = vmatprep.subr.mxu0 0.0
    %243 = vmatpush1.xpose.msra.mxu0 0.0
    %244 = vmatprep.subr.mxu0 0.0
    %245 = vmatpush1.xpose.msra.mxu0 0.0
    %246 = vmatprep.subr.mxu0 0.0
    %247 = vmatpush1.xpose.msra.mxu0 0.0
    %248 = vmatprep.subr.mxu0 0.0
    %249 = vmatpush1.xpose.msra.mxu0 0.0
    %250 = vmatprep.subr.mxu0 0.0
    %251 = vmatpush1.xpose.msra.mxu0 0.0
    %252 = vmatprep.subr.mxu0 0.0
    %253 = vmatpush1.xpose.msra.mxu0 0.0
    %254 = vmatprep.subr.mxu0 0.0
    %255 = vmatpush1.xpose.msra.mxu0 0.0
    %256 = vmatprep.subr.mxu0 0.0
    %257 = vmatpush1.xpose.msra.mxu0 0.0
    %258 = vmatprep.subr.mxu0 0.0
    %259 = vmatpush1.xpose.msra.mxu0 0.0
    %260 = vmatprep.subr.mxu0 0.0
    %261 = vmatpush1.xpose.msra.mxu0 0.0
    %262 = vmatprep.subr.mxu0 0.0
    %263 = vmatpush1.xpose.msra.mxu0 0.0
    %264 = vmatprep.subr.mxu0 0.0
    %265 = vmatpush1.xpose.msra.mxu0 0.0
    %266 = vmatprep.subr.mxu0 0.0
    %267 = vmatpush1.xpose.msra.mxu0 0.0
    %268 = vmatprep.mubr.f32.mxu0 0.0
    %269 = vmatmul.mubr.f32.gmra.mrb[0].mxu0 %v196
    %v270 = vpop.f32.mrb[0].mxu0
    %v271 = vadd.f32 0.0, %v270
    %v272 = vpop.f32.mrb[0].mxu0
    %273 = vmatprep.mubr.f32.mxu0 0.0
    %274 = vmatmul.mubr.f32.gmra.mrb[0].mxu0 %v198
    %v275 = vpop.f32.mrb[0].mxu0
    %v276 = vadd.f32 0.0, %v275
    %v277 = vpop.f32.mrb[0].mxu0
    %278 = vdwg.mxu0
    %v279 = vmul.f32 %v271, 0.35355338
    %v280 = vmul.f32 %v276, 0.35355338
    %v281 = vmul.f32 %v279, %v65
    %v282 = vmul.f32 %v280, %v66
    %v283 = vadd.f32 %v281, %v67
    %v284 = vadd.f32 %v282, %v68
    %vm285 = vcmask 130048
    %v286 = vsel %vm285, %v283, -inf
    %287 = vmax.xlane.f32.xlu0 %v286
    %v288 = vpop.xlane.xlu0 %287
    %v289 = vsel %vm285, %v284, -inf
    %290 = vmax.xlane.f32.xlu0 %v289
    %v291 = vpop.xlane.xlu0 %290
    %v292 = vsub.f32 %v283, %v288
    %v293 = vsub.f32 %v284, %v291
    %v294 = vmul.f32 %v292, 1.442695
    %v295 = vpow.pop %v294
    %v296 = vmul.f32 %v293, 1.442695
    %v297 = vpow.pop %v296
    %v298 = vsel %vm285, %v295, 0.0
    %299 = vadd.xlane.f32.xlu0 %v298
    %v300 = vpop.xlane.xlu0 %299
    %v301 = vsel %vm285, %v297, 0.0
    %302 = vadd.xlane.f32.xlu0 %v301
    %v303 = vpop.xlane.xlu0 %302
    %v304 = vrcp.pop %v300
    %v305 = vrcp.pop %v303
    %v306 = vmul.f32 %v295, %v304
    %v307 = vmul.f32 %v297, %v305
    %308 = vrot.lane.b32.xlu0 %v183, 64
    %v309 = vpop.permute.xlu0 %308
    %310 = vrot.lane.b32.xlu0 %v186, 64
    %v311 = vpop.permute.xlu0 %310
    %v315 = vsel %vm285, %v306, 0
    %v318 = vsel %vm285, %v307, 0
    %320 = vmatprep.subr.mxu0 0.0
    %321 = vmatpush1.msra.mxu0 %v309
    %322 = vmatprep.subr.mxu0 0.0
    %323 = vmatpush1.msra.mxu0 %v311
    %324 = vmatprep.subr.mxu0 0.0
    %325 = vmatpush1.msra.mxu0 0.0
    %326 = vmatprep.subr.mxu0 0.0
    %327 = vmatpush1.msra.mxu0 0.0
    %328 = vmatprep.subr.mxu0 0.0
    %329 = vmatpush1.msra.mxu0 0.0
    %330 = vmatprep.subr.mxu0 0.0
    %331 = vmatpush1.msra.mxu0 0.0
    %332 = vmatprep.subr.mxu0 0.0
    %333 = vmatpush1.msra.mxu0 0.0
    %334 = vmatprep.subr.mxu0 0.0
    %335 = vmatpush1.msra.mxu0 0.0
    %336 = vmatprep.subr.mxu0 0.0
    %337 = vmatpush1.msra.mxu0 0.0
    %338 = vmatprep.subr.mxu0 0.0
    %339 = vmatpush1.msra.mxu0 0.0
    %340 = vmatprep.subr.mxu0 0.0
    %341 = vmatpush1.msra.mxu0 0.0
    %342 = vmatprep.subr.mxu0 0.0
    %343 = vmatpush1.msra.mxu0 0.0
    %344 = vmatprep.subr.mxu0 0.0
    %345 = vmatpush1.msra.mxu0 0.0
    %346 = vmatprep.subr.mxu0 0.0
    %347 = vmatpush1.msra.mxu0 0.0
    %348 = vmatprep.subr.mxu0 0.0
    %349 = vmatpush1.msra.mxu0 0.0
    %350 = vmatprep.subr.mxu0 0.0
    %351 = vmatpush1.msra.mxu0 0.0
    %352 = vmatprep.subr.mxu0 0.0
    %353 = vmatpush1.msra.mxu0 0.0
    %354 = vmatprep.subr.mxu0 0.0
    %355 = vmatpush1.msra.mxu0 0.0
    %356 = vmatprep.subr.mxu0 0.0
    %357 = vmatpush1.msra.mxu0 0.0
    %358 = vmatprep.subr.mxu0 0.0
    %359 = vmatpush1.msra.mxu0 0.0
    %360 = vmatprep.subr.mxu0 0.0
    %361 = vmatpush1.msra.mxu0 0.0
    %362 = vmatprep.subr.mxu0 0.0
    %363 = vmatpush1.msra.mxu0 0.0
    %364 = vmatprep.subr.mxu0 0.0
    %365 = vmatpush1.msra.mxu0 0.0
    %366 = vmatprep.subr.mxu0 0.0
    %367 = vmatpush1.msra.mxu0 0.0
    %368 = vmatprep.subr.mxu0 0.0
    %369 = vmatpush1.msra.mxu0 0.0
    %370 = vmatprep.subr.mxu0 0.0
    %371 = vmatpush1.msra.mxu0 0.0
    %372 = vmatprep.subr.mxu0 0.0
    %373 = vmatpush1.msra.mxu0 0.0
    %374 = vmatprep.subr.mxu0 0.0
    %375 = vmatpush1.msra.mxu0 0.0
    %376 = vmatprep.subr.mxu0 0.0
    %377 = vmatpush1.msra.mxu0 0.0
    %378 = vmatprep.subr.mxu0 0.0
    %379 = vmatpush1.msra.mxu0 0.0
    %380 = vmatprep.subr.mxu0 0.0
    %381 = vmatpush1.msra.mxu0 0.0
    %382 = vmatprep.subr.mxu0 0.0
    %383 = vmatpush1.msra.mxu0 0.0
    %384 = vmatprep.mubr.f32.mxu0 0.0
    %385 = vmatmul.mubr.f32.gmra.mrb[0].mxu0 %v315
    %v386 = vpop.f32.mrb[0].mxu0
    %v387 = vadd.f32 0.0, %v386
    %v388 = vpop.f32.mrb[0].mxu0
    %389 = vmatprep.mubr.f32.mxu0 0.0
    %390 = vmatmul.mubr.f32.gmra.mrb[0].mxu0 %v318
    %v391 = vpop.f32.mrb[0].mxu0
    %v392 = vadd.f32 0.0, %v391
    %v393 = vpop.f32.mrb[0].mxu0
    %394 = vdwg.mxu0
    %395 = vrot.lane.b32.xlu0 %v183, 120
    %v396 = vpop.permute.xlu0 %395
    %397 = vrot.lane.b32.xlu0 %v186, 120
    %v398 = vpop.permute.xlu0 %397
    %399 = vrot.lane.b32.xlu0 %v183, 88
    %v400 = vpop.permute.xlu0 %399
    %401 = vrot.lane.b32.xlu0 %v186, 88
    %v402 = vpop.permute.xlu0 %401
    %v403 = vsel %vm195, %v396, 0
    %v405 = vsel %vm195, %v398, 0
    %v407 = vsel %vm195, %v400, 0
    %v409 = vsel %vm195, %v402, 0
    %411 = vmatprep.subr.mxu0 0.0
    %412 = vmatpush1.xpose.msra.mxu0 %v407
    %413 = vmatprep.subr.mxu0 0.0
    %414 = vmatpush1.xpose.msra.mxu0 %v409
    %415 = vmatprep.subr.mxu0 0.0
    %416 = vmatpush1.xpose.msra.mxu0 0.0
    %417 = vmatprep.subr.mxu0 0.0
    %418 = vmatpush1.xpose.msra.mxu0 0.0
    %419 = vmatprep.subr.mxu0 0.0
    %420 = vmatpush1.xpose.msra.mxu0 0.0
    %421 = vmatprep.subr.mxu0 0.0
    %422 = vmatpush1.xpose.msra.mxu0 0.0
    %423 = vmatprep.subr.mxu0 0.0
    %424 = vmatpush1.xpose.msra.mxu0 0.0
    %425 = vmatprep.subr.mxu0 0.0
    %426 = vmatpush1.xpose.msra.mxu0 0.0
    %427 = vmatprep.subr.mxu0 0.0
    %428 = vmatpush1.xpose.msra.mxu0 0.0
    %429 = vmatprep.subr.mxu0 0.0
    %430 = vmatpush1.xpose.msra.mxu0 0.0
    %431 = vmatprep.subr.mxu0 0.0
    %432 = vmatpush1.xpose.msra.mxu0 0.0
    %433 = vmatprep.subr.mxu0 0.0
    %434 = vmatpush1.xpose.msra.mxu0 0.0
    %435 = vmatprep.subr.mxu0 0.0
    %436 = vmatpush1.xpose.msra.mxu0 0.0
    %437 = vmatprep.subr.mxu0 0.0
    %438 = vmatpush1.xpose.msra.mxu0 0.0
    %439 = vmatprep.subr.mxu0 0.0
    %440 = vmatpush1.xpose.msra.mxu0 0.0
    %441 = vmatprep.subr.mxu0 0.0
    %442 = vmatpush1.xpose.msra.mxu0 0.0
    %443 = vmatprep.subr.mxu0 0.0
    %444 = vmatpush1.xpose.msra.mxu0 0.0
    %445 = vmatprep.subr.mxu0 0.0
    %446 = vmatpush1.xpose.msra.mxu0 0.0
    %447 = vmatprep.subr.mxu0 0.0
    %448 = vmatpush1.xpose.msra.mxu0 0.0
    %449 = vmatprep.subr.mxu0 0.0
    %450 = vmatpush1.xpose.msra.mxu0 0.0
    %451 = vmatprep.subr.mxu0 0.0
    %452 = vmatpush1.xpose.msra.mxu0 0.0
    %453 = vmatprep.subr.mxu0 0.0
    %454 = vmatpush1.xpose.msra.mxu0 0.0
    %455 = vmatprep.subr.mxu0 0.0
    %456 = vmatpush1.xpose.msra.mxu0 0.0
    %457 = vmatprep.subr.mxu0 0.0
    %458 = vmatpush1.xpose.msra.mxu0 0.0
    %459 = vmatprep.subr.mxu0 0.0
    %460 = vmatpush1.xpose.msra.mxu0 0.0
    %461 = vmatprep.subr.mxu0 0.0
    %462 = vmatpush1.xpose.msra.mxu0 0.0
    %463 = vmatprep.subr.mxu0 0.0
    %464 = vmatpush1.xpose.msra.mxu0 0.0
    %465 = vmatprep.subr.mxu0 0.0
    %466 = vmatpush1.xpose.msra.mxu0 0.0
    %467 = vmatprep.subr.mxu0 0.0
    %468 = vmatpush1.xpose.msra.mxu0 0.0
    %469 = vmatprep.subr.mxu0 0.0
    %470 = vmatpush1.xpose.msra.mxu0 0.0
    %471 = vmatprep.subr.mxu0 0.0
    %472 = vmatpush1.xpose.msra.mxu0 0.0
    %473 = vmatprep.subr.mxu0 0.0
    %474 = vmatpush1.xpose.msra.mxu0 0.0
    %475 = vmatprep.mubr.f32.mxu0 0.0
    %476 = vmatmul.mubr.f32.gmra.mrb[0].mxu0 %v403
    %v477 = vpop.f32.mrb[0].mxu0
    %v478 = vadd.f32 0.0, %v477
    %v479 = vpop.f32.mrb[0].mxu0
    %480 = vmatprep.mubr.f32.mxu0 0.0
    %481 = vmatmul.mubr.f32.gmra.mrb[0].mxu0 %v405
    %v482 = vpop.f32.mrb[0].mxu0
    %v483 = vadd.f32 0.0, %v482
    %v484 = vpop.f32.mrb[0].mxu0
    %485 = vdwg.mxu0
    %v486 = vmul.f32 %v478, 0.35355338
    %v487 = vmul.f32 %v483, 0.35355338
    %v488 = vmul.f32 %v486, %v65
    %v489 = vmul.f32 %v487, %v66
    %v490 = vadd.f32 %v488, %v67
    %v491 = vadd.f32 %v489, %v68
    %v492 = vsel %vm285, %v490, -inf
    %493 = vmax.xlane.f32.xlu0 %v492
    %v494 = vpop.xlane.xlu0 %493
    %v495 = vsel %vm285, %v491, -inf
    %496 = vmax.xlane.f32.xlu0 %v495
    %v497 = vpop.xlane.xlu0 %496
    %v498 = vsub.f32 %v490, %v494
    %v499 = vsub.f32 %v491, %v497
    %v500 = vmul.f32 %v498, 1.442695
    %v501 = vpow.pop %v500
    %v502 = vmul.f32 %v499, 1.442695
    %v503 = vpow.pop %v502
    %v504 = vsel %vm285, %v501, 0.0
    %505 = vadd.xlane.f32.xlu0 %v504
    %v506 = vpop.xlane.xlu0 %505
    %v507 = vsel %vm285, %v503, 0.0
    %508 = vadd.xlane.f32.xlu0 %v507
    %v509 = vpop.xlane.xlu0 %508
    %v510 = vrcp.pop %v506
    %v511 = vrcp.pop %v509
    %v512 = vmul.f32 %v501, %v510
    %v513 = vmul.f32 %v503, %v511
    %514 = vrot.lane.b32.xlu0 %v183, 56
    %v515 = vpop.permute.xlu0 %514
    %516 = vrot.lane.b32.xlu0 %v186, 56
    %v517 = vpop.permute.xlu0 %516
    %v521 = vsel %vm285, %v512, 0
    %v524 = vsel %vm285, %v513, 0
    %526 = vmatprep.subr.mxu0 0.0
    %527 = vmatpush1.msra.mxu0 %v515
    %528 = vmatprep.subr.mxu0 0.0
    %529 = vmatpush1.msra.mxu0 %v517
    %530 = vmatprep.subr.mxu0 0.0
    %531 = vmatpush1.msra.mxu0 0.0
    %532 = vmatprep.subr.mxu0 0.0
    %533 = vmatpush1.msra.mxu0 0.0
    %534 = vmatprep.subr.mxu0 0.0
    %535 = vmatpush1.msra.mxu0 0.0
    %536 = vmatprep.subr.mxu0 0.0
    %537 = vmatpush1.msra.mxu0 0.0
    %538 = vmatprep.subr.mxu0 0.0
    %539 = vmatpush1.msra.mxu0 0.0
    %540 = vmatprep.subr.mxu0 0.0
    %541 = vmatpush1.msra.mxu0 0.0
    %542 = vmatprep.subr.mxu0 0.0
    %543 = vmatpush1.msra.mxu0 0.0
    %544 = vmatprep.subr.mxu0 0.0
    %545 = vmatpush1.msra.mxu0 0.0
    %546 = vmatprep.subr.mxu0 0.0
    %547 = vmatpush1.msra.mxu0 0.0
    %548 = vmatprep.subr.mxu0 0.0
    %549 = vmatpush1.msra.mxu0 0.0
    %550 = vmatprep.subr.mxu0 0.0
    %551 = vmatpush1.msra.mxu0 0.0
    %552 = vmatprep.subr.mxu0 0.0
    %553 = vmatpush1.msra.mxu0 0.0
    %554 = vmatprep.subr.mxu0 0.0
    %555 = vmatpush1.msra.mxu0 0.0
    %556 = vmatprep.subr.mxu0 0.0
    %557 = vmatpush1.msra.mxu0 0.0
    %558 = vmatprep.subr.mxu0 0.0
    %559 = vmatpush1.msra.mxu0 0.0
    %560 = vmatprep.subr.mxu0 0.0
    %561 = vmatpush1.msra.mxu0 0.0
    %562 = vmatprep.subr.mxu0 0.0
    %563 = vmatpush1.msra.mxu0 0.0
    %564 = vmatprep.subr.mxu0 0.0
    %565 = vmatpush1.msra.mxu0 0.0
    %566 = vmatprep.subr.mxu0 0.0
    %567 = vmatpush1.msra.mxu0 0.0
    %568 = vmatprep.subr.mxu0 0.0
    %569 = vmatpush1.msra.mxu0 0.0
    %570 = vmatprep.subr.mxu0 0.0
    %571 = vmatpush1.msra.mxu0 0.0
    %572 = vmatprep.subr.mxu0 0.0
    %573 = vmatpush1.msra.mxu0 0.0
    %574 = vmatprep.subr.mxu0 0.0
    %575 = vmatpush1.msra.mxu0 0.0
    %576 = vmatprep.subr.mxu0 0.0
    %577 = vmatpush1.msra.mxu0 0.0
    %578 = vmatprep.subr.mxu0 0.0
    %579 = vmatpush1.msra.mxu0 0.0
    %580 = vmatprep.subr.mxu0 0.0
    %581 = vmatpush1.msra.mxu0 0.0
    %582 = vmatprep.subr.mxu0 0.0
    %583 = vmatpush1.msra.mxu0 0.0
    %584 = vmatprep.subr.mxu0 0.0
    %585 = vmatpush1.msra.mxu0 0.0
    %586 = vmatprep.subr.mxu0 0.0
    %587 = vmatpush1.msra.mxu0 0.0
    %588 = vmatprep.subr.mxu0 0.0
    %589 = vmatpush1.msra.mxu0 0.0
    %590 = vmatprep.mubr.f32.mxu0 0.0
    %591 = vmatmul.mubr.f32.gmra.mrb[0].mxu0 %v521
    %v592 = vpop.f32.mrb[0].mxu0
    %v593 = vadd.f32 0.0, %v592
    %v594 = vpop.f32.mrb[0].mxu0
    %595 = vmatprep.mubr.f32.mxu0 0.0
    %596 = vmatmul.mubr.f32.gmra.mrb[0].mxu0 %v524
    %v597 = vpop.f32.mrb[0].mxu0
    %v598 = vadd.f32 0.0, %v597
    %v599 = vpop.f32.mrb[0].mxu0
    %600 = vdwg.mxu0
    %601 = vrot.lane.b32.xlu0 %v183, 112
    %v602 = vpop.permute.xlu0 %601
    %603 = vrot.lane.b32.xlu0 %v186, 112
    %v604 = vpop.permute.xlu0 %603
    %605 = vrot.lane.b32.xlu0 %v183, 80
    %v606 = vpop.permute.xlu0 %605
    %607 = vrot.lane.b32.xlu0 %v186, 80
    %v608 = vpop.permute.xlu0 %607
    %v609 = vsel %vm195, %v602, 0
    %v611 = vsel %vm195, %v604, 0
    %v613 = vsel %vm195, %v606, 0
    %v615 = vsel %vm195, %v608, 0
    %617 = vmatprep.subr.mxu0 0.0
    %618 = vmatpush1.xpose.msra.mxu0 %v613
    %619 = vmatprep.subr.mxu0 0.0
    %620 = vmatpush1.xpose.msra.mxu0 %v615
    %621 = vmatprep.subr.mxu0 0.0
    %622 = vmatpush1.xpose.msra.mxu0 0.0
    %623 = vmatprep.subr.mxu0 0.0
    %624 = vmatpush1.xpose.msra.mxu0 0.0
    %625 = vmatprep.subr.mxu0 0.0
    %626 = vmatpush1.xpose.msra.mxu0 0.0
    %627 = vmatprep.subr.mxu0 0.0
    %628 = vmatpush1.xpose.msra.mxu0 0.0
    %629 = vmatprep.subr.mxu0 0.0
    %630 = vmatpush1.xpose.msra.mxu0 0.0
    %631 = vmatprep.subr.mxu0 0.0
    %632 = vmatpush1.xpose.msra.mxu0 0.0
    %633 = vmatprep.subr.mxu0 0.0
    %634 = vmatpush1.xpose.msra.mxu0 0.0
    %635 = vmatprep.subr.mxu0 0.0
    %636 = vmatpush1.xpose.msra.mxu0 0.0
    %637 = vmatprep.subr.mxu0 0.0
    %638 = vmatpush1.xpose.msra.mxu0 0.0
    %639 = vmatprep.subr.mxu0 0.0
    %640 = vmatpush1.xpose.msra.mxu0 0.0
    %641 = vmatprep.subr.mxu0 0.0
    %642 = vmatpush1.xpose.msra.mxu0 0.0
    %643 = vmatprep.subr.mxu0 0.0
    %644 = vmatpush1.xpose.msra.mxu0 0.0
    %645 = vmatprep.subr.mxu0 0.0
    %646 = vmatpush1.xpose.msra.mxu0 0.0
    %647 = vmatprep.subr.mxu0 0.0
    %648 = vmatpush1.xpose.msra.mxu0 0.0
    %649 = vmatprep.subr.mxu0 0.0
    %650 = vmatpush1.xpose.msra.mxu0 0.0
    %651 = vmatprep.subr.mxu0 0.0
    %652 = vmatpush1.xpose.msra.mxu0 0.0
    %653 = vmatprep.subr.mxu0 0.0
    %654 = vmatpush1.xpose.msra.mxu0 0.0
    %655 = vmatprep.subr.mxu0 0.0
    %656 = vmatpush1.xpose.msra.mxu0 0.0
    %657 = vmatprep.subr.mxu0 0.0
    %658 = vmatpush1.xpose.msra.mxu0 0.0
    %659 = vmatprep.subr.mxu0 0.0
    %660 = vmatpush1.xpose.msra.mxu0 0.0
    %661 = vmatprep.subr.mxu0 0.0
    %662 = vmatpush1.xpose.msra.mxu0 0.0
    %663 = vmatprep.subr.mxu0 0.0
    %664 = vmatpush1.xpose.msra.mxu0 0.0
    %665 = vmatprep.subr.mxu0 0.0
    %666 = vmatpush1.xpose.msra.mxu0 0.0
    %667 = vmatprep.subr.mxu0 0.0
    %668 = vmatpush1.xpose.msra.mxu0 0.0
    %669 = vmatprep.subr.mxu0 0.0
    %670 = vmatpush1.xpose.msra.mxu0 0.0
    %671 = vmatprep.subr.mxu0 0.0
    %672 = vmatpush1.xpose.msra.mxu0 0.0
    %673 = vmatprep.subr.mxu0 0.0
    %674 = vmatpush1.xpose.msra.mxu0 0.0
    %675 = vmatprep.subr.mxu0 0.0
    %676 = vmatpush1.xpose.msra.mxu0 0.0
    %677 = vmatprep.subr.mxu0 0.0
    %678 = vmatpush1.xpose.msra.mxu0 0.0
    %679 = vmatprep.subr.mxu0 0.0
    %680 = vmatpush1.xpose.msra.mxu0 0.0
    %681 = vmatprep.mubr.f32.mxu0 0.0
    %682 = vmatmul.mubr.f32.gmra.mrb[0].mxu0 %v609
    %v683 = vpop.f32.mrb[0].mxu0
    %v684 = vadd.f32 0.0, %v683
    %v685 = vpop.f32.mrb[0].mxu0
    %686 = vmatprep.mubr.f32.mxu0 0.0
    %687 = vmatmul.mubr.f32.gmra.mrb[0].mxu0 %v611
    %v688 = vpop.f32.mrb[0].mxu0
    %v689 = vadd.f32 0.0, %v688
    %v690 = vpop.f32.mrb[0].mxu0
    %691 = vdwg.mxu0
    %v692 = vmul.f32 %v684, 0.35355338
    %v693 = vmul.f32 %v689, 0.35355338
    %v694 = vmul.f32 %v692, %v65
    %v695 = vmul.f32 %v693, %v66
    %v696 = vadd.f32 %v694, %v67
    %v697 = vadd.f32 %v695, %v68
    %v698 = vsel %vm285, %v696, -inf
    %699 = vmax.xlane.f32.xlu0 %v698
    %v700 = vpop.xlane.xlu0 %699
    %v701 = vsel %vm285, %v697, -inf
    %702 = vmax.xlane.f32.xlu0 %v701
    %v703 = vpop.xlane.xlu0 %702
    %v704 = vsub.f32 %v696, %v700
    %v705 = vsub.f32 %v697, %v703
    %v706 = vmul.f32 %v704, 1.442695
    %v707 = vpow.pop %v706
    %v708 = vmul.f32 %v705, 1.442695
    %v709 = vpow.pop %v708
    %v710 = vsel %vm285, %v707, 0.0
    %711 = vadd.xlane.f32.xlu0 %v710
    %v712 = vpop.xlane.xlu0 %711
    %v713 = vsel %vm285, %v709, 0.0
    %714 = vadd.xlane.f32.xlu0 %v713
    %v715 = vpop.xlane.xlu0 %714
    %v716 = vrcp.pop %v712
    %v717 = vrcp.pop %v715
    %v718 = vmul.f32 %v707, %v716
    %v719 = vmul.f32 %v709, %v717
    %720 = vrot.lane.b32.xlu0 %v183, 48
    %v721 = vpop.permute.xlu0 %720
    %722 = vrot.lane.b32.xlu0 %v186, 48
    %v723 = vpop.permute.xlu0 %722
    %v727 = vsel %vm285, %v718, 0
    %v730 = vsel %vm285, %v719, 0
    %732 = vmatprep.subr.mxu0 0.0
    %733 = vmatpush1.msra.mxu0 %v721
    %734 = vmatprep.subr.mxu0 0.0
    %735 = vmatpush1.msra.mxu0 %v723
    %736 = vmatprep.subr.mxu0 0.0
    %737 = vmatpush1.msra.mxu0 0.0
    %738 = vmatprep.subr.mxu0 0.0
    %739 = vmatpush1.msra.mxu0 0.0
    %740 = vmatprep.subr.mxu0 0.0
    %741 = vmatpush1.msra.mxu0 0.0
    %742 = vmatprep.subr.mxu0 0.0
    %743 = vmatpush1.msra.mxu0 0.0
    %744 = vmatprep.subr.mxu0 0.0
    %745 = vmatpush1.msra.mxu0 0.0
    %746 = vmatprep.subr.mxu0 0.0
    %747 = vmatpush1.msra.mxu0 0.0
    %748 = vmatprep.subr.mxu0 0.0
    %749 = vmatpush1.msra.mxu0 0.0
    %750 = vmatprep.subr.mxu0 0.0
    %751 = vmatpush1.msra.mxu0 0.0
    %752 = vmatprep.subr.mxu0 0.0
    %753 = vmatpush1.msra.mxu0 0.0
    %754 = vmatprep.subr.mxu0 0.0
    %755 = vmatpush1.msra.mxu0 0.0
    %756 = vmatprep.subr.mxu0 0.0
    %757 = vmatpush1.msra.mxu0 0.0
    %758 = vmatprep.subr.mxu0 0.0
    %759 = vmatpush1.msra.mxu0 0.0
    %760 = vmatprep.subr.mxu0 0.0
    %761 = vmatpush1.msra.mxu0 0.0
    %762 = vmatprep.subr.mxu0 0.0
    %763 = vmatpush1.msra.mxu0 0.0
    %764 = vmatprep.subr.mxu0 0.0
    %765 = vmatpush1.msra.mxu0 0.0
    %766 = vmatprep.subr.mxu0 0.0
    %767 = vmatpush1.msra.mxu0 0.0
    %768 = vmatprep.subr.mxu0 0.0
    %769 = vmatpush1.msra.mxu0 0.0
    %770 = vmatprep.subr.mxu0 0.0
    %771 = vmatpush1.msra.mxu0 0.0
    %772 = vmatprep.subr.mxu0 0.0
    %773 = vmatpush1.msra.mxu0 0.0
    %774 = vmatprep.subr.mxu0 0.0
    %775 = vmatpush1.msra.mxu0 0.0
    %776 = vmatprep.subr.mxu0 0.0
    %777 = vmatpush1.msra.mxu0 0.0
    %778 = vmatprep.subr.mxu0 0.0
    %779 = vmatpush1.msra.mxu0 0.0
    %780 = vmatprep.subr.mxu0 0.0
    %781 = vmatpush1.msra.mxu0 0.0
    %782 = vmatprep.subr.mxu0 0.0
    %783 = vmatpush1.msra.mxu0 0.0
    %784 = vmatprep.subr.mxu0 0.0
    %785 = vmatpush1.msra.mxu0 0.0
    %786 = vmatprep.subr.mxu0 0.0
    %787 = vmatpush1.msra.mxu0 0.0
    %788 = vmatprep.subr.mxu0 0.0
    %789 = vmatpush1.msra.mxu0 0.0
    %790 = vmatprep.subr.mxu0 0.0
    %791 = vmatpush1.msra.mxu0 0.0
    %792 = vmatprep.subr.mxu0 0.0
    %793 = vmatpush1.msra.mxu0 0.0
    %794 = vmatprep.subr.mxu0 0.0
    %795 = vmatpush1.msra.mxu0 0.0
    %796 = vmatprep.mubr.f32.mxu0 0.0
    %797 = vmatmul.mubr.f32.gmra.mrb[0].mxu0 %v727
    %v798 = vpop.f32.mrb[0].mxu0
    %v799 = vadd.f32 0.0, %v798
    %v800 = vpop.f32.mrb[0].mxu0
    %801 = vmatprep.mubr.f32.mxu0 0.0
    %802 = vmatmul.mubr.f32.gmra.mrb[0].mxu0 %v730
    %v803 = vpop.f32.mrb[0].mxu0
    %v804 = vadd.f32 0.0, %v803
    %v805 = vpop.f32.mrb[0].mxu0
    %806 = vdwg.mxu0
    %807 = vrot.lane.b32.xlu0 %v183, 104
    %v808 = vpop.permute.xlu0 %807
    %809 = vrot.lane.b32.xlu0 %v186, 104
    %v810 = vpop.permute.xlu0 %809
    %811 = vrot.lane.b32.xlu0 %v183, 72
    %v812 = vpop.permute.xlu0 %811
    %813 = vrot.lane.b32.xlu0 %v186, 72
    %v814 = vpop.permute.xlu0 %813
    %v815 = vsel %vm195, %v808, 0
    %v817 = vsel %vm195, %v810, 0
    %v819 = vsel %vm195, %v812, 0
    %v821 = vsel %vm195, %v814, 0
    %823 = vmatprep.subr.mxu0 0.0
    %824 = vmatpush1.xpose.msra.mxu0 %v819
    %825 = vmatprep.subr.mxu0 0.0
    %826 = vmatpush1.xpose.msra.mxu0 %v821
    %827 = vmatprep.subr.mxu0 0.0
    %828 = vmatpush1.xpose.msra.mxu0 0.0
    %829 = vmatprep.subr.mxu0 0.0
    %830 = vmatpush1.xpose.msra.mxu0 0.0
    %831 = vmatprep.subr.mxu0 0.0
    %832 = vmatpush1.xpose.msra.mxu0 0.0
    %833 = vmatprep.subr.mxu0 0.0
    %834 = vmatpush1.xpose.msra.mxu0 0.0
    %835 = vmatprep.subr.mxu0 0.0
    %836 = vmatpush1.xpose.msra.mxu0 0.0
    %837 = vmatprep.subr.mxu0 0.0
    %838 = vmatpush1.xpose.msra.mxu0 0.0
    %839 = vmatprep.subr.mxu0 0.0
    %840 = vmatpush1.xpose.msra.mxu0 0.0
    %841 = vmatprep.subr.mxu0 0.0
    %842 = vmatpush1.xpose.msra.mxu0 0.0
    %843 = vmatprep.subr.mxu0 0.0
    %844 = vmatpush1.xpose.msra.mxu0 0.0
    %845 = vmatprep.subr.mxu0 0.0
    %846 = vmatpush1.xpose.msra.mxu0 0.0
    %847 = vmatprep.subr.mxu0 0.0
    %848 = vmatpush1.xpose.msra.mxu0 0.0
    %849 = vmatprep.subr.mxu0 0.0
    %850 = vmatpush1.xpose.msra.mxu0 0.0
    %851 = vmatprep.subr.mxu0 0.0
    %852 = vmatpush1.xpose.msra.mxu0 0.0
    %853 = vmatprep.subr.mxu0 0.0
    %854 = vmatpush1.xpose.msra.mxu0 0.0
    %855 = vmatprep.subr.mxu0 0.0
    %856 = vmatpush1.xpose.msra.mxu0 0.0
    %857 = vmatprep.subr.mxu0 0.0
    %858 = vmatpush1.xpose.msra.mxu0 0.0
    %859 = vmatprep.subr.mxu0 0.0
    %860 = vmatpush1.xpose.msra.mxu0 0.0
    %861 = vmatprep.subr.mxu0 0.0
    %862 = vmatpush1.xpose.msra.mxu0 0.0
    %863 = vmatprep.subr.mxu0 0.0
    %864 = vmatpush1.xpose.msra.mxu0 0.0
    %865 = vmatprep.subr.mxu0 0.0
    %866 = vmatpush1.xpose.msra.mxu0 0.0
    %867 = vmatprep.subr.mxu0 0.0
    %868 = vmatpush1.xpose.msra.mxu0 0.0
    %869 = vmatprep.subr.mxu0 0.0
    %870 = vmatpush1.xpose.msra.mxu0 0.0
    %871 = vmatprep.subr.mxu0 0.0
    %872 = vmatpush1.xpose.msra.mxu0 0.0
    %873 = vmatprep.subr.mxu0 0.0
    %874 = vmatpush1.xpose.msra.mxu0 0.0
    %875 = vmatprep.subr.mxu0 0.0
    %876 = vmatpush1.xpose.msra.mxu0 0.0
    %877 = vmatprep.subr.mxu0 0.0
    %878 = vmatpush1.xpose.msra.mxu0 0.0
    %879 = vmatprep.subr.mxu0 0.0
    %880 = vmatpush1.xpose.msra.mxu0 0.0
    %881 = vmatprep.subr.mxu0 0.0
    %882 = vmatpush1.xpose.msra.mxu0 0.0
    %883 = vmatprep.subr.mxu0 0.0
    %884 = vmatpush1.xpose.msra.mxu0 0.0
    %885 = vmatprep.subr.mxu0 0.0
    %886 = vmatpush1.xpose.msra.mxu0 0.0
    %887 = vmatprep.mubr.f32.mxu0 0.0
    %888 = vmatmul.mubr.f32.gmra.mrb[0].mxu0 %v815
    %v889 = vpop.f32.mrb[0].mxu0
    %v890 = vadd.f32 0.0, %v889
    %v891 = vpop.f32.mrb[0].mxu0
    %892 = vmatprep.mubr.f32.mxu0 0.0
    %893 = vmatmul.mubr.f32.gmra.mrb[0].mxu0 %v817
    %v894 = vpop.f32.mrb[0].mxu0
    %v895 = vadd.f32 0.0, %v894
    %v896 = vpop.f32.mrb[0].mxu0
    %897 = vdwg.mxu0
    %v898 = vmul.f32 %v890, 0.35355338
    %v899 = vmul.f32 %v895, 0.35355338
    %v900 = vmul.f32 %v898, %v65
    %v901 = vmul.f32 %v899, %v66
    %v902 = vadd.f32 %v900, %v67
    %v903 = vadd.f32 %v901, %v68
    %v904 = vsel %vm285, %v902, -inf
    %905 = vmax.xlane.f32.xlu0 %v904
    %v906 = vpop.xlane.xlu0 %905
    %v907 = vsel %vm285, %v903, -inf
    %908 = vmax.xlane.f32.xlu0 %v907
    %v909 = vpop.xlane.xlu0 %908
    %v910 = vsub.f32 %v902, %v906
    %v911 = vsub.f32 %v903, %v909
    %v912 = vmul.f32 %v910, 1.442695
    %v913 = vpow.pop %v912
    %v914 = vmul.f32 %v911, 1.442695
    %v915 = vpow.pop %v914
    %v916 = vsel %vm285, %v913, 0.0
    %917 = vadd.xlane.f32.xlu0 %v916
    %v918 = vpop.xlane.xlu0 %917
    %v919 = vsel %vm285, %v915, 0.0
    %920 = vadd.xlane.f32.xlu0 %v919
    %v921 = vpop.xlane.xlu0 %920
    %v922 = vrcp.pop %v918
    %v923 = vrcp.pop %v921
    %v924 = vmul.f32 %v913, %v922
    %v925 = vmul.f32 %v915, %v923
    %926 = vrot.lane.b32.xlu0 %v183, 40
    %v927 = vpop.permute.xlu0 %926
    %928 = vrot.lane.b32.xlu0 %v186, 40
    %v929 = vpop.permute.xlu0 %928
    %v933 = vsel %vm285, %v924, 0
    %v936 = vsel %vm285, %v925, 0
    %938 = vmatprep.subr.mxu0 0.0
    %939 = vmatpush1.msra.mxu0 %v927
    %940 = vmatprep.subr.mxu0 0.0
    %941 = vmatpush1.msra.mxu0 %v929
    %942 = vmatprep.subr.mxu0 0.0
    %943 = vmatpush1.msra.mxu0 0.0
    %944 = vmatprep.subr.mxu0 0.0
    %945 = vmatpush1.msra.mxu0 0.0
    %946 = vmatprep.subr.mxu0 0.0
    %947 = vmatpush1.msra.mxu0 0.0
    %948 = vmatprep.subr.mxu0 0.0
    %949 = vmatpush1.msra.mxu0 0.0
    %950 = vmatprep.subr.mxu0 0.0
    %951 = vmatpush1.msra.mxu0 0.0
    %952 = vmatprep.subr.mxu0 0.0
    %953 = vmatpush1.msra.mxu0 0.0
    %954 = vmatprep.subr.mxu0 0.0
    %955 = vmatpush1.msra.mxu0 0.0
    %956 = vmatprep.subr.mxu0 0.0
    %957 = vmatpush1.msra.mxu0 0.0
    %958 = vmatprep.subr.mxu0 0.0
    %959 = vmatpush1.msra.mxu0 0.0
    %960 = vmatprep.subr.mxu0 0.0
    %961 = vmatpush1.msra.mxu0 0.0
    %962 = vmatprep.subr.mxu0 0.0
    %963 = vmatpush1.msra.mxu0 0.0
    %964 = vmatprep.subr.mxu0 0.0
    %965 = vmatpush1.msra.mxu0 0.0
    %966 = vmatprep.subr.mxu0 0.0
    %967 = vmatpush1.msra.mxu0 0.0
    %968 = vmatprep.subr.mxu0 0.0
    %969 = vmatpush1.msra.mxu0 0.0
    %970 = vmatprep.subr.mxu0 0.0
    %971 = vmatpush1.msra.mxu0 0.0
    %972 = vmatprep.subr.mxu0 0.0
    %973 = vmatpush1.msra.mxu0 0.0
    %974 = vmatprep.subr.mxu0 0.0
    %975 = vmatpush1.msra.mxu0 0.0
    %976 = vmatprep.subr.mxu0 0.0
    %977 = vmatpush1.msra.mxu0 0.0
    %978 = vmatprep.subr.mxu0 0.0
    %979 = vmatpush1.msra.mxu0 0.0
    %980 = vmatprep.subr.mxu0 0.0
    %981 = vmatpush1.msra.mxu0 0.0
    %982 = vmatprep.subr.mxu0 0.0
    %983 = vmatpush1.msra.mxu0 0.0
    %984 = vmatprep.subr.mxu0 0.0
    %985 = vmatpush1.msra.mxu0 0.0
    %986 = vmatprep.subr.mxu0 0.0
    %987 = vmatpush1.msra.mxu0 0.0
    %988 = vmatprep.subr.mxu0 0.0
    %989 = vmatpush1.msra.mxu0 0.0
    %990 = vmatprep.subr.mxu0 0.0
    %991 = vmatpush1.msra.mxu0 0.0
    %992 = vmatprep.subr.mxu0 0.0
    %993 = vmatpush1.msra.mxu0 0.0
    %994 = vmatprep.subr.mxu0 0.0
    %995 = vmatpush1.msra.mxu0 0.0
    %996 = vmatprep.subr.mxu0 0.0
    %997 = vmatpush1.msra.mxu0 0.0
    %998 = vmatprep.subr.mxu0 0.0
    %999 = vmatpush1.msra.mxu0 0.0
    %1000 = vmatprep.subr.mxu0 0.0
    %1001 = vmatpush1.msra.mxu0 0.0
    %1002 = vmatprep.mubr.f32.mxu0 0.0
    %1003 = vmatmul.mubr.f32.gmra.mrb[0].mxu0 %v933
    %v1004 = vpop.f32.mrb[0].mxu0
    %v1005 = vadd.f32 0.0, %v1004
    %v1006 = vpop.f32.mrb[0].mxu0
    %1007 = vmatprep.mubr.f32.mxu0 0.0
    %1008 = vmatmul.mubr.f32.gmra.mrb[0].mxu0 %v936
    %v1009 = vpop.f32.mrb[0].mxu0
    %v1010 = vadd.f32 0.0, %v1009
    %v1011 = vpop.f32.mrb[0].mxu0
    %1012 = vdwg.mxu0
    %1015 = vrot.lane.b32.xlu0 %v593, 8
    %v1016 = vpop.permute.xlu0 %1015
    %1017 = vrot.lane.b32.xlu0 %v598, 8
    %v1018 = vpop.permute.xlu0 %1017
    %1023 = vrot.lane.b32.xlu0 %v799, 16
    %v1024 = vpop.permute.xlu0 %1023
    %1025 = vrot.lane.b32.xlu0 %v804, 16
    %v1026 = vpop.permute.xlu0 %1025
    %1031 = vrot.lane.b32.xlu0 %v1005, 24
    %v1032 = vpop.permute.xlu0 %1031
    %1033 = vrot.lane.b32.xlu0 %v1010, 24
    %v1034 = vpop.permute.xlu0 %1033
    %v1037 = vsel %vm195, %v387, %v1016
    %v1038 = vsel %vm195, %v392, %v1018
    %v1039 = vsel %vm285, %v1037, %v1024
    %v1040 = vsel %vm285, %v1038, %v1026
    %vm1041 = vcmask 195584
    %v1042 = vsel %vm1041, %v1039, %v1032
    %v1043 = vsel %vm1041, %v1040, %v1034
    %v1044 = vpack.c.bf16 %v1043, %v1042
    %v1045 = vld [vmem:[%s8] sm:$0xf]
    %v1046 = vld [vmem:[%s8 + $0x4] sm:$0xf]
    %v1047 = vld [vmem:[%s8 + $0x8] sm:$0xf]
    %v1048 = vld [vmem:[%s8 + $0xc] sm:$0xf]
    %v1049 = vld [vmem:[%s9] sm:$0x1]
    %v1051 = vlaneseq
    %v1052 = vshrl.u32 %v1051, 7
    %v1053 = vsub.s32 0, %v1052
    %v1054 = vrot.slane %v1049, %v1053
    %v1060 = vunpack.c.l.b16 %v1045
    %v1061 = vunpack.c.l.b16 %v1046
    %v1062 = vunpack.c.l.b16 %v1047
    %v1063 = vunpack.c.l.b16 %v1048
    %v1064 = vpack.c.b16 %v1061, %v1060
    %v1065 = vpack.c.b16 %v1063, %v1062
    %v1069 = vsel %vm73, %v1044, 0
    %1071 = vmatprep.subr.bf16.mxu0 0
    %1072 = vmatpush1.bf16.msra.mxu0 %v1064
    %1073 = vmatprep.subr.bf16.mxu0 0
    %1074 = vmatpush1.bf16.msra.mxu0 %v1065
    %1075 = vmatprep.subr.bf16.mxu0 0
    %1076 = vmatpush1.bf16.msra.mxu0 0
    %1077 = vmatprep.subr.bf16.mxu0 0
    %1078 = vmatpush1.bf16.msra.mxu0 0
    %1079 = vmatprep.subr.bf16.mxu0 0
    %1080 = vmatpush1.bf16.msra.mxu0 0
    %1081 = vmatprep.subr.bf16.mxu0 0
    %1082 = vmatpush1.bf16.msra.mxu0 0
    %1083 = vmatprep.subr.bf16.mxu0 0
    %1084 = vmatpush1.bf16.msra.mxu0 0
    %1085 = vmatprep.subr.bf16.mxu0 0
    %1086 = vmatpush1.bf16.msra.mxu0 0
    %1087 = vmatprep.subr.bf16.mxu0 0
    %1088 = vmatpush1.bf16.msra.mxu0 0
    %1089 = vmatprep.subr.bf16.mxu0 0
    %1090 = vmatpush1.bf16.msra.mxu0 0
    %1091 = vmatprep.subr.bf16.mxu0 0
    %1092 = vmatpush1.bf16.msra.mxu0 0
    %1093 = vmatprep.subr.bf16.mxu0 0
    %1094 = vmatpush1.bf16.msra.mxu0 0
    %1095 = vmatprep.subr.bf16.mxu0 0
    %1096 = vmatpush1.bf16.msra.mxu0 0
    %1097 = vmatprep.subr.bf16.mxu0 0
    %1098 = vmatpush1.bf16.msra.mxu0 0
    %1099 = vmatprep.subr.bf16.mxu0 0
    %1100 = vmatpush1.bf16.msra.mxu0 0
    %1101 = vmatprep.subr.bf16.mxu0 0
    %1102 = vmatpush1.bf16.msra.mxu0 0
    %1103 = vmatprep.mubr.bf16.mxu0 0
    %1104 = vmatmul.mubr.bf16.gmra.mrb[0].mxu0 %v1069
    %v1105 = vpop.f32.mrb[0].mxu0
    %v1106 = vadd.f32 %v1054, %v1105
    %v1107 = vpop.f32.mrb[0].mxu0
    %v1108 = vpop.f32.mrb[0].mxu0
    %v1109 = vadd.f32 %v1054, %v1108
    %v1110 = vpop.f32.mrb[0].mxu0
    %1111 = vdwg.mxu0
    %v1112 = vadd.f32 %v71, %v1106
    %v1113 = vadd.f32 %v72, %v1109
    %v1114 = vld [vmem:[%s10] sm:$0x1]
    %v1115 = vld [vmem:[%s11] sm:$0x1]
    %v1116 = vsel %vm73, %v1112, 0.0
    %1117 = vadd.xlane.f32.xlu0 %v1116
    %v1118 = vpop.xlane.xlu0 %1117
    %v1119 = vsel %vm73, %v1113, 0.0
    %1120 = vadd.xlane.f32.xlu0 %v1119
    %v1121 = vpop.xlane.xlu0 %1120
    %v1122 = vmul.f32 %v1118, %v84
    %v1123 = vmul.f32 %v1121, %v84
    %v1124 = vsub.f32 %v1112, %v1122
    %v1125 = vsub.f32 %v1113, %v1123
    %v1126 = vmul.f32 %v1124, %v1124
    %v1127 = vmul.f32 %v1125, %v1125
    %v1128 = vsel %vm73, %v1126, 0.0
    %1129 = vadd.xlane.f32.xlu0 %v1128
    %v1130 = vpop.xlane.xlu0 %1129
    %v1131 = vsel %vm73, %v1127, 0.0
    %1132 = vadd.xlane.f32.xlu0 %v1131
    %v1133 = vpop.xlane.xlu0 %1132
    %v1134 = vmul.f32 %v1130, %v84
    %v1135 = vmul.f32 %v1133, %v84
    %v1136 = vadd.f32 %v1134, 1e-05
    %v1137 = vadd.f32 %v1135, 1e-05
    %v1138 = vrsqrt.pop %v1136
    %v1139 = vrsqrt.pop %v1137
    %v1140 = vmul.f32 %v1124, %v1138
    %v1141 = vmul.f32 %v1125, %v1139
    %v1143 = vlaneseq
    %v1144 = vshrl.u32 %v1143, 7
    %v1145 = vsub.s32 0, %v1144
    %v1146 = vrot.slane %v1114, %v1145
    %v1148 = vmul.f32 %v1140, %v1146
    %v1149 = vmul.f32 %v1141, %v1146
    %v1151 = vlaneseq
    %v1152 = vshrl.u32 %v1151, 7
    %v1153 = vsub.s32 0, %v1152
    %v1154 = vrot.slane %v1115, %v1153
    %v1156 = vadd.f32 %v1148, %v1154
    %v1157 = vadd.f32 %v1149, %v1154
    %v1158 = vpack.c.bf16 %v1157, %v1156
    %v1159 = vld [vmem:[%s12] sm:$0xf]
    %v1160 = vld [vmem:[%s12 + $0x4] sm:$0xf]
    %v1161 = vld [vmem:[%s12 + $0x8] sm:$0xf]
    %v1162 = vld [vmem:[%s12 + $0xc] sm:$0xf]
    %v1163 = vld [vmem:[%s13] sm:$0x1]
    %v1165 = vlaneseq
    %v1166 = vshrl.u32 %v1165, 7
    %v1167 = vsub.s32 0, %v1166
    %v1168 = vrot.slane %v1163, %v1167
    %v1174 = vunpack.c.l.b16 %v1159
    %v1175 = vunpack.c.l.b16 %v1160
    %v1176 = vunpack.c.l.b16 %v1161
    %v1177 = vunpack.c.l.b16 %v1162
    %v1178 = vpack.c.b16 %v1175, %v1174
    %v1179 = vpack.c.b16 %v1177, %v1176
    %v1183 = vsel %vm73, %v1158, 0
    %1185 = vmatprep.subr.bf16.mxu0 0
    %1186 = vmatpush1.bf16.msra.mxu0 %v1178
    %1187 = vmatprep.subr.bf16.mxu0 0
    %1188 = vmatpush1.bf16.msra.mxu0 %v1179
    %1189 = vmatprep.subr.bf16.mxu0 0
    %1190 = vmatpush1.bf16.msra.mxu0 0
    %1191 = vmatprep.subr.bf16.mxu0 0
    %1192 = vmatpush1.bf16.msra.mxu0 0
    %1193 = vmatprep.subr.bf16.mxu0 0
    %1194 = vmatpush1.bf16.msra.mxu0 0
    %1195 = vmatprep.subr.bf16.mxu0 0
    %1196 = vmatpush1.bf16.msra.mxu0 0
    %1197 = vmatprep.subr.bf16.mxu0 0
    %1198 = vmatpush1.bf16.msra.mxu0 0
    %1199 = vmatprep.subr.bf16.mxu0 0
    %1200 = vmatpush1.bf16.msra.mxu0 0
    %1201 = vmatprep.subr.bf16.mxu0 0
    %1202 = vmatpush1.bf16.msra.mxu0 0
    %1203 = vmatprep.subr.bf16.mxu0 0
    %1204 = vmatpush1.bf16.msra.mxu0 0
    %1205 = vmatprep.subr.bf16.mxu0 0
    %1206 = vmatpush1.bf16.msra.mxu0 0
    %1207 = vmatprep.subr.bf16.mxu0 0
    %1208 = vmatpush1.bf16.msra.mxu0 0
    %1209 = vmatprep.subr.bf16.mxu0 0
    %1210 = vmatpush1.bf16.msra.mxu0 0
    %1211 = vmatprep.subr.bf16.mxu0 0
    %1212 = vmatpush1.bf16.msra.mxu0 0
    %1213 = vmatprep.subr.bf16.mxu0 0
    %1214 = vmatpush1.bf16.msra.mxu0 0
    %1215 = vmatprep.subr.bf16.mxu0 0
    %1216 = vmatpush1.bf16.msra.mxu0 0
    %1217 = vmatprep.mubr.bf16.mxu0 0
    %1218 = vmatmul.mubr.bf16.gmra.mrb[0].mxu0 %v1183
    %v1219 = vpop.f32.mrb[0].mxu0
    %v1220 = vadd.f32 %v1168, %v1219
    %v1221 = vpop.f32.mrb[0].mxu0
    %v1222 = vpop.f32.mrb[0].mxu0
    %v1223 = vadd.f32 %v1168, %v1222
    %v1224 = vpop.f32.mrb[0].mxu0
    %1225 = vdwg.mxu0
    %v1226 = vmul.f32 %v1220, 0.5
    %v1227 = vmul.f32 %v1223, 0.5
    %v1228 = vmul.f32 %v1220, 0.7978846
    %v1229 = vmul.f32 %v1223, 0.7978846
    %v1230 = vmul.f32 %v1220, 0.044715
    %v1231 = vmul.f32 %v1223, 0.044715
    %v1232 = vmul.f32 %v1230, %v1220
    %v1233 = vmul.f32 %v1231, %v1223
    %v1234 = vadd.f32 %v1232, 1.0
    %v1235 = vadd.f32 %v1233, 1.0
    %v1236 = vmul.f32 %v1228, %v1234
    %v1237 = vmul.f32 %v1229, %v1235
    %v1238 = vtanh.pop %v1236
    %v1239 = vtanh.pop %v1237
    %v1240 = vadd.f32 %v1238, 1.0
    %v1241 = vadd.f32 %v1239, 1.0
    %v1242 = vmul.f32 %v1226, %v1240
    %v1243 = vmul.f32 %v1227, %v1241
    %v1244 = vpack.c.bf16 %v1243, %v1242
    %v1245 = vld [vmem:[%s14] sm:$0xf]
    %v1246 = vld [vmem:[%s14 + $0x4] sm:$0xf]
    %v1247 = vld [vmem:[%s14 + $0x8] sm:$0xf]
    %v1248 = vld [vmem:[%s14 + $0xc] sm:$0xf]
    %v1249 = vld [vmem:[%s14 + $0x10] sm:$0xf]
    %v1250 = vld [vmem:[%s14 + $0x14] sm:$0xf]
    %v1251 = vld [vmem:[%s14 + $0x18] sm:$0xf]
    %v1252 = vld [vmem:[%s14 + $0x1c] sm:$0xf]
    %v1253 = vld [vmem:[%s14 + $0x20] sm:$0xf]
    %v1254 = vld [vmem:[%s14 + $0x24] sm:$0xf]
    %v1255 = vld [vmem:[%s14 + $0x28] sm:$0xf]
    %v1256 = vld [vmem:[%s14 + $0x2c] sm:$0xf]
    %v1257 = vld [vmem:[%s14 + $0x30] sm:$0xf]
    %v1258 = vld [vmem:[%s14 + $0x34] sm:$0xf]
    %v1259 = vld [vmem:[%s14 + $0x38] sm:$0xf]
    %v1260 = vld [vmem:[%s14 + $0x3c] sm:$0xf]
    %v1261 = vld [vmem:[%s15] sm:$0x1]
    %v1263 = vlaneseq
    %v1264 = vshrl.u32 %v1263, 7
    %v1265 = vsub.s32 0, %v1264
    %v1266 = vrot.slane %v1261, %v1265
    %v1284 = vunpack.c.l.b16 %v1245
    %v1285 = vunpack.c.l.b16 %v1246
    %v1286 = vunpack.c.l.b16 %v1247
    %v1287 = vunpack.c.l.b16 %v1248
    %v1288 = vunpack.c.l.b16 %v1249
    %v1289 = vunpack.c.l.b16 %v1250
    %v1290 = vunpack.c.l.b16 %v1251
    %v1291 = vunpack.c.l.b16 %v1252
    %v1292 = vunpack.c.l.b16 %v1253
    %v1293 = vunpack.c.l.b16 %v1254
    %v1294 = vunpack.c.l.b16 %v1255
    %v1295 = vunpack.c.l.b16 %v1256
    %v1296 = vunpack.c.l.b16 %v1257
    %v1297 = vunpack.c.l.b16 %v1258
    %v1298 = vunpack.c.l.b16 %v1259
    %v1299 = vunpack.c.l.b16 %v1260
    %v1300 = vpack.c.b16 %v1285, %v1284
    %v1301 = vpack.c.b16 %v1287, %v1286
    %v1302 = vpack.c.b16 %v1289, %v1288
    %v1303 = vpack.c.b16 %v1291, %v1290
    %v1304 = vpack.c.b16 %v1293, %v1292
    %v1305 = vpack.c.b16 %v1295, %v1294
    %v1306 = vpack.c.b16 %v1297, %v1296
    %v1307 = vpack.c.b16 %v1299, %v1298
    %1316 = vmatprep.subr.bf16.mxu0 0
    %1317 = vmatpush1.bf16.msra.mxu0 %v1300
    %1318 = vmatprep.subr.bf16.mxu0 0
    %1319 = vmatpush1.bf16.msra.mxu0 %v1301
    %1320 = vmatprep.subr.bf16.mxu0 0
    %1321 = vmatpush1.bf16.msra.mxu0 %v1302
    %1322 = vmatprep.subr.bf16.mxu0 0
    %1323 = vmatpush1.bf16.msra.mxu0 %v1303
    %1324 = vmatprep.subr.bf16.mxu0 0
    %1325 = vmatpush1.bf16.msra.mxu0 %v1304
    %1326 = vmatprep.subr.bf16.mxu0 0
    %1327 = vmatpush1.bf16.msra.mxu0 %v1305
    %1328 = vmatprep.subr.bf16.mxu0 0
    %1329 = vmatpush1.bf16.msra.mxu0 %v1306
    %1330 = vmatprep.subr.bf16.mxu0 0
    %1331 = vmatpush1.bf16.msra.mxu0 %v1307
    %1332 = vmatprep.subr.bf16.mxu0 0
    %1333 = vmatpush1.bf16.msra.mxu0 0
    %1334 = vmatprep.subr.bf16.mxu0 0
    %1335 = vmatpush1.bf16.msra.mxu0 0
    %1336 = vmatprep.subr.bf16.mxu0 0
    %1337 = vmatpush1.bf16.msra.mxu0 0
    %1338 = vmatprep.subr.bf16.mxu0 0
    %1339 = vmatpush1.bf16.msra.mxu0 0
    %1340 = vmatprep.subr.bf16.mxu0 0
    %1341 = vmatpush1.bf16.msra.mxu0 0
    %1342 = vmatprep.subr.bf16.mxu0 0
    %1343 = vmatpush1.bf16.msra.mxu0 0
    %1344 = vmatprep.subr.bf16.mxu0 0
    %1345 = vmatpush1.bf16.msra.mxu0 0
    %1346 = vmatprep.subr.bf16.mxu0 0
    %1347 = vmatpush1.bf16.msra.mxu0 0
    %1348 = vmatprep.mubr.bf16.mxu0 0
    %1349 = vmatmul.mubr.bf16.gmra.mrb[0].mxu0 %v1244
    %v1350 = vpop.f32.mrb[0].mxu0
    %v1351 = vadd.f32 %v1266, %v1350
    %v1352 = vpop.f32.mrb[0].mxu0
    %v1353 = vpop.f32.mrb[0].mxu0
    %v1354 = vadd.f32 %v1266, %v1353
    %v1355 = vpop.f32.mrb[0].mxu0
    %1356 = vdwg.mxu0
    %v1357 = vadd.f32 %v1112, %v1351
    %v1358 = vadd.f32 %v1113, %v1354
    %v1359 = vadd.f32 %v1357, %v63
    %v1360 = vadd.f32 %v1358, %v64
    %s1361 = scalar_lea.vmem %s19, 16
    %1362 = vst.msk [vmem:[%s1361] sm:$0xff] %vm73, %v1359
    %1363 = vst.msk [vmem:[%s1361 + $0x8] sm:$0xff] %vm73, %v1360
    %s1364 = scalar_lea.vmem %s4, 1
    %v1365 = vld [vmem:[%s1364] sm:$0x1]
    %s1366 = scalar_lea.vmem %s5, 1
    %v1367 = vld [vmem:[%s1366] sm:$0x1]
    %v1368 = vsel %vm73, %v1359, 0.0
    %1369 = vadd.xlane.f32.xlu0 %v1368
    %v1370 = vpop.xlane.xlu0 %1369
    %v1371 = vsel %vm73, %v1360, 0.0
    %1372 = vadd.xlane.f32.xlu0 %v1371
    %v1373 = vpop.xlane.xlu0 %1372
    %v1374 = vmul.f32 %v1370, %v84
    %v1375 = vmul.f32 %v1373, %v84
    %v1376 = vsub.f32 %v1359, %v1374
    %v1377 = vsub.f32 %v1360, %v1375
    %v1378 = vmul.f32 %v1376, %v1376
    %v1379 = vmul.f32 %v1377, %v1377
    %v1380 = vsel %vm73, %v1378, 0.0
    %1381 = vadd.xlane.f32.xlu0 %v1380
    %v1382 = vpop.xlane.xlu0 %1381
    %v1383 = vsel %vm73, %v1379, 0.0
    %1384 = vadd.xlane.f32.xlu0 %v1383
    %v1385 = vpop.xlane.xlu0 %1384
    %v1386 = vmul.f32 %v1382, %v84
    %v1387 = vmul.f32 %v1385, %v84
    %v1388 = vadd.f32 %v1386, 1e-05
    %v1389 = vadd.f32 %v1387, 1e-05
    %v1390 = vrsqrt.pop %v1388
    %v1391 = vrsqrt.pop %v1389
    %v1392 = vmul.f32 %v1376, %v1390
    %v1393 = vmul.f32 %v1377, %v1391
    %v1395 = vlaneseq
    %v1396 = vshrl.u32 %v1395, 7
    %v1397 = vsub.s32 0, %v1396
    %v1398 = vrot.slane %v1365, %v1397
    %v1400 = vmul.f32 %v1392, %v1398
    %v1401 = vmul.f32 %v1393, %v1398
    %v1403 = vlaneseq
    %v1404 = vshrl.u32 %v1403, 7
    %v1405 = vsub.s32 0, %v1404
    %v1406 = vrot.slane %v1367, %v1405
    %v1408 = vadd.f32 %v1400, %v1406
    %v1409 = vadd.f32 %v1401, %v1406
    %v1410 = vpack.c.bf16 %v1409, %v1408
    %s1411 = scalar_lea.vmem %s6, 16
    %v1412 = vld [vmem:[%s1411] sm:$0xf]
    %v1413 = vld [vmem:[%s1411 + $0x4] sm:$0xf]
    %v1414 = vld [vmem:[%s1411 + $0x8] sm:$0xf]
    %v1415 = vld [vmem:[%s1411 + $0xc] sm:$0xf]
    %s1416 = scalar_lea.vmem %s7, 1
    %v1417 = vld [vmem:[%s1416] sm:$0x1]
    %v1419 = vlaneseq
    %v1420 = vshrl.u32 %v1419, 7
    %v1421 = vsub.s32 0, %v1420
    %v1422 = vrot.slane %v1417, %v1421
    %v1428 = vunpack.c.l.b16 %v1412
    %v1429 = vunpack.c.l.b16 %v1413
    %v1430 = vunpack.c.l.b16 %v1414
    %v1431 = vunpack.c.l.b16 %v1415
    %v1432 = vpack.c.b16 %v1429, %v1428
    %v1433 = vpack.c.b16 %v1431, %v1430
    %v1437 = vsel %vm73, %v1410, 0
    %1439 = vmatprep.subr.bf16.mxu0 0
    %1440 = vmatpush1.bf16.msra.mxu0 %v1432
    %1441 = vmatprep.subr.bf16.mxu0 0
    %1442 = vmatpush1.bf16.msra.mxu0 %v1433
    %1443 = vmatprep.subr.bf16.mxu0 0
    %1444 = vmatpush1.bf16.msra.mxu0 0
    %1445 = vmatprep.subr.bf16.mxu0 0
    %1446 = vmatpush1.bf16.msra.mxu0 0
    %1447 = vmatprep.subr.bf16.mxu0 0
    %1448 = vmatpush1.bf16.msra.mxu0 0
    %1449 = vmatprep.subr.bf16.mxu0 0
    %1450 = vmatpush1.bf16.msra.mxu0 0
    %1451 = vmatprep.subr.bf16.mxu0 0
    %1452 = vmatpush1.bf16.msra.mxu0 0
    %1453 = vmatprep.subr.bf16.mxu0 0
    %1454 = vmatpush1.bf16.msra.mxu0 0
    %1455 = vmatprep.subr.bf16.mxu0 0
    %1456 = vmatpush1.bf16.msra.mxu0 0
    %1457 = vmatprep.subr.bf16.mxu0 0
    %1458 = vmatpush1.bf16.msra.mxu0 0
    %1459 = vmatprep.subr.bf16.mxu0 0
    %1460 = vmatpush1.bf16.msra.mxu0 0
    %1461 = vmatprep.subr.bf16.mxu0 0
    %1462 = vmatpush1.bf16.msra.mxu0 0
    %1463 = vmatprep.subr.bf16.mxu0 0
    %1464 = vmatpush1.bf16.msra.mxu0 0
    %1465 = vmatprep.subr.bf16.mxu0 0
    %1466 = vmatpush1.bf16.msra.mxu0 0
    %1467 = vmatprep.subr.bf16.mxu0 0
    %1468 = vmatpush1.bf16.msra.mxu0 0
    %1469 = vmatprep.subr.bf16.mxu0 0
    %1470 = vmatpush1.bf16.msra.mxu0 0
    %1471 = vmatprep.mubr.bf16.mxu0 0
    %1472 = vmatmul.mubr.bf16.gmra.mrb[0].mxu0 %v1437
    %v1473 = vpop.f32.mrb[0].mxu0
    %v1474 = vadd.f32 %v1422, %v1473
    %v1475 = vpop.f32.mrb[0].mxu0
    %v1476 = vpop.f32.mrb[0].mxu0
    %v1477 = vadd.f32 %v1422, %v1476
    %v1478 = vpop.f32.mrb[0].mxu0
    %1479 = vdwg.mxu0
    %1482 = vrot.lane.b32.xlu0 %v1474, 96
    %v1483 = vpop.permute.xlu0 %1482
    %1484 = vrot.lane.b32.xlu0 %v1477, 96
    %v1485 = vpop.permute.xlu0 %1484
    %v1486 = vsel %vm195, %v1474, 0
    %v1488 = vsel %vm195, %v1477, 0
    %v1490 = vsel %vm195, %v1483, 0
    %v1492 = vsel %vm195, %v1485, 0
    %1494 = vmatprep.subr.mxu0 0.0
    %1495 = vmatpush1.xpose.msra.mxu0 %v1490
    %1496 = vmatprep.subr.mxu0 0.0
    %1497 = vmatpush1.xpose.msra.mxu0 %v1492
    %1498 = vmatprep.subr.mxu0 0.0
    %1499 = vmatpush1.xpose.msra.mxu0 0.0
    %1500 = vmatprep.subr.mxu0 0.0
    %1501 = vmatpush1.xpose.msra.mxu0 0.0
    %1502 = vmatprep.subr.mxu0 0.0
    %1503 = vmatpush1.xpose.msra.mxu0 0.0
    %1504 = vmatprep.subr.mxu0 0.0
    %1505 = vmatpush1.xpose.msra.mxu0 0.0
    %1506 = vmatprep.subr.mxu0 0.0
    %1507 = vmatpush1.xpose.msra.mxu0 0.0
    %1508 = vmatprep.subr.mxu0 0.0
    %1509 = vmatpush1.xpose.msra.mxu0 0.0
    %1510 = vmatprep.subr.mxu0 0.0
    %1511 = vmatpush1.xpose.msra.mxu0 0.0
    %1512 = vmatprep.subr.mxu0 0.0
    %1513 = vmatpush1.xpose.msra.mxu0 0.0
    %1514 = vmatprep.subr.mxu0 0.0
    %1515 = vmatpush1.xpose.msra.mxu0 0.0
    %1516 = vmatprep.subr.mxu0 0.0
    %1517 = vmatpush1.xpose.msra.mxu0 0.0
    %1518 = vmatprep.subr.mxu0 0.0
    %1519 = vmatpush1.xpose.msra.mxu0 0.0
    %1520 = vmatprep.subr.mxu0 0.0
    %1521 = vmatpush1.xpose.msra.mxu0 0.0
    %1522 = vmatprep.subr.mxu0 0.0
    %1523 = vmatpush1.xpose.msra.mxu0 0.0
    %1524 = vmatprep.subr.mxu0 0.0
    %1525 = vmatpush1.xpose.msra.mxu0 0.0
    %1526 = vmatprep.subr.mxu0 0.0
    %1527 = vmatpush1.xpose.msra.mxu0 0.0
    %1528 = vmatprep.subr.mxu0 0.0
    %1529 = vmatpush1.xpose.msra.mxu0 0.0
    %1530 = vmatprep.subr.mxu0 0.0
    %1531 = vmatpush1.xpose.msra.mxu0 0.0
    %1532 = vmatprep.subr.mxu0 0.0
    %1533 = vmatpush1.xpose.msra.mxu0 0.0
    %1534 = vmatprep.subr.mxu0 0.0
    %1535 = vmatpush1.xpose.msra.mxu0 0.0
    %1536 = vmatprep.subr.mxu0 0.0
    %1537 = vmatpush1.xpose.msra.mxu0 0.0
    %1538 = vmatprep.subr.mxu0 0.0
    %1539 = vmatpush1.xpose.msra.mxu0 0.0
    %1540 = vmatprep.subr.mxu0 0.0
    %1541 = vmatpush1.xpose.msra.mxu0 0.0
    %1542 = vmatprep.subr.mxu0 0.0
    %1543 = vmatpush1.xpose.msra.mxu0 0.0
    %1544 = vmatprep.subr.mxu0 0.0
    %1545 = vmatpush1.xpose.msra.mxu0 0.0
    %1546 = vmatprep.subr.mxu0 0.0
    %1547 = vmatpush1.xpose.msra.mxu0 0.0
    %1548 = vmatprep.subr.mxu0 0.0
    %1549 = vmatpush1.xpose.msra.mxu0 0.0
    %1550 = vmatprep.subr.mxu0 0.0
    %1551 = vmatpush1.xpose.msra.mxu0 0.0
    %1552 = vmatprep.subr.mxu0 0.0
    %1553 = vmatpush1.xpose.msra.mxu0 0.0
    %1554 = vmatprep.subr.mxu0 0.0
    %1555 = vmatpush1.xpose.msra.mxu0 0.0
    %1556 = vmatprep.subr.mxu0 0.0
    %1557 = vmatpush1.xpose.msra.mxu0 0.0
    %1558 = vmatprep.mubr.f32.mxu0 0.0
    %1559 = vmatmul.mubr.f32.gmra.mrb[0].mxu0 %v1486
    %v1560 = vpop.f32.mrb[0].mxu0
    %v1561 = vadd.f32 0.0, %v1560
    %v1562 = vpop.f32.mrb[0].mxu0
    %1563 = vmatprep.mubr.f32.mxu0 0.0
    %1564 = vmatmul.mubr.f32.gmra.mrb[0].mxu0 %v1488
    %v1565 = vpop.f32.mrb[0].mxu0
    %v1566 = vadd.f32 0.0, %v1565
    %v1567 = vpop.f32.mrb[0].mxu0
    %1568 = vdwg.mxu0
    %v1569 = vmul.f32 %v1561, 0.35355338
    %v1570 = vmul.f32 %v1566, 0.35355338
    %v1571 = vmul.f32 %v1569, %v65
    %v1572 = vmul.f32 %v1570, %v66
    %v1573 = vadd.f32 %v1571, %v67
    %v1574 = vadd.f32 %v1572, %v68
    %v1575 = vsel %vm285, %v1573, -inf
    %1576 = vmax.xlane.f32.xlu0 %v1575
    %v1577 = vpop.xlane.xlu0 %1576
    %v1578 = vsel %vm285, %v1574, -inf
    %1579 = vmax.xlane.f32.xlu0 %v1578
    %v1580 = vpop.xlane.xlu0 %1579
    %v1581 = vsub.f32 %v1573, %v1577
    %v1582 = vsub.f32 %v1574, %v1580
    %v1583 = vmul.f32 %v1581, 1.442695
    %v1584 = vpow.pop %v1583
    %v1585 = vmul.f32 %v1582, 1.442695
    %v1586 = vpow.pop %v1585
    %v1587 = vsel %vm285, %v1584, 0.0
    %1588 = vadd.xlane.f32.xlu0 %v1587
    %v1589 = vpop.xlane.xlu0 %1588
    %v1590 = vsel %vm285, %v1586, 0.0
    %1591 = vadd.xlane.f32.xlu0 %v1590
    %v1592 = vpop.xlane.xlu0 %1591
    %v1593 = vrcp.pop %v1589
    %v1594 = vrcp.pop %v1592
    %v1595 = vmul.f32 %v1584, %v1593
    %v1596 = vmul.f32 %v1586, %v1594
    %1597 = vrot.lane.b32.xlu0 %v1474, 64
    %v1598 = vpop.permute.xlu0 %1597
    %1599 = vrot.lane.b32.xlu0 %v1477, 64
    %v1600 = vpop.permute.xlu0 %1599
    %v1604 = vsel %vm285, %v1595, 0
    %v1607 = vsel %vm285, %v1596, 0
    %1609 = vmatprep.subr.mxu0 0.0
    %1610 = vmatpush1.msra.mxu0 %v1598
    %1611 = vmatprep.subr.mxu0 0.0
    %1612 = vmatpush1.msra.mxu0 %v1600
    %1613 = vmatprep.subr.mxu0 0.0
    %1614 = vmatpush1.msra.mxu0 0.0
    %1615 = vmatprep.subr.mxu0 0.0
    %1616 = vmatpush1.msra.mxu0 0.0
    %1617 = vmatprep.subr.mxu0 0.0
    %1618 = vmatpush1.msra.mxu0 0.0
    %1619 = vmatprep.subr.mxu0 0.0
    %1620 = vmatpush1.msra.mxu0 0.0
    %1621 = vmatprep.subr.mxu0 0.0
    %1622 = vmatpush1.msra.mxu0 0.0
    %1623 = vmatprep.subr.mxu0 0.0
    %1624 = vmatpush1.msra.mxu0 0.0
    %1625 = vmatprep.subr.mxu0 0.0
    %1626 = vmatpush1.msra.mxu0 0.0
    %1627 = vmatprep.subr.mxu0 0.0
    %1628 = vmatpush1.msra.mxu0 0.0
    %1629 = vmatprep.subr.mxu0 0.0
    %1630 = vmatpush1.msra.mxu0 0.0
    %1631 = vmatprep.subr.mxu0 0.0
    %1632 = vmatpush1.msra.mxu0 0.0
    %1633 = vmatprep.subr.mxu0 0.0
    %1634 = vmatpush1.msra.mxu0 0.0
    %1635 = vmatprep.subr.mxu0 0.0
    %1636 = vmatpush1.msra.mxu0 0.0
    %1637 = vmatprep.subr.mxu0 0.0
    %1638 = vmatpush1.msra.mxu0 0.0
    %1639 = vmatprep.subr.mxu0 0.0
    %1640 = vmatpush1.msra.mxu0 0.0
    %1641 = vmatprep.subr.mxu0 0.0
    %1642 = vmatpush1.msra.mxu0 0.0
    %1643 = vmatprep.subr.mxu0 0.0
    %1644 = vmatpush1.msra.mxu0 0.0
    %1645 = vmatprep.subr.mxu0 0.0
    %1646 = vmatpush1.msra.mxu0 0.0
    %1647 = vmatprep.subr.mxu0 0.0
    %1648 = vmatpush1.msra.mxu0 0.0
    %1649 = vmatprep.subr.mxu0 0.0
    %1650 = vmatpush1.msra.mxu0 0.0
    %1651 = vmatprep.subr.mxu0 0.0
    %1652 = vmatpush1.msra.mxu0 0.0
    %1653 = vmatprep.subr.mxu0 0.0
    %1654 = vmatpush1.msra.mxu0 0.0
    %1655 = vmatprep.subr.mxu0 0.0
    %1656 = vmatpush1.msra.mxu0 0.0
    %1657 = vmatprep.subr.mxu0 0.0
    %1658 = vmatpush1.msra.mxu0 0.0
    %1659 = vmatprep.subr.mxu0 0.0
    %1660 = vmatpush1.msra.mxu0 0.0
    %1661 = vmatprep.subr.mxu0 0.0
    %1662 = vmatpush1.msra.mxu0 0.0
    %1663 = vmatprep.subr.mxu0 0.0
    %1664 = vmatpush1.msra.mxu0 0.0
    %1665 = vmatprep.subr.mxu0 0.0
    %1666 = vmatpush1.msra.mxu0 0.0
    %1667 = vmatprep.subr.mxu0 0.0
    %1668 = vmatpush1.msra.mxu0 0.0
    %1669 = vmatprep.subr.mxu0 0.0
    %1670 = vmatpush1.msra.mxu0 0.0
    %1671 = vmatprep.subr.mxu0 0.0
    %1672 = vmatpush1.msra.mxu0 0.0
    %1673 = vmatprep.mubr.f32.mxu0 0.0
    %1674 = vmatmul.mubr.f32.gmra.mrb[0].mxu0 %v1604
    %v1675 = vpop.f32.mrb[0].mxu0
    %v1676 = vadd.f32 0.0, %v1675
    %v1677 = vpop.f32.mrb[0].mxu0
    %1678 = vmatprep.mubr.f32.mxu0 0.0
    %1679 = vmatmul.mubr.f32.gmra.mrb[0].mxu0 %v1607
    %v1680 = vpop.f32.mrb[0].mxu0
    %v1681 = vadd.f32 0.0, %v1680
    %v1682 = vpop.f32.mrb[0].mxu0
    %1683 = vdwg.mxu0
    %1684 = vrot.lane.b32.xlu0 %v1474, 120
    %v1685 = vpop.permute.xlu0 %1684
    %1686 = vrot.lane.b32.xlu0 %v1477, 120
    %v1687 = vpop.permute.xlu0 %1686
    %1688 = vrot.lane.b32.xlu0 %v1474, 88
    %v1689 = vpop.permute.xlu0 %1688
    %1690 = vrot.lane.b32.xlu0 %v1477, 88
    %v1691 = vpop.permute.xlu0 %1690
    %v1692 = vsel %vm195, %v1685, 0
    %v1694 = vsel %vm195, %v1687, 0
    %v1696 = vsel %vm195, %v1689, 0
    %v1698 = vsel %vm195, %v1691, 0
    %1700 = vmatprep.subr.mxu0 0.0
    %1701 = vmatpush1.xpose.msra.mxu0 %v1696
    %1702 = vmatprep.subr.mxu0 0.0
    %1703 = vmatpush1.xpose.msra.mxu0 %v1698
    %1704 = vmatprep.subr.mxu0 0.0
    %1705 = vmatpush1.xpose.msra.mxu0 0.0
    %1706 = vmatprep.subr.mxu0 0.0
    %1707 = vmatpush1.xpose.msra.mxu0 0.0
    %1708 = vmatprep.subr.mxu0 0.0
    %1709 = vmatpush1.xpose.msra.mxu0 0.0
    %1710 = vmatprep.subr.mxu0 0.0
    %1711 = vmatpush1.xpose.msra.mxu0 0.0
    %1712 = vmatprep.subr.mxu0 0.0
    %1713 = vmatpush1.xpose.msra.mxu0 0.0
    %1714 = vmatprep.subr.mxu0 0.0
    %1715 = vmatpush1.xpose.msra.mxu0 0.0
    %1716 = vmatprep.subr.mxu0 0.0
    %1717 = vmatpush1.xpose.msra.mxu0 0.0
    %1718 = vmatprep.subr.mxu0 0.0
    %1719 = vmatpush1.xpose.msra.mxu0 0.0
    %1720 = vmatprep.subr.mxu0 0.0
    %1721 = vmatpush1.xpose.msra.mxu0 0.0
    %1722 = vmatprep.subr.mxu0 0.0
    %1723 = vmatpush1.xpose.msra.mxu0 0.0
    %1724 = vmatprep.subr.mxu0 0.0
    %1725 = vmatpush1.xpose.msra.mxu0 0.0
    %1726 = vmatprep.subr.mxu0 0.0
    %1727 = vmatpush1.xpose.msra.mxu0 0.0
    %1728 = vmatprep.subr.mxu0 0.0
    %1729 = vmatpush1.xpose.msra.mxu0 0.0
    %1730 = vmatprep.subr.mxu0 0.0
    %1731 = vmatpush1.xpose.msra.mxu0 0.0
    %1732 = vmatprep.subr.mxu0 0.0
    %1733 = vmatpush1.xpose.msra.mxu0 0.0
    %1734 = vmatprep.subr.mxu0 0.0
    %1735 = vmatpush1.xpose.msra.mxu0 0.0
    %1736 = vmatprep.subr.mxu0 0.0
    %1737 = vmatpush1.xpose.msra.mxu0 0.0
    %1738 = vmatprep.subr.mxu0 0.0
    %1739 = vmatpush1.xpose.msra.mxu0 0.0
    %1740 = vmatprep.subr.mxu0 0.0
    %1741 = vmatpush1.xpose.msra.mxu0 0.0
    %1742 = vmatprep.subr.mxu0 0.0
    %1743 = vmatpush1.xpose.msra.mxu0 0.0
    %1744 = vmatprep.subr.mxu0 0.0
    %1745 = vmatpush1.xpose.msra.mxu0 0.0
    %1746 = vmatprep.subr.mxu0 0.0
    %1747 = vmatpush1.xpose.msra.mxu0 0.0
    %1748 = vmatprep.subr.mxu0 0.0
    %1749 = vmatpush1.xpose.msra.mxu0 0.0
    %1750 = vmatprep.subr.mxu0 0.0
    %1751 = vmatpush1.xpose.msra.mxu0 0.0
    %1752 = vmatprep.subr.mxu0 0.0
    %1753 = vmatpush1.xpose.msra.mxu0 0.0
    %1754 = vmatprep.subr.mxu0 0.0
    %1755 = vmatpush1.xpose.msra.mxu0 0.0
    %1756 = vmatprep.subr.mxu0 0.0
    %1757 = vmatpush1.xpose.msra.mxu0 0.0
    %1758 = vmatprep.subr.mxu0 0.0
    %1759 = vmatpush1.xpose.msra.mxu0 0.0
    %1760 = vmatprep.subr.mxu0 0.0
    %1761 = vmatpush1.xpose.msra.mxu0 0.0
    %1762 = vmatprep.subr.mxu0 0.0
    %1763 = vmatpush1.xpose.msra.mxu0 0.0
    %1764 = vmatprep.mubr.f32.mxu0 0.0
    %1765 = vmatmul.mubr.f32.gmra.mrb[0].mxu0 %v1692
    %v1766 = vpop.f32.mrb[0].mxu0
    %v1767 = vadd.f32 0.0, %v1766
    %v1768 = vpop.f32.mrb[0].mxu0
    %1769 = vmatprep.mubr.f32.mxu0 0.0
    %1770 = vmatmul.mubr.f32.gmra.mrb[0].mxu0 %v1694
    %v1771 = vpop.f32.mrb[0].mxu0
    %v1772 = vadd.f32 0.0, %v1771
    %v1773 = vpop.f32.mrb[0].mxu0
    %1774 = vdwg.mxu0
    %v1775 = vmul.f32 %v1767, 0.35355338
    %v1776 = vmul.f32 %v1772, 0.35355338
    %v1777 = vmul.f32 %v1775, %v65
    %v1778 = vmul.f32 %v1776, %v66
    %v1779 = vadd.f32 %v1777, %v67
    %v1780 = vadd.f32 %v1778, %v68
    %v1781 = vsel %vm285, %v1779, -inf
    %1782 = vmax.xlane.f32.xlu0 %v1781
    %v1783 = vpop.xlane.xlu0 %1782
    %v1784 = vsel %vm285, %v1780, -inf
    %1785 = vmax.xlane.f32.xlu0 %v1784
    %v1786 = vpop.xlane.xlu0 %1785
    %v1787 = vsub.f32 %v1779, %v1783
    %v1788 = vsub.f32 %v1780, %v1786
    %v1789 = vmul.f32 %v1787, 1.442695
    %v1790 = vpow.pop %v1789
    %v1791 = vmul.f32 %v1788, 1.442695
    %v1792 = vpow.pop %v1791
    %v1793 = vsel %vm285, %v1790, 0.0
    %1794 = vadd.xlane.f32.xlu0 %v1793
    %v1795 = vpop.xlane.xlu0 %1794
    %v1796 = vsel %vm285, %v1792, 0.0
    %1797 = vadd.xlane.f32.xlu0 %v1796
    %v1798 = vpop.xlane.xlu0 %1797
    %v1799 = vrcp.pop %v1795
    %v1800 = vrcp.pop %v1798
    %v1801 = vmul.f32 %v1790, %v1799
    %v1802 = vmul.f32 %v1792, %v1800
    %1803 = vrot.lane.b32.xlu0 %v1474, 56
    %v1804 = vpop.permute.xlu0 %1803
    %1805 = vrot.lane.b32.xlu0 %v1477, 56
    %v1806 = vpop.permute.xlu0 %1805
    %v1810 = vsel %vm285, %v1801, 0
    %v1813 = vsel %vm285, %v1802, 0
    %1815 = vmatprep.subr.mxu0 0.0
    %1816 = vmatpush1.msra.mxu0 %v1804
    %1817 = vmatprep.subr.mxu0 0.0
    %1818 = vmatpush1.msra.mxu0 %v1806
    %1819 = vmatprep.subr.mxu0 0.0
    %1820 = vmatpush1.msra.mxu0 0.0
    %1821 = vmatprep.subr.mxu0 0.0
    %1822 = vmatpush1.msra.mxu0 0.0
    %1823 = vmatprep.subr.mxu0 0.0
    %1824 = vmatpush1.msra.mxu0 0.0
    %1825 = vmatprep.subr.mxu0 0.0
    %1826 = vmatpush1.msra.mxu0 0.0
    %1827 = vmatprep.subr.mxu0 0.0
    %1828 = vmatpush1.msra.mxu0 0.0
    %1829 = vmatprep.subr.mxu0 0.0
    %1830 = vmatpush1.msra.mxu0 0.0
    %1831 = vmatprep.subr.mxu0 0.0
    %1832 = vmatpush1.msra.mxu0 0.0
    %1833 = vmatprep.subr.mxu0 0.0
    %1834 = vmatpush1.msra.mxu0 0.0
    %1835 = vmatprep.subr.mxu0 0.0
    %1836 = vmatpush1.msra.mxu0 0.0
    %1837 = vmatprep.subr.mxu0 0.0
    %1838 = vmatpush1.msra.mxu0 0.0
    %1839 = vmatprep.subr.mxu0 0.0
    %1840 = vmatpush1.msra.mxu0 0.0
    %1841 = vmatprep.subr.mxu0 0.0
    %1842 = vmatpush1.msra.mxu0 0.0
    %1843 = vmatprep.subr.mxu0 0.0
    %1844 = vmatpush1.msra.mxu0 0.0
    %1845 = vmatprep.subr.mxu0 0.0
    %1846 = vmatpush1.msra.mxu0 0.0
    %1847 = vmatprep.subr.mxu0 0.0
    %1848 = vmatpush1.msra.mxu0 0.0
    %1849 = vmatprep.subr.mxu0 0.0
    %1850 = vmatpush1.msra.mxu0 0.0
    %1851 = vmatprep.subr.mxu0 0.0
    %1852 = vmatpush1.msra.mxu0 0.0
    %1853 = vmatprep.subr.mxu0 0.0
    %1854 = vmatpush1.msra.mxu0 0.0
    %1855 = vmatprep.subr.mxu0 0.0
    %1856 = vmatpush1.msra.mxu0 0.0
    %1857 = vmatprep.subr.mxu0 0.0
    %1858 = vmatpush1.msra.mxu0 0.0
    %1859 = vmatprep.subr.mxu0 0.0
    %1860 = vmatpush1.msra.mxu0 0.0
    %1861 = vmatprep.subr.mxu0 0.0
    %1862 = vmatpush1.msra.mxu0 0.0
    %1863 = vmatprep.subr.mxu0 0.0
    %1864 = vmatpush1.msra.mxu0 0.0
    %1865 = vmatprep.subr.mxu0 0.0
    %1866 = vmatpush1.msra.mxu0 0.0
    %1867 = vmatprep.subr.mxu0 0.0
    %1868 = vmatpush1.msra.mxu0 0.0
    %1869 = vmatprep.subr.mxu0 0.0
    %1870 = vmatpush1.msra.mxu0 0.0
    %1871 = vmatprep.subr.mxu0 0.0
    %1872 = vmatpush1.msra.mxu0 0.0
    %1873 = vmatprep.subr.mxu0 0.0
    %1874 = vmatpush1.msra.mxu0 0.0
    %1875 = vmatprep.subr.mxu0 0.0
    %1876 = vmatpush1.msra.mxu0 0.0
    %1877 = vmatprep.subr.mxu0 0.0
    %1878 = vmatpush1.msra.mxu0 0.0
    %1879 = vmatprep.mubr.f32.mxu0 0.0
    %1880 = vmatmul.mubr.f32.gmra.mrb[0].mxu0 %v1810
    %v1881 = vpop.f32.mrb[0].mxu0
    %v1882 = vadd.f32 0.0, %v1881
    %v1883 = vpop.f32.mrb[0].mxu0
    %1884 = vmatprep.mubr.f32.mxu0 0.0
    %1885 = vmatmul.mubr.f32.gmra.mrb[0].mxu0 %v1813
    %v1886 = vpop.f32.mrb[0].mxu0
    %v1887 = vadd.f32 0.0, %v1886
    %v1888 = vpop.f32.mrb[0].mxu0
    %1889 = vdwg.mxu0
    %1890 = vrot.lane.b32.xlu0 %v1474, 112
    %v1891 = vpop.permute.xlu0 %1890
    %1892 = vrot.lane.b32.xlu0 %v1477, 112
    %v1893 = vpop.permute.xlu0 %1892
    %1894 = vrot.lane.b32.xlu0 %v1474, 80
    %v1895 = vpop.permute.xlu0 %1894
    %1896 = vrot.lane.b32.xlu0 %v1477, 80
    %v1897 = vpop.permute.xlu0 %1896
    %v1898 = vsel %vm195, %v1891, 0
    %v1900 = vsel %vm195, %v1893, 0
    %v1902 = vsel %vm195, %v1895, 0
    %v1904 = vsel %vm195, %v1897, 0
    %1906 = vmatprep.subr.mxu0 0.0
    %1907 = vmatpush1.xpose.msra.mxu0 %v1902
    %1908 = vmatprep.subr.mxu0 0.0
    %1909 = vmatpush1.xpose.msra.mxu0 %v1904
    %1910 = vmatprep.subr.mxu0 0.0
    %1911 = vmatpush1.xpose.msra.mxu0 0.0
    %1912 = vmatprep.subr.mxu0 0.0
    %1913 = vmatpush1.xpose.msra.mxu0 0.0
    %1914 = vmatprep.subr.mxu0 0.0
    %1915 = vmatpush1.xpose.msra.mxu0 0.0
    %1916 = vmatprep.subr.mxu0 0.0
    %1917 = vmatpush1.xpose.msra.mxu0 0.0
    %1918 = vmatprep.subr.mxu0 0.0
    %1919 = vmatpush1.xpose.msra.mxu0 0.0
    %1920 = vmatprep.subr.mxu0 0.0
    %1921 = vmatpush1.xpose.msra.mxu0 0.0
    %1922 = vmatprep.subr.mxu0 0.0
    %1923 = vmatpush1.xpose.msra.mxu0 0.0
    %1924 = vmatprep.subr.mxu0 0.0
    %1925 = vmatpush1.xpose.msra.mxu0 0.0
    %1926 = vmatprep.subr.mxu0 0.0
    %1927 = vmatpush1.xpose.msra.mxu0 0.0
    %1928 = vmatprep.subr.mxu0 0.0
    %1929 = vmatpush1.xpose.msra.mxu0 0.0
    %1930 = vmatprep.subr.mxu0 0.0
    %1931 = vmatpush1.xpose.msra.mxu0 0.0
    %1932 = vmatprep.subr.mxu0 0.0
    %1933 = vmatpush1.xpose.msra.mxu0 0.0
    %1934 = vmatprep.subr.mxu0 0.0
    %1935 = vmatpush1.xpose.msra.mxu0 0.0
    %1936 = vmatprep.subr.mxu0 0.0
    %1937 = vmatpush1.xpose.msra.mxu0 0.0
    %1938 = vmatprep.subr.mxu0 0.0
    %1939 = vmatpush1.xpose.msra.mxu0 0.0
    %1940 = vmatprep.subr.mxu0 0.0
    %1941 = vmatpush1.xpose.msra.mxu0 0.0
    %1942 = vmatprep.subr.mxu0 0.0
    %1943 = vmatpush1.xpose.msra.mxu0 0.0
    %1944 = vmatprep.subr.mxu0 0.0
    %1945 = vmatpush1.xpose.msra.mxu0 0.0
    %1946 = vmatprep.subr.mxu0 0.0
    %1947 = vmatpush1.xpose.msra.mxu0 0.0
    %1948 = vmatprep.subr.mxu0 0.0
    %1949 = vmatpush1.xpose.msra.mxu0 0.0
    %1950 = vmatprep.subr.mxu0 0.0
    %1951 = vmatpush1.xpose.msra.mxu0 0.0
    %1952 = vmatprep.subr.mxu0 0.0
    %1953 = vmatpush1.xpose.msra.mxu0 0.0
    %1954 = vmatprep.subr.mxu0 0.0
    %1955 = vmatpush1.xpose.msra.mxu0 0.0
    %1956 = vmatprep.subr.mxu0 0.0
    %1957 = vmatpush1.xpose.msra.mxu0 0.0
    %1958 = vmatprep.subr.mxu0 0.0
    %1959 = vmatpush1.xpose.msra.mxu0 0.0
    %1960 = vmatprep.subr.mxu0 0.0
    %1961 = vmatpush1.xpose.msra.mxu0 0.0
    %1962 = vmatprep.subr.mxu0 0.0
    %1963 = vmatpush1.xpose.msra.mxu0 0.0
    %1964 = vmatprep.subr.mxu0 0.0
    %1965 = vmatpush1.xpose.msra.mxu0 0.0
    %1966 = vmatprep.subr.mxu0 0.0
    %1967 = vmatpush1.xpose.msra.mxu0 0.0
    %1968 = vmatprep.subr.mxu0 0.0
    %1969 = vmatpush1.xpose.msra.mxu0 0.0
    %1970 = vmatprep.mubr.f32.mxu0 0.0
    %1971 = vmatmul.mubr.f32.gmra.mrb[0].mxu0 %v1898
    %v1972 = vpop.f32.mrb[0].mxu0
    %v1973 = vadd.f32 0.0, %v1972
    %v1974 = vpop.f32.mrb[0].mxu0
    %1975 = vmatprep.mubr.f32.mxu0 0.0
    %1976 = vmatmul.mubr.f32.gmra.mrb[0].mxu0 %v1900
    %v1977 = vpop.f32.mrb[0].mxu0
    %v1978 = vadd.f32 0.0, %v1977
    %v1979 = vpop.f32.mrb[0].mxu0
    %1980 = vdwg.mxu0
    %v1981 = vmul.f32 %v1973, 0.35355338
    %v1982 = vmul.f32 %v1978, 0.35355338
    %v1983 = vmul.f32 %v1981, %v65
    %v1984 = vmul.f32 %v1982, %v66
    %v1985 = vadd.f32 %v1983, %v67
    %v1986 = vadd.f32 %v1984, %v68
    %v1987 = vsel %vm285, %v1985, -inf
    %1988 = vmax.xlane.f32.xlu0 %v1987
    %v1989 = vpop.xlane.xlu0 %1988
    %v1990 = vsel %vm285, %v1986, -inf
    %1991 = vmax.xlane.f32.xlu0 %v1990
    %v1992 = vpop.xlane.xlu0 %1991
    %v1993 = vsub.f32 %v1985, %v1989
    %v1994 = vsub.f32 %v1986, %v1992
    %v1995 = vmul.f32 %v1993, 1.442695
    %v1996 = vpow.pop %v1995
    %v1997 = vmul.f32 %v1994, 1.442695
    %v1998 = vpow.pop %v1997
    %v1999 = vsel %vm285, %v1996, 0.0
    %2000 = vadd.xlane.f32.xlu0 %v1999
    %v2001 = vpop.xlane.xlu0 %2000
    %v2002 = vsel %vm285, %v1998, 0.0
    %2003 = vadd.xlane.f32.xlu0 %v2002
    %v2004 = vpop.xlane.xlu0 %2003
    %v2005 = vrcp.pop %v2001
    %v2006 = vrcp.pop %v2004
    %v2007 = vmul.f32 %v1996, %v2005
    %v2008 = vmul.f32 %v1998, %v2006
    %2009 = vrot.lane.b32.xlu0 %v1474, 48
    %v2010 = vpop.permute.xlu0 %2009
    %2011 = vrot.lane.b32.xlu0 %v1477, 48
    %v2012 = vpop.permute.xlu0 %2011
    %v2016 = vsel %vm285, %v2007, 0
    %v2019 = vsel %vm285, %v2008, 0
    %2021 = vmatprep.subr.mxu0 0.0
    %2022 = vmatpush1.msra.mxu0 %v2010
    %2023 = vmatprep.subr.mxu0 0.0
    %2024 = vmatpush1.msra.mxu0 %v2012
    %2025 = vmatprep.subr.mxu0 0.0
    %2026 = vmatpush1.msra.mxu0 0.0
    %2027 = vmatprep.subr.mxu0 0.0
    %2028 = vmatpush1.msra.mxu0 0.0
    %2029 = vmatprep.subr.mxu0 0.0
    %2030 = vmatpush1.msra.mxu0 0.0
    %2031 = vmatprep.subr.mxu0 0.0
    %2032 = vmatpush1.msra.mxu0 0.0
    %2033 = vmatprep.subr.mxu0 0.0
    %2034 = vmatpush1.msra.mxu0 0.0
    %2035 = vmatprep.subr.mxu0 0.0
    %2036 = vmatpush1.msra.mxu0 0.0
    %2037 = vmatprep.subr.mxu0 0.0
    %2038 = vmatpush1.msra.mxu0 0.0
    %2039 = vmatprep.subr.mxu0 0.0
    %2040 = vmatpush1.msra.mxu0 0.0
    %2041 = vmatprep.subr.mxu0 0.0
    %2042 = vmatpush1.msra.mxu0 0.0
    %2043 = vmatprep.subr.mxu0 0.0
    %2044 = vmatpush1.msra.mxu0 0.0
    %2045 = vmatprep.subr.mxu0 0.0
    %2046 = vmatpush1.msra.mxu0 0.0
    %2047 = vmatprep.subr.mxu0 0.0
    %2048 = vmatpush1.msra.mxu0 0.0
    %2049 = vmatprep.subr.mxu0 0.0
    %2050 = vmatpush1.msra.mxu0 0.0
    %2051 = vmatprep.subr.mxu0 0.0
    %2052 = vmatpush1.msra.mxu0 0.0
    %2053 = vmatprep.subr.mxu0 0.0
    %2054 = vmatpush1.msra.mxu0 0.0
    %2055 = vmatprep.subr.mxu0 0.0
    %2056 = vmatpush1.msra.mxu0 0.0
    %2057 = vmatprep.subr.mxu0 0.0
    %2058 = vmatpush1.msra.mxu0 0.0
    %2059 = vmatprep.subr.mxu0 0.0
    %2060 = vmatpush1.msra.mxu0 0.0
    %2061 = vmatprep.subr.mxu0 0.0
    %2062 = vmatpush1.msra.mxu0 0.0
    %2063 = vmatprep.subr.mxu0 0.0
    %2064 = vmatpush1.msra.mxu0 0.0
    %2065 = vmatprep.subr.mxu0 0.0
    %2066 = vmatpush1.msra.mxu0 0.0
    %2067 = vmatprep.subr.mxu0 0.0
    %2068 = vmatpush1.msra.mxu0 0.0
    %2069 = vmatprep.subr.mxu0 0.0
    %2070 = vmatpush1.msra.mxu0 0.0
    %2071 = vmatprep.subr.mxu0 0.0
    %2072 = vmatpush1.msra.mxu0 0.0
    %2073 = vmatprep.subr.mxu0 0.0
    %2074 = vmatpush1.msra.mxu0 0.0
    %2075 = vmatprep.subr.mxu0 0.0
    %2076 = vmatpush1.msra.mxu0 0.0
    %2077 = vmatprep.subr.mxu0 0.0
    %2078 = vmatpush1.msra.mxu0 0.0
    %2079 = vmatprep.subr.mxu0 0.0
    %2080 = vmatpush1.msra.mxu0 0.0
    %2081 = vmatprep.subr.mxu0 0.0
    %2082 = vmatpush1.msra.mxu0 0.0
    %2083 = vmatprep.subr.mxu0 0.0
    %2084 = vmatpush1.msra.mxu0 0.0
    %2085 = vmatprep.mubr.f32.mxu0 0.0
    %2086 = vmatmul.mubr.f32.gmra.mrb[0].mxu0 %v2016
    %v2087 = vpop.f32.mrb[0].mxu0
    %v2088 = vadd.f32 0.0, %v2087
    %v2089 = vpop.f32.mrb[0].mxu0
    %2090 = vmatprep.mubr.f32.mxu0 0.0
    %2091 = vmatmul.mubr.f32.gmra.mrb[0].mxu0 %v2019
    %v2092 = vpop.f32.mrb[0].mxu0
    %v2093 = vadd.f32 0.0, %v2092
    %v2094 = vpop.f32.mrb[0].mxu0
    %2095 = vdwg.mxu0
    %2096 = vrot.lane.b32.xlu0 %v1474, 104
    %v2097 = vpop.permute.xlu0 %2096
    %2098 = vrot.lane.b32.xlu0 %v1477, 104
    %v2099 = vpop.permute.xlu0 %2098
    %2100 = vrot.lane.b32.xlu0 %v1474, 72
    %v2101 = vpop.permute.xlu0 %2100
    %2102 = vrot.lane.b32.xlu0 %v1477, 72
    %v2103 = vpop.permute.xlu0 %2102
    %v2104 = vsel %vm195, %v2097, 0
    %v2106 = vsel %vm195, %v2099, 0
    %v2108 = vsel %vm195, %v2101, 0
    %v2110 = vsel %vm195, %v2103, 0
    %2112 = vmatprep.subr.mxu0 0.0
    %2113 = vmatpush1.xpose.msra.mxu0 %v2108
    %2114 = vmatprep.subr.mxu0 0.0
    %2115 = vmatpush1.xpose.msra.mxu0 %v2110
    %2116 = vmatprep.subr.mxu0 0.0
    %2117 = vmatpush1.xpose.msra.mxu0 0.0
    %2118 = vmatprep.subr.mxu0 0.0
    %2119 = vmatpush1.xpose.msra.mxu0 0.0
    %2120 = vmatprep.subr.mxu0 0.0
    %2121 = vmatpush1.xpose.msra.mxu0 0.0
    %2122 = vmatprep.subr.mxu0 0.0
    %2123 = vmatpush1.xpose.msra.mxu0 0.0
    %2124 = vmatprep.subr.mxu0 0.0
    %2125 = vmatpush1.xpose.msra.mxu0 0.0
    %2126 = vmatprep.subr.mxu0 0.0
    %2127 = vmatpush1.xpose.msra.mxu0 0.0
    %2128 = vmatprep.subr.mxu0 0.0
    %2129 = vmatpush1.xpose.msra.mxu0 0.0
    %2130 = vmatprep.subr.mxu0 0.0
    %2131 = vmatpush1.xpose.msra.mxu0 0.0
    %2132 = vmatprep.subr.mxu0 0.0
    %2133 = vmatpush1.xpose.msra.mxu0 0.0
    %2134 = vmatprep.subr.mxu0 0.0
    %2135 = vmatpush1.xpose.msra.mxu0 0.0
    %2136 = vmatprep.subr.mxu0 0.0
    %2137 = vmatpush1.xpose.msra.mxu0 0.0
    %2138 = vmatprep.subr.mxu0 0.0
    %2139 = vmatpush1.xpose.msra.mxu0 0.0
    %2140 = vmatprep.subr.mxu0 0.0
    %2141 = vmatpush1.xpose.msra.mxu0 0.0
    %2142 = vmatprep.subr.mxu0 0.0
    %2143 = vmatpush1.xpose.msra.mxu0 0.0
    %2144 = vmatprep.subr.mxu0 0.0
    %2145 = vmatpush1.xpose.msra.mxu0 0.0
    %2146 = vmatprep.subr.mxu0 0.0
    %2147 = vmatpush1.xpose.msra.mxu0 0.0
    %2148 = vmatprep.subr.mxu0 0.0
    %2149 = vmatpush1.xpose.msra.mxu0 0.0
    %2150 = vmatprep.subr.mxu0 0.0
    %2151 = vmatpush1.xpose.msra.mxu0 0.0
    %2152 = vmatprep.subr.mxu0 0.0
    %2153 = vmatpush1.xpose.msra.mxu0 0.0
    %2154 = vmatprep.subr.mxu0 0.0
    %2155 = vmatpush1.xpose.msra.mxu0 0.0
    %2156 = vmatprep.subr.mxu0 0.0
    %2157 = vmatpush1.xpose.msra.mxu0 0.0
    %2158 = vmatprep.subr.mxu0 0.0
    %2159 = vmatpush1.xpose.msra.mxu0 0.0
    %2160 = vmatprep.subr.mxu0 0.0
    %2161 = vmatpush1.xpose.msra.mxu0 0.0
    %2162 = vmatprep.subr.mxu0 0.0
    %2163 = vmatpush1.xpose.msra.mxu0 0.0
    %2164 = vmatprep.subr.mxu0 0.0
    %2165 = vmatpush1.xpose.msra.mxu0 0.0
    %2166 = vmatprep.subr.mxu0 0.0
    %2167 = vmatpush1.xpose.msra.mxu0 0.0
    %2168 = vmatprep.subr.mxu0 0.0
    %2169 = vmatpush1.xpose.msra.mxu0 0.0
    %2170 = vmatprep.subr.mxu0 0.0
    %2171 = vmatpush1.xpose.msra.mxu0 0.0
    %2172 = vmatprep.subr.mxu0 0.0
    %2173 = vmatpush1.xpose.msra.mxu0 0.0
    %2174 = vmatprep.subr.mxu0 0.0
    %2175 = vmatpush1.xpose.msra.mxu0 0.0
    %2176 = vmatprep.mubr.f32.mxu0 0.0
    %2177 = vmatmul.mubr.f32.gmra.mrb[0].mxu0 %v2104
    %v2178 = vpop.f32.mrb[0].mxu0
    %v2179 = vadd.f32 0.0, %v2178
    %v2180 = vpop.f32.mrb[0].mxu0
    %2181 = vmatprep.mubr.f32.mxu0 0.0
    %2182 = vmatmul.mubr.f32.gmra.mrb[0].mxu0 %v2106
    %v2183 = vpop.f32.mrb[0].mxu0
    %v2184 = vadd.f32 0.0, %v2183
    %v2185 = vpop.f32.mrb[0].mxu0
    %2186 = vdwg.mxu0
    %v2187 = vmul.f32 %v2179, 0.35355338
    %v2188 = vmul.f32 %v2184, 0.35355338
    %v2189 = vmul.f32 %v2187, %v65
    %v2190 = vmul.f32 %v2188, %v66
    %v2191 = vadd.f32 %v2189, %v67
    %v2192 = vadd.f32 %v2190, %v68
    %v2193 = vsel %vm285, %v2191, -inf
    %2194 = vmax.xlane.f32.xlu0 %v2193
    %v2195 = vpop.xlane.xlu0 %2194
    %v2196 = vsel %vm285, %v2192, -inf
    %2197 = vmax.xlane.f32.xlu0 %v2196
    %v2198 = vpop.xlane.xlu0 %2197
    %v2199 = vsub.f32 %v2191, %v2195
    %v2200 = vsub.f32 %v2192, %v2198
    %v2201 = vmul.f32 %v2199, 1.442695
    %v2202 = vpow.pop %v2201
    %v2203 = vmul.f32 %v2200, 1.442695
    %v2204 = vpow.pop %v2203
    %v2205 = vsel %vm285, %v2202, 0.0
    %2206 = vadd.xlane.f32.xlu0 %v2205
    %v2207 = vpop.xlane.xlu0 %2206
    %v2208 = vsel %vm285, %v2204, 0.0
    %2209 = vadd.xlane.f32.xlu0 %v2208
    %v2210 = vpop.xlane.xlu0 %2209
    %v2211 = vrcp.pop %v2207
    %v2212 = vrcp.pop %v2210
    %v2213 = vmul.f32 %v2202, %v2211
    %v2214 = vmul.f32 %v2204, %v2212
    %2215 = vrot.lane.b32.xlu0 %v1474, 40
    %v2216 = vpop.permute.xlu0 %2215
    %2217 = vrot.lane.b32.xlu0 %v1477, 40
    %v2218 = vpop.permute.xlu0 %2217
    %v2222 = vsel %vm285, %v2213, 0
    %v2225 = vsel %vm285, %v2214, 0
    %2227 = vmatprep.subr.mxu0 0.0
    %2228 = vmatpush1.msra.mxu0 %v2216
    %2229 = vmatprep.subr.mxu0 0.0
    %2230 = vmatpush1.msra.mxu0 %v2218
    %2231 = vmatprep.subr.mxu0 0.0
    %2232 = vmatpush1.msra.mxu0 0.0
    %2233 = vmatprep.subr.mxu0 0.0
    %2234 = vmatpush1.msra.mxu0 0.0
    %2235 = vmatprep.subr.mxu0 0.0
    %2236 = vmatpush1.msra.mxu0 0.0
    %2237 = vmatprep.subr.mxu0 0.0
    %2238 = vmatpush1.msra.mxu0 0.0
    %2239 = vmatprep.subr.mxu0 0.0
    %2240 = vmatpush1.msra.mxu0 0.0
    %2241 = vmatprep.subr.mxu0 0.0
    %2242 = vmatpush1.msra.mxu0 0.0
    %2243 = vmatprep.subr.mxu0 0.0
    %2244 = vmatpush1.msra.mxu0 0.0
    %2245 = vmatprep.subr.mxu0 0.0
    %2246 = vmatpush1.msra.mxu0 0.0
    %2247 = vmatprep.subr.mxu0 0.0
    %2248 = vmatpush1.msra.mxu0 0.0
    %2249 = vmatprep.subr.mxu0 0.0
    %2250 = vmatpush1.msra.mxu0 0.0
    %2251 = vmatprep.subr.mxu0 0.0
    %2252 = vmatpush1.msra.mxu0 0.0
    %2253 = vmatprep.subr.mxu0 0.0
    %2254 = vmatpush1.msra.mxu0 0.0
    %2255 = vmatprep.subr.mxu0 0.0
    %2256 = vmatpush1.msra.mxu0 0.0
    %2257 = vmatprep.subr.mxu0 0.0
    %2258 = vmatpush1.msra.mxu0 0.0
    %2259 = vmatprep.subr.mxu0 0.0
    %2260 = vmatpush1.msra.mxu0 0.0
    %2261 = vmatprep.subr.mxu0 0.0
    %2262 = vmatpush1.msra.mxu0 0.0
    %2263 = vmatprep.subr.mxu0 0.0
    %2264 = vmatpush1.msra.mxu0 0.0
    %2265 = vmatprep.subr.mxu0 0.0
    %2266 = vmatpush1.msra.mxu0 0.0
    %2267 = vmatprep.subr.mxu0 0.0
    %2268 = vmatpush1.msra.mxu0 0.0
    %2269 = vmatprep.subr.mxu0 0.0
    %2270 = vmatpush1.msra.mxu0 0.0
    %2271 = vmatprep.subr.mxu0 0.0
    %2272 = vmatpush1.msra.mxu0 0.0
    %2273 = vmatprep.subr.mxu0 0.0
    %2274 = vmatpush1.msra.mxu0 0.0
    %2275 = vmatprep.subr.mxu0 0.0
    %2276 = vmatpush1.msra.mxu0 0.0
    %2277 = vmatprep.subr.mxu0 0.0
    %2278 = vmatpush1.msra.mxu0 0.0
    %2279 = vmatprep.subr.mxu0 0.0
    %2280 = vmatpush1.msra.mxu0 0.0
    %2281 = vmatprep.subr.mxu0 0.0
    %2282 = vmatpush1.msra.mxu0 0.0
    %2283 = vmatprep.subr.mxu0 0.0
    %2284 = vmatpush1.msra.mxu0 0.0
    %2285 = vmatprep.subr.mxu0 0.0
    %2286 = vmatpush1.msra.mxu0 0.0
    %2287 = vmatprep.subr.mxu0 0.0
    %2288 = vmatpush1.msra.mxu0 0.0
    %2289 = vmatprep.subr.mxu0 0.0
    %2290 = vmatpush1.msra.mxu0 0.0
    %2291 = vmatprep.mubr.f32.mxu0 0.0
    %2292 = vmatmul.mubr.f32.gmra.mrb[0].mxu0 %v2222
    %v2293 = vpop.f32.mrb[0].mxu0
    %v2294 = vadd.f32 0.0, %v2293
    %v2295 = vpop.f32.mrb[0].mxu0
    %2296 = vmatprep.mubr.f32.mxu0 0.0
    %2297 = vmatmul.mubr.f32.gmra.mrb[0].mxu0 %v2225
    %v2298 = vpop.f32.mrb[0].mxu0
    %v2299 = vadd.f32 0.0, %v2298
    %v2300 = vpop.f32.mrb[0].mxu0
    %2301 = vdwg.mxu0
    %2304 = vrot.lane.b32.xlu0 %v1882, 8
    %v2305 = vpop.permute.xlu0 %2304
    %2306 = vrot.lane.b32.xlu0 %v1887, 8
    %v2307 = vpop.permute.xlu0 %2306
    %2312 = vrot.lane.b32.xlu0 %v2088, 16
    %v2313 = vpop.permute.xlu0 %2312
    %2314 = vrot.lane.b32.xlu0 %v2093, 16
    %v2315 = vpop.permute.xlu0 %2314
    %2320 = vrot.lane.b32.xlu0 %v2294, 24
    %v2321 = vpop.permute.xlu0 %2320
    %2322 = vrot.lane.b32.xlu0 %v2299, 24
    %v2323 = vpop.permute.xlu0 %2322
    %v2326 = vsel %vm195, %v1676, %v2305
    %v2327 = vsel %vm195, %v1681, %v2307
    %v2328 = vsel %vm285, %v2326, %v2313
    %v2329 = vsel %vm285, %v2327, %v2315
    %v2330 = vsel %vm1041, %v2328, %v2321
    %v2331 = vsel %vm1041, %v2329, %v2323
    %v2332 = vpack.c.bf16 %v2331, %v2330
    %s2333 = scalar_lea.vmem %s8, 16
    %v2334 = vld [vmem:[%s2333] sm:$0xf]
    %v2335 = vld [vmem:[%s2333 + $0x4] sm:$0xf]
    %v2336 = vld [vmem:[%s2333 + $0x8] sm:$0xf]
    %v2337 = vld [vmem:[%s2333 + $0xc] sm:$0xf]
    %s2338 = scalar_lea.vmem %s9, 1
    %v2339 = vld [vmem:[%s2338] sm:$0x1]
    %v2341 = vlaneseq
    %v2342 = vshrl.u32 %v2341, 7
    %v2343 = vsub.s32 0, %v2342
    %v2344 = vrot.slane %v2339, %v2343
    %v2350 = vunpack.c.l.b16 %v2334
    %v2351 = vunpack.c.l.b16 %v2335
    %v2352 = vunpack.c.l.b16 %v2336
    %v2353 = vunpack.c.l.b16 %v2337
    %v2354 = vpack.c.b16 %v2351, %v2350
    %v2355 = vpack.c.b16 %v2353, %v2352
    %v2359 = vsel %vm73, %v2332, 0
    %2361 = vmatprep.subr.bf16.mxu0 0
    %2362 = vmatpush1.bf16.msra.mxu0 %v2354
    %2363 = vmatprep.subr.bf16.mxu0 0
    %2364 = vmatpush1.bf16.msra.mxu0 %v2355
    %2365 = vmatprep.subr.bf16.mxu0 0
    %2366 = vmatpush1.bf16.msra.mxu0 0
    %2367 = vmatprep.subr.bf16.mxu0 0
    %2368 = vmatpush1.bf16.msra.mxu0 0
    %2369 = vmatprep.subr.bf16.mxu0 0
    %2370 = vmatpush1.bf16.msra.mxu0 0
    %2371 = vmatprep.subr.bf16.mxu0 0
    %2372 = vmatpush1.bf16.msra.mxu0 0
    %2373 = vmatprep.subr.bf16.mxu0 0
    %2374 = vmatpush1.bf16.msra.mxu0 0
    %2375 = vmatprep.subr.bf16.mxu0 0
    %2376 = vmatpush1.bf16.msra.mxu0 0
    %2377 = vmatprep.subr.bf16.mxu0 0
    %2378 = vmatpush1.bf16.msra.mxu0 0
    %2379 = vmatprep.subr.bf16.mxu0 0
    %2380 = vmatpush1.bf16.msra.mxu0 0
    %2381 = vmatprep.subr.bf16.mxu0 0
    %2382 = vmatpush1.bf16.msra.mxu0 0
    %2383 = vmatprep.subr.bf16.mxu0 0
    %2384 = vmatpush1.bf16.msra.mxu0 0
    %2385 = vmatprep.subr.bf16.mxu0 0
    %2386 = vmatpush1.bf16.msra.mxu0 0
    %2387 = vmatprep.subr.bf16.mxu0 0
    %2388 = vmatpush1.bf16.msra.mxu0 0
    %2389 = vmatprep.subr.bf16.mxu0 0
    %2390 = vmatpush1.bf16.msra.mxu0 0
    %2391 = vmatprep.subr.bf16.mxu0 0
    %2392 = vmatpush1.bf16.msra.mxu0 0
    %2393 = vmatprep.mubr.bf16.mxu0 0
    %2394 = vmatmul.mubr.bf16.gmra.mrb[0].mxu0 %v2359
    %v2395 = vpop.f32.mrb[0].mxu0
    %v2396 = vadd.f32 %v2344, %v2395
    %v2397 = vpop.f32.mrb[0].mxu0
    %v2398 = vpop.f32.mrb[0].mxu0
    %v2399 = vadd.f32 %v2344, %v2398
    %v2400 = vpop.f32.mrb[0].mxu0
    %2401 = vdwg.mxu0
    %v2402 = vadd.f32 %v1359, %v2396
    %v2403 = vadd.f32 %v1360, %v2399
    %s2404 = scalar_lea.vmem %s10, 1
    %v2405 = vld [vmem:[%s2404] sm:$0x1]
    %s2406 = scalar_lea.vmem %s11, 1
    %v2407 = vld [vmem:[%s2406] sm:$0x1]
    %v2408 = vsel %vm73, %v2402, 0.0
    %2409 = vadd.xlane.f32.xlu0 %v2408
    %v2410 = vpop.xlane.xlu0 %2409
    %v2411 = vsel %vm73, %v2403, 0.0
    %2412 = vadd.xlane.f32.xlu0 %v2411
    %v2413 = vpop.xlane.xlu0 %2412
    %v2414 = vmul.f32 %v2410, %v84
    %v2415 = vmul.f32 %v2413, %v84
    %v2416 = vsub.f32 %v2402, %v2414
    %v2417 = vsub.f32 %v2403, %v2415
    %v2418 = vmul.f32 %v2416, %v2416
    %v2419 = vmul.f32 %v2417, %v2417
    %v2420 = vsel %vm73, %v2418, 0.0
    %2421 = vadd.xlane.f32.xlu0 %v2420
    %v2422 = vpop.xlane.xlu0 %2421
    %v2423 = vsel %vm73, %v2419, 0.0
    %2424 = vadd.xlane.f32.xlu0 %v2423
    %v2425 = vpop.xlane.xlu0 %2424
    %v2426 = vmul.f32 %v2422, %v84
    %v2427 = vmul.f32 %v2425, %v84
    %v2428 = vadd.f32 %v2426, 1e-05
    %v2429 = vadd.f32 %v2427, 1e-05
    %v2430 = vrsqrt.pop %v2428
    %v2431 = vrsqrt.pop %v2429
    %v2432 = vmul.f32 %v2416, %v2430
    %v2433 = vmul.f32 %v2417, %v2431
    %v2435 = vlaneseq
    %v2436 = vshrl.u32 %v2435, 7
    %v2437 = vsub.s32 0, %v2436
    %v2438 = vrot.slane %v2405, %v2437
    %v2440 = vmul.f32 %v2432, %v2438
    %v2441 = vmul.f32 %v2433, %v2438
    %v2443 = vlaneseq
    %v2444 = vshrl.u32 %v2443, 7
    %v2445 = vsub.s32 0, %v2444
    %v2446 = vrot.slane %v2407, %v2445
    %v2448 = vadd.f32 %v2440, %v2446
    %v2449 = vadd.f32 %v2441, %v2446
    %v2450 = vpack.c.bf16 %v2449, %v2448
    %s2451 = scalar_lea.vmem %s12, 16
    %v2452 = vld [vmem:[%s2451] sm:$0xf]
    %v2453 = vld [vmem:[%s2451 + $0x4] sm:$0xf]
    %v2454 = vld [vmem:[%s2451 + $0x8] sm:$0xf]
    %v2455 = vld [vmem:[%s2451 + $0xc] sm:$0xf]
    %s2456 = scalar_lea.vmem %s13, 1
    %v2457 = vld [vmem:[%s2456] sm:$0x1]
    %v2459 = vlaneseq
    %v2460 = vshrl.u32 %v2459, 7
    %v2461 = vsub.s32 0, %v2460
    %v2462 = vrot.slane %v2457, %v2461
    %v2468 = vunpack.c.l.b16 %v2452
    %v2469 = vunpack.c.l.b16 %v2453
    %v2470 = vunpack.c.l.b16 %v2454
    %v2471 = vunpack.c.l.b16 %v2455
    %v2472 = vpack.c.b16 %v2469, %v2468
    %v2473 = vpack.c.b16 %v2471, %v2470
    %v2477 = vsel %vm73, %v2450, 0
    %2479 = vmatprep.subr.bf16.mxu0 0
    %2480 = vmatpush1.bf16.msra.mxu0 %v2472
    %2481 = vmatprep.subr.bf16.mxu0 0
    %2482 = vmatpush1.bf16.msra.mxu0 %v2473
    %2483 = vmatprep.subr.bf16.mxu0 0
    %2484 = vmatpush1.bf16.msra.mxu0 0
    %2485 = vmatprep.subr.bf16.mxu0 0
    %2486 = vmatpush1.bf16.msra.mxu0 0
    %2487 = vmatprep.subr.bf16.mxu0 0
    %2488 = vmatpush1.bf16.msra.mxu0 0
    %2489 = vmatprep.subr.bf16.mxu0 0
    %2490 = vmatpush1.bf16.msra.mxu0 0
    %2491 = vmatprep.subr.bf16.mxu0 0
    %2492 = vmatpush1.bf16.msra.mxu0 0
    %2493 = vmatprep.subr.bf16.mxu0 0
    %2494 = vmatpush1.bf16.msra.mxu0 0
    %2495 = vmatprep.subr.bf16.mxu0 0
    %2496 = vmatpush1.bf16.msra.mxu0 0
    %2497 = vmatprep.subr.bf16.mxu0 0
    %2498 = vmatpush1.bf16.msra.mxu0 0
    %2499 = vmatprep.subr.bf16.mxu0 0
    %2500 = vmatpush1.bf16.msra.mxu0 0
    %2501 = vmatprep.subr.bf16.mxu0 0
    %2502 = vmatpush1.bf16.msra.mxu0 0
    %2503 = vmatprep.subr.bf16.mxu0 0
    %2504 = vmatpush1.bf16.msra.mxu0 0
    %2505 = vmatprep.subr.bf16.mxu0 0
    %2506 = vmatpush1.bf16.msra.mxu0 0
    %2507 = vmatprep.subr.bf16.mxu0 0
    %2508 = vmatpush1.bf16.msra.mxu0 0
    %2509 = vmatprep.subr.bf16.mxu0 0
    %2510 = vmatpush1.bf16.msra.mxu0 0
    %2511 = vmatprep.mubr.bf16.mxu0 0
    %2512 = vmatmul.mubr.bf16.gmra.mrb[0].mxu0 %v2477
    %v2513 = vpop.f32.mrb[0].mxu0
    %v2514 = vadd.f32 %v2462, %v2513
    %v2515 = vpop.f32.mrb[0].mxu0
    %v2516 = vpop.f32.mrb[0].mxu0
    %v2517 = vadd.f32 %v2462, %v2516
    %v2518 = vpop.f32.mrb[0].mxu0
    %2519 = vdwg.mxu0
    %v2520 = vmul.f32 %v2514, 0.5
    %v2521 = vmul.f32 %v2517, 0.5
    %v2522 = vmul.f32 %v2514, 0.7978846
    %v2523 = vmul.f32 %v2517, 0.7978846
    %v2524 = vmul.f32 %v2514, 0.044715
    %v2525 = vmul.f32 %v2517, 0.044715
    %v2526 = vmul.f32 %v2524, %v2514
    %v2527 = vmul.f32 %v2525, %v2517
    %v2528 = vadd.f32 %v2526, 1.0
    %v2529 = vadd.f32 %v2527, 1.0
    %v2530 = vmul.f32 %v2522, %v2528
    %v2531 = vmul.f32 %v2523, %v2529
    %v2532 = vtanh.pop %v2530
    %v2533 = vtanh.pop %v2531
    %v2534 = vadd.f32 %v2532, 1.0
    %v2535 = vadd.f32 %v2533, 1.0
    %v2536 = vmul.f32 %v2520, %v2534
    %v2537 = vmul.f32 %v2521, %v2535
    %v2538 = vpack.c.bf16 %v2537, %v2536
    %s2539 = scalar_lea.vmem %s14, 64
    %v2540 = vld [vmem:[%s2539] sm:$0xf]
    %v2541 = vld [vmem:[%s2539 + $0x4] sm:$0xf]
    %v2542 = vld [vmem:[%s2539 + $0x8] sm:$0xf]
    %v2543 = vld [vmem:[%s2539 + $0xc] sm:$0xf]
    %v2544 = vld [vmem:[%s2539 + $0x10] sm:$0xf]
    %v2545 = vld [vmem:[%s2539 + $0x14] sm:$0xf]
    %v2546 = vld [vmem:[%s2539 + $0x18] sm:$0xf]
    %v2547 = vld [vmem:[%s2539 + $0x1c] sm:$0xf]
    %v2548 = vld [vmem:[%s2539 + $0x20] sm:$0xf]
    %v2549 = vld [vmem:[%s2539 + $0x24] sm:$0xf]
    %v2550 = vld [vmem:[%s2539 + $0x28] sm:$0xf]
    %v2551 = vld [vmem:[%s2539 + $0x2c] sm:$0xf]
    %v2552 = vld [vmem:[%s2539 + $0x30] sm:$0xf]
    %v2553 = vld [vmem:[%s2539 + $0x34] sm:$0xf]
    %v2554 = vld [vmem:[%s2539 + $0x38] sm:$0xf]
    %v2555 = vld [vmem:[%s2539 + $0x3c] sm:$0xf]
    %s2556 = scalar_lea.vmem %s15, 1
    %v2557 = vld [vmem:[%s2556] sm:$0x1]
    %v2559 = vlaneseq
    %v2560 = vshrl.u32 %v2559, 7
    %v2561 = vsub.s32 0, %v2560
    %v2562 = vrot.slane %v2557, %v2561
    %v2580 = vunpack.c.l.b16 %v2540
    %v2581 = vunpack.c.l.b16 %v2541
    %v2582 = vunpack.c.l.b16 %v2542
    %v2583 = vunpack.c.l.b16 %v2543
    %v2584 = vunpack.c.l.b16 %v2544
    %v2585 = vunpack.c.l.b16 %v2545
    %v2586 = vunpack.c.l.b16 %v2546
    %v2587 = vunpack.c.l.b16 %v2547
    %v2588 = vunpack.c.l.b16 %v2548
    %v2589 = vunpack.c.l.b16 %v2549
    %v2590 = vunpack.c.l.b16 %v2550
    %v2591 = vunpack.c.l.b16 %v2551
    %v2592 = vunpack.c.l.b16 %v2552
    %v2593 = vunpack.c.l.b16 %v2553
    %v2594 = vunpack.c.l.b16 %v2554
    %v2595 = vunpack.c.l.b16 %v2555
    %v2596 = vpack.c.b16 %v2581, %v2580
    %v2597 = vpack.c.b16 %v2583, %v2582
    %v2598 = vpack.c.b16 %v2585, %v2584
    %v2599 = vpack.c.b16 %v2587, %v2586
    %v2600 = vpack.c.b16 %v2589, %v2588
    %v2601 = vpack.c.b16 %v2591, %v2590
    %v2602 = vpack.c.b16 %v2593, %v2592
    %v2603 = vpack.c.b16 %v2595, %v2594
    %2612 = vmatprep.subr.bf16.mxu0 0
    %2613 = vmatpush1.bf16.msra.mxu0 %v2596
    %2614 = vmatprep.subr.bf16.mxu0 0
    %2615 = vmatpush1.bf16.msra.mxu0 %v2597
    %2616 = vmatprep.subr.bf16.mxu0 0
    %2617 = vmatpush1.bf16.msra.mxu0 %v2598
    %2618 = vmatprep.subr.bf16.mxu0 0
    %2619 = vmatpush1.bf16.msra.mxu0 %v2599
    %2620 = vmatprep.subr.bf16.mxu0 0
    %2621 = vmatpush1.bf16.msra.mxu0 %v2600
    %2622 = vmatprep.subr.bf16.mxu0 0
    %2623 = vmatpush1.bf16.msra.mxu0 %v2601
    %2624 = vmatprep.subr.bf16.mxu0 0
    %2625 = vmatpush1.bf16.msra.mxu0 %v2602
    %2626 = vmatprep.subr.bf16.mxu0 0
    %2627 = vmatpush1.bf16.msra.mxu0 %v2603
    %2628 = vmatprep.subr.bf16.mxu0 0
    %2629 = vmatpush1.bf16.msra.mxu0 0
    %2630 = vmatprep.subr.bf16.mxu0 0
    %2631 = vmatpush1.bf16.msra.mxu0 0
    %2632 = vmatprep.subr.bf16.mxu0 0
    %2633 = vmatpush1.bf16.msra.mxu0 0
    %2634 = vmatprep.subr.bf16.mxu0 0
    %2635 = vmatpush1.bf16.msra.mxu0 0
    %2636 = vmatprep.subr.bf16.mxu0 0
    %2637 = vmatpush1.bf16.msra.mxu0 0
    %2638 = vmatprep.subr.bf16.mxu0 0
    %2639 = vmatpush1.bf16.msra.mxu0 0
    %2640 = vmatprep.subr.bf16.mxu0 0
    %2641 = vmatpush1.bf16.msra.mxu0 0
    %2642 = vmatprep.subr.bf16.mxu0 0
    %2643 = vmatpush1.bf16.msra.mxu0 0
    %2644 = vmatprep.mubr.bf16.mxu0 0
    %2645 = vmatmul.mubr.bf16.gmra.mrb[0].mxu0 %v2538
    %v2646 = vpop.f32.mrb[0].mxu0
    %v2647 = vadd.f32 %v2562, %v2646
    %v2648 = vpop.f32.mrb[0].mxu0
    %v2649 = vpop.f32.mrb[0].mxu0
    %v2650 = vadd.f32 %v2562, %v2649
    %v2651 = vpop.f32.mrb[0].mxu0
    %2652 = vdwg.mxu0
    %v2653 = vadd.f32 %v2402, %v2647
    %v2654 = vadd.f32 %v2403, %v2650
    %v2655 = vadd.f32 %v2653, %v63
    %v2656 = vadd.f32 %v2654, %v64
    %s2657 = scalar_lea.vmem %s19, 32
    %2658 = vst.msk [vmem:[%s2657] sm:$0xff] %vm73, %v2655
    %2659 = vst.msk [vmem:[%s2657 + $0x8] sm:$0xff] %vm73, %v2656
    %v2660 = vld [vmem:[%s16] sm:$0x1]
    %v2661 = vld [vmem:[%s17] sm:$0x1]
    %v2662 = vsel %vm73, %v2655, 0.0
    %2663 = vadd.xlane.f32.xlu0 %v2662
    %v2664 = vpop.xlane.xlu0 %2663
    %v2665 = vsel %vm73, %v2656, 0.0
    %2666 = vadd.xlane.f32.xlu0 %v2665
    %v2667 = vpop.xlane.xlu0 %2666
    %v2668 = vmul.f32 %v2664, %v84
    %v2669 = vmul.f32 %v2667, %v84
    %v2670 = vsub.f32 %v2655, %v2668
    %v2671 = vsub.f32 %v2656, %v2669
    %v2672 = vmul.f32 %v2670, %v2670
    %v2673 = vmul.f32 %v2671, %v2671
    %v2674 = vsel %vm73, %v2672, 0.0
    %2675 = vadd.xlane.f32.xlu0 %v2674
    %v2676 = vpop.xlane.xlu0 %2675
    %v2677 = vsel %vm73, %v2673, 0.0
    %2678 = vadd.xlane.f32.xlu0 %v2677
    %v2679 = vpop.xlane.xlu0 %2678
    %v2680 = vmul.f32 %v2676, %v84
    %v2681 = vmul.f32 %v2679, %v84
    %v2682 = vadd.f32 %v2680, 1e-05
    %v2683 = vadd.f32 %v2681, 1e-05
    %v2684 = vrsqrt.pop %v2682
    %v2685 = vrsqrt.pop %v2683
    %v2686 = vmul.f32 %v2670, %v2684
    %v2687 = vmul.f32 %v2671, %v2685
    %v2689 = vlaneseq
    %v2690 = vshrl.u32 %v2689, 7
    %v2691 = vsub.s32 0, %v2690
    %v2692 = vrot.slane %v2660, %v2691
    %v2694 = vmul.f32 %v2686, %v2692
    %v2695 = vmul.f32 %v2687, %v2692
    %v2697 = vlaneseq
    %v2698 = vshrl.u32 %v2697, 7
    %v2699 = vsub.s32 0, %v2698
    %v2700 = vrot.slane %v2661, %v2699
    %v2702 = vadd.f32 %v2694, %v2700
    %v2703 = vadd.f32 %v2695, %v2700
    %2704 = vst.msk [vmem:[#allocation2] sm:$0xff] %vm73, %v2702
    %2705 = vst.msk [vmem:[#allocation2 + $0x8] sm:$0xff] %vm73, %v2703
    // Predicated region
    $region74: #{gpt2_transformer_for_latent.1} parent=1 // pred_check
      _
    $region75: #{gpt2_transformer_for_latent.1} parent=1 // pred_check_branch
      %2707 = sbr.rel (0) target = $region77
    $region76: #{gpt2_transformer_for_latent.1} parent=1 // pred_region
      %s2709 = ssub.s32 256, 256
      %2710 = vsyncadd [#allocation3], %s2709
      %s2711 = sshll.u32 [#allocation2], 4
      %s2712 = int_to_ptr.vmem [resolvable:$true] %s2711
      %2717 = dma.vmem_to_hbm [thread:$0]  %s2712, 256, %s18, [#allocation3], 128, 128, 8
    $region77: #{gpt2_transformer_for_latent.1} parent=1 // pred_fallthru
      _
    // Predicated region
    $region78: #{gpt2_transformer_for_latent.1} parent=1 // pred_check
      _
    $region79: #{gpt2_transformer_for_latent.1} parent=1 // pred_check_branch
      %2719 = sbr.rel (0) target = $region81
    $region80: #{gpt2_transformer_for_latent.1} parent=1 // pred_region
      _
    $region81: #{gpt2_transformer_for_latent.1} parent=1 // pred_fallthru
      _
    // Predicated region
    $region82: #{gpt2_transformer_for_latent.1} parent=1 // pred_check
      _
    $region83: #{gpt2_transformer_for_latent.1} parent=1 // pred_check_branch
      %2721 = sbr.rel (0) target = $region85
    $region84: #{gpt2_transformer_for_latent.1} parent=1 // pred_region
      %2722 = dma.done [#allocation3], 256
    $region85: #{gpt2_transformer_for_latent.1} parent=1 // pred_fallthru
      _
    // Predicated region
    $region86: #{gpt2_transformer_for_latent.1} parent=1 // pred_check
      _
    $region87: #{gpt2_transformer_for_latent.1} parent=1 // pred_check_branch
      %2724 = sbr.rel (0) target = $region89
    $region88: #{gpt2_transformer_for_latent.1} parent=1 // pred_region
      _
    $region89: #{gpt2_transformer_for_latent.1} parent=1 // pred_fallthru
      _
    %2725 = vsyncpa [#allocation3], 1

</llo_original>
